<compile_context>
chip_gen: v7x
topology: tpu7x:2x2x1
jax: 0.10.0
libtpu: 0.0.40
codegen_flags: <defaults>
</compile_context>

<pallas_src>
import functools
import math

import jax
import jax.numpy as jnp
from jax.experimental import pallas as pl
from jax.experimental.pallas import tpu as pltpu

EMBEDDING_DIM = 128
HEAD_NUM = 4
KEY_DIM = 32            # HEAD_NUM * KEY_DIM == EMBEDDING_DIM
FF_HIDDEN_DIM = 256
ENCODER_LAYER_NUM = 2
BN_EPS = 1e-5


def _vmem_spec():
    return pl.BlockSpec(memory_space=pltpu.MemorySpace.VMEM)


# ----------------------------------------------------------------------------
# Kernel
# ----------------------------------------------------------------------------
def _batchnorm(x, gamma, beta, inv_n):
    # Training-mode BatchNorm1d over the row axis, biased variance, two-pass
    # (mu first, then centered second moment) for numerical robustness.
    mu = jnp.sum(x, axis=0, keepdims=True) * inv_n
    d = x - mu
    var = jnp.sum(d * d, axis=0, keepdims=True) * inv_n
    scale = jax.lax.rsqrt(var + BN_EPS) * gamma
    return d * scale + beta


def _encoder_kernel(B, N,
                    x_ref, emb_w_ref, emb_b_ref,
                    wqkv_ref, wc_ref, bc_ref, g1_ref, b1_ref,
                    w1_ref, bf1_ref, w2_ref, bf2_ref, g2_ref, b2_ref,
                    o_ref, oc_ref):
    E, H, K = EMBEDDING_DIM, HEAD_NUM, KEY_DIM
    BN = B * N
    inv_n = 1.0 / BN
    bf16 = jnp.bfloat16

    # ---- Embedding on the VPU: depth-2 contraction as two broadcast FMAs (f32).
    xy = x_ref[...]                                            # (BN, 2)
    x = (xy[:, 0:1] * emb_w_ref[0:1, :]
         + xy[:, 1:2] * emb_w_ref[1:2, :]
         + emb_b_ref[...])                                     # (BN, E) f32

    n_layers = wqkv_ref.shape[0]
    for l in range(n_layers):                                  # static unroll
        # ---- Fused QKV projection: one MXU pass, bf16 operands, f32 acc.
        # (1/sqrt(K) already folded into the Wq columns.)
        pqkv = jnp.dot(x.astype(bf16), wqkv_ref[l],
                       preferred_element_type=jnp.float32)     # (BN, 3E) f32
        # Single bf16 cast; heads are sliced directly from it (lane-aligned).
        pqkv_b = pqkv.astype(bf16).reshape(B, N, 3 * E)        # (B, N, 3E)

        # ---- Multi-head attention, batched over B; each head's output lands
        # in its 32-lane slice of the (BN, E) scratch (no concat, no zeros).
        for h in range(H):                                     # 4 static iters
            c0 = h * K
            qh = pqkv_b[:, :, 0 * E + c0:0 * E + c0 + K]       # (B, N, K) bf16
            kh = pqkv_b[:, :, 1 * E + c0:1 * E + c0 + K]
            vh = pqkv_b[:, :, 2 * E + c0:2 * E + c0 + K]
            s = jnp.einsum('bnk,bmk->bnm', qh, kh,
                           preferred_element_type=jnp.float32)  # (B, N, N) f32
            m = jnp.max(s, axis=-1, keepdims=True)
            e = jnp.exp(s - m)
            p = e / jnp.sum(e, axis=-1, keepdims=True)          # exact softmax
            oh = jnp.einsum('bnm,bmk->bnk', p.astype(bf16), vh,
                            preferred_element_type=jnp.float32)  # (B, N, K) f32
            oc_ref[:, c0:c0 + K] = oh.reshape(BN, K)

        # ---- ONE 128-deep combine matmul; bc folded into the epilogue add.
        mh = jnp.dot(oc_ref[...].astype(bf16), wc_ref[l],
                     preferred_element_type=jnp.float32) + bc_ref[l]

        # ---- Add & BatchNorm 1 (f32)
        out1 = _batchnorm(x + mh, g1_ref[l], b1_ref[l], inv_n)

        # ---- Feed forward: W2(relu(W1 x)), bf16 MXU operands, f32 acc.
        h1 = jnp.maximum(
            jnp.dot(out1.astype(bf16), w1_ref[l],
                    preferred_element_type=jnp.float32) + bf1_ref[l], 0.0)
        ff = (jnp.dot(h1.astype(bf16), w2_ref[l],
                      preferred_element_type=jnp.float32) + bf2_ref[l])

        # ---- Add & BatchNorm 2 (f32)
        x = _batchnorm(out1 + ff, g2_ref[l], b2_ref[l], inv_n)

    o_ref[...] = x


# ----------------------------------------------------------------------------
# Wrapper
# ----------------------------------------------------------------------------
def _pack_params(params):
    # Stack per-layer weights along a leading layer axis; fuse Wq|Wk|Wv, fold
    # the 1/sqrt(KEY_DIM) attention scale into Wq, and cast all matmul weights
    # to bf16 (biases / BatchNorm affine params stay f32).
    inv_sqrt_k = 1.0 / math.sqrt(KEY_DIM)
    cols = {k: [] for k in
            ("wqkv", "wc", "bc", "g1", "b1", "w1", "bf1", "w2", "bf2", "g2", "b2")}
    for lp in params["layers"]:
        cols["wqkv"].append(jnp.concatenate(
            [lp["wq"] * inv_sqrt_k, lp["wk"], lp["wv"]], axis=1))
        for k in ("wc", "bc", "g1", "b1", "w1", "bf1", "w2", "bf2", "g2", "b2"):
            cols[k].append(lp[k])

    def stack(name, dtype):
        return jnp.stack(cols[name], axis=0).astype(dtype)

    bf16, f32 = jnp.bfloat16, jnp.float32
    return (stack("wqkv", bf16), stack("wc", bf16), stack("bc", f32),
            stack("g1", f32), stack("b1", f32),
            stack("w1", bf16), stack("bf1", f32),
            stack("w2", bf16), stack("bf2", f32),
            stack("g2", f32), stack("b2", f32))


def encoder_forward(data, params):
    B, N, _ = data.shape
    E = EMBEDDING_DIM
    # TODO(synk): for N not a multiple of 8, pad rows in the wrapper and mask
    # the padded rows out of the BatchNorm statistics (inv_n must exclude them).
    assert N % 8 == 0, "pad N to a multiple of 8 for free (8,128) re-views"
    xf = data.reshape(B * N, 2)
    packed = _pack_params(params)

    # TODO(synk): for large B*N (real TSP batches) tile the row dimension with
    # a grid (two-stage BatchNorm reduction), give weights constant index_maps,
    # mark the row axis "parallel" for v7x megacore, and budget vmem_limit_bytes
    # for v7x's 64 MiB; at this size a single grid step keeps everything
    # VMEM-resident with no exposed pipelining loss.
    out = pl.pallas_call(
        functools.partial(_encoder_kernel, B, N),
        out_shape=jax.ShapeDtypeStruct((B * N, E), jnp.float32),
        in_specs=[_vmem_spec()] * (3 + len(packed)),
        out_specs=_vmem_spec(),
        scratch_shapes=[pltpu.VMEM((B * N, E), jnp.float32)],   # per-layer oc
    )(xf, params["emb_w"], params["emb_b"], *packed)
    return out.reshape(B, N, E)


# ----------------------------------------------------------------------------
# Parameter init (deterministic, PyTorch-Linear-style uniform(-1/sqrt(in), ..))
# Weights stored already transposed as (in, out) so kernels compute x @ W.
# ----------------------------------------------------------------------------
def _linear(key, fan_in, fan_out, bias=True):
    kw, kb = jax.random.split(key)
    bound = 1.0 / math.sqrt(fan_in)
    w = jax.random.uniform(kw, (fan_in, fan_out), jnp.float32, -bound, bound)
    if not bias:
        return w
    b = jax.random.uniform(kb, (1, fan_out), jnp.float32, -bound, bound)
    return w, b


def init_params(key):
    E, HK, F = EMBEDDING_DIM, HEAD_NUM * KEY_DIM, FF_HIDDEN_DIM
    keys = jax.random.split(key, 1 + ENCODER_LAYER_NUM)
    emb_w, emb_b = _linear(keys[0], 2, E)
    layers = []
    for li in range(ENCODER_LAYER_NUM):
        ks = jax.random.split(keys[1 + li], 6)
        wq = _linear(ks[0], E, HK, bias=False)
        wk = _linear(ks[1], E, HK, bias=False)
        wv = _linear(ks[2], E, HK, bias=False)
        wc, bc = _linear(ks[3], HK, E)
        w1, bf1 = _linear(ks[4], E, F)
        w2, bf2 = _linear(ks[5], F, E)
        layers.append(dict(
            wq=wq, wk=wk, wv=wv, wc=wc, bc=bc,
            g1=jnp.ones((1, E), jnp.float32), b1=jnp.zeros((1, E), jnp.float32),
            w1=w1, bf1=bf1, w2=w2, bf2=bf2,
            g2=jnp.ones((1, E), jnp.float32), b2=jnp.zeros((1, E), jnp.float32),
        ))
    # TODO(synk): BatchNorm running-stat updates (stateful buffers) are not
    # modelled; training-mode batch statistics are used, matching the default
    # forward() behaviour of the PyTorch module.
    return dict(emb_w=emb_w, emb_b=emb_b, layers=layers)


# ----------------------------------------------------------------------------
# Pure-JAX f32 reference (mirrors the PyTorch forward) for a correctness check
# ----------------------------------------------------------------------------
def reference_forward(data, params):
    B, N, _ = data.shape
    H, K, E = HEAD_NUM, KEY_DIM, EMBEDDING_DIM
    x = data.reshape(B * N, 2) @ params["emb_w"] + params["emb_b"]
    for lp in params["layers"]:
        def heads(p):
            return jnp.transpose(p.reshape(B, N, H, K), (0, 2, 1, 3))
        q, k, v = heads(x @ lp["wq"]), heads(x @ lp["wk"]), heads(x @ lp["wv"])
        s = jnp.einsum("bhqd,bhkd->bhqk", q, k) / math.sqrt(K)
        w = jax.nn.softmax(s, axis=-1)
        o = jnp.einsum("bhqk,bhkd->bhqd", w, v)
        oc = jnp.transpose(o, (0, 2, 1, 3)).reshape(B * N, H * K)
        mh = oc @ lp["wc"] + lp["bc"]

        a1 = x + mh
        mu = a1.mean(0, keepdims=True)
        var = ((a1 - mu) ** 2).mean(0, keepdims=True)
        out1 = (a1 - mu) / jnp.sqrt(var + BN_EPS) * lp["g1"] + lp["b1"]

        ff = jnp.maximum(out1 @ lp["w1"] + lp["bf1"], 0.0) @ lp["w2"] + lp["bf2"]

        a2 = out1 + ff
        mu = a2.mean(0, keepdims=True)
        var = ((a2 - mu) ** 2).mean(0, keepdims=True)
        x = (a2 - mu) / jnp.sqrt(var + BN_EPS) * lp["g2"] + lp["b2"]
    return x.reshape(B, N, E)


if __name__ == "__main__":
    key = jax.random.PRNGKey(0)
    kp, kd = jax.random.split(key)
    params = init_params(kp)

    B, N = 2, 16
    data = jax.random.uniform(kd, (B, N, 2), jnp.float32)   # TSP (x, y) coords

    out = encoder_forward(data, params)
    out = jax.block_until_ready(out)

    ref = reference_forward(data, params)
    assert out.shape == (B, N, EMBEDDING_DIM)
    # The kernel uses bf16 MXU operands (f32 accumulation) while the reference
    # is pure f32, so compare with a bf16-appropriate elementwise tolerance plus
    # a tighter aggregate (relative Frobenius) check.
    max_err = float(jnp.max(jnp.abs(out - ref)))
    rel_err = float(jnp.linalg.norm(out - ref) / jnp.linalg.norm(ref))
    assert jnp.allclose(out, ref, atol=1e-1, rtol=1e-1), max_err
    assert rel_err < 5e-2, rel_err

    print("KERNEL_OK")
</pallas_src>

<mosaic_0001>
module attributes {stable_mosaic.version = 11 : i64} {
  func.func @_encoder_kernel(%arg0: memref<32x2xf32, #tpu.memory_space<vmem>>, %arg1: memref<2x128xf32, #tpu.memory_space<vmem>>, %arg2: memref<1x128xf32, #tpu.memory_space<vmem>>, %arg3: memref<2x128x384xbf16, #tpu.memory_space<vmem>>, %arg4: memref<2x128x128xbf16, #tpu.memory_space<vmem>>, %arg5: memref<2x1x128xf32, #tpu.memory_space<vmem>>, %arg6: memref<2x1x128xf32, #tpu.memory_space<vmem>>, %arg7: memref<2x1x128xf32, #tpu.memory_space<vmem>>, %arg8: memref<2x128x256xbf16, #tpu.memory_space<vmem>>, %arg9: memref<2x1x256xf32, #tpu.memory_space<vmem>>, %arg10: memref<2x256x128xbf16, #tpu.memory_space<vmem>>, %arg11: memref<2x1x128xf32, #tpu.memory_space<vmem>>, %arg12: memref<2x1x128xf32, #tpu.memory_space<vmem>>, %arg13: memref<2x1x128xf32, #tpu.memory_space<vmem>>, %arg14: memref<32x128xf32, #tpu.memory_space<vmem>>, %arg15: memref<32x128xf32, #tpu.memory_space<vmem>>) attributes {dimension_semantics = [], scalar_prefetch = 0 : i64, scratch_operands = 1 : i64, tpu.core_type = #tpu.core_type<tc>} {
    %c0 = arith.constant 0 : index
    %c0_0 = arith.constant 0 : index
    %0 = vector.load %arg0[%c0, %c0_0] : memref<32x2xf32, #tpu.memory_space<vmem>>, vector<32x2xf32>
    %1 = vector.extract_strided_slice %0 {offsets = [0, 0], sizes = [32, 1], strides = [1, 1]} : vector<32x2xf32> to vector<32x1xf32>
    %c0_1 = arith.constant 0 : index
    %c0_2 = arith.constant 0 : index
    %2 = vector.load %arg1[%c0_1, %c0_2] : memref<2x128xf32, #tpu.memory_space<vmem>>, vector<1x128xf32>
    %3 = vector.broadcast %1 : vector<32x1xf32> to vector<32x128xf32>
    %4 = vector.broadcast %2 : vector<1x128xf32> to vector<32x128xf32>
    %5 = arith.mulf %3, %4 : vector<32x128xf32>
    %6 = vector.extract_strided_slice %0 {offsets = [0, 1], sizes = [32, 1], strides = [1, 1]} : vector<32x2xf32> to vector<32x1xf32>
    %c1 = arith.constant 1 : index
    %c0_3 = arith.constant 0 : index
    %7 = vector.load %arg1[%c1, %c0_3] : memref<2x128xf32, #tpu.memory_space<vmem>>, vector<1x128xf32>
    %8 = vector.broadcast %6 : vector<32x1xf32> to vector<32x128xf32>
    %9 = vector.broadcast %7 : vector<1x128xf32> to vector<32x128xf32>
    %10 = arith.mulf %8, %9 : vector<32x128xf32>
    %11 = arith.addf %5, %10 : vector<32x128xf32>
    %c0_4 = arith.constant 0 : index
    %c0_5 = arith.constant 0 : index
    %12 = vector.load %arg2[%c0_4, %c0_5] : memref<1x128xf32, #tpu.memory_space<vmem>>, vector<1x128xf32>
    %13 = vector.broadcast %12 : vector<1x128xf32> to vector<32x128xf32>
    %14 = arith.addf %11, %13 : vector<32x128xf32>
    %15 = arith.truncf %14 : vector<32x128xf32> to vector<32x128xbf16>
    %c0_6 = arith.constant 0 : index
    %c0_7 = arith.constant 0 : index
    %c0_8 = arith.constant 0 : index
    %16 = vector.load %arg3[%c0_6, %c0_7, %c0_8] : memref<2x128x384xbf16, #tpu.memory_space<vmem>>, vector<1x128x384xbf16>
    %17 = vector.shape_cast %16 : vector<1x128x384xbf16> to vector<128x384xbf16>
    %cst = arith.constant dense<0.000000e+00> : vector<32x384xf32>
    %18 = tpu.matmul %15, %17, %cst {dimension_numbers = #tpu.dot_dimension_numbers<[1], [0], [0], [1], [0, 0, 1, 1], [], []>} : vector<32x128xbf16>, vector<128x384xbf16>, vector<32x384xf32> -> vector<32x384xf32>
    %19 = arith.truncf %18 : vector<32x384xf32> to vector<32x384xbf16>
    %20 = vector.shape_cast %19 : vector<32x384xbf16> to vector<2x16x384xbf16>
    %21 = vector.extract_strided_slice %20 {offsets = [0, 0, 0], sizes = [2, 16, 32], strides = [1, 1, 1]} : vector<2x16x384xbf16> to vector<2x16x32xbf16>
    %22 = vector.extract_strided_slice %20 {offsets = [0, 0, 128], sizes = [2, 16, 32], strides = [1, 1, 1]} : vector<2x16x384xbf16> to vector<2x16x32xbf16>
    %23 = vector.extract_strided_slice %20 {offsets = [0, 0, 256], sizes = [2, 16, 32], strides = [1, 1, 1]} : vector<2x16x384xbf16> to vector<2x16x32xbf16>
    "tpu.trace_start"() <{level = 10 : i32, message = "bnk,bmk->bnm"}> : () -> ()
    %cst_9 = arith.constant dense<0.000000e+00> : vector<2x16x16xf32>
    %24 = tpu.matmul %21, %22, %cst_9 {dimension_numbers = #tpu.dot_dimension_numbers<[2], [2], [1], [1], [0, 0, 0, 1, 1, 1], [0], [0]>} : vector<2x16x32xbf16>, vector<2x16x32xbf16>, vector<2x16x16xf32> -> vector<2x16x16xf32>
    "tpu.trace_stop"() : () -> ()
    %cst_10 = arith.constant dense<0xFF800000> : vector<2x16xf32>
    %25 = vector.multi_reduction <maximumf>, %24, %cst_10 [2] : vector<2x16x16xf32> to vector<2x16xf32>
    %26 = vector.shape_cast %25 : vector<2x16xf32> to vector<2x16x1xf32>
    %27 = vector.broadcast %26 : vector<2x16x1xf32> to vector<2x16x16xf32>
    %28 = arith.subf %24, %27 : vector<2x16x16xf32>
    %29 = math.exp %28 : vector<2x16x16xf32>
    %cst_11 = arith.constant dense<0.000000e+00> : vector<2x16xf32>
    %30 = vector.multi_reduction <add>, %29, %cst_11 [2] : vector<2x16x16xf32> to vector<2x16xf32>
    %31 = vector.shape_cast %30 : vector<2x16xf32> to vector<2x16x1xf32>
    %32 = vector.broadcast %31 : vector<2x16x1xf32> to vector<2x16x16xf32>
    %33 = arith.divf %29, %32 : vector<2x16x16xf32>
    %34 = arith.truncf %33 : vector<2x16x16xf32> to vector<2x16x16xbf16>
    "tpu.trace_start"() <{level = 10 : i32, message = "bnm,bmk->bnk"}> : () -> ()
    %cst_12 = arith.constant dense<0.000000e+00> : vector<2x16x32xf32>
    %35 = tpu.matmul %34, %23, %cst_12 {dimension_numbers = #tpu.dot_dimension_numbers<[2], [1], [1], [2], [0, 0, 0, 1, 1, 2], [0], [0]>} : vector<2x16x16xbf16>, vector<2x16x32xbf16>, vector<2x16x32xf32> -> vector<2x16x32xf32>
    "tpu.trace_stop"() : () -> ()
    %36 = vector.shape_cast %35 : vector<2x16x32xf32> to vector<32x32xf32>
    %c0_13 = arith.constant 0 : index
    %c0_14 = arith.constant 0 : index
    %37 = vector.load %arg15[%c0_13, %c0_14] : memref<32x128xf32, #tpu.memory_space<vmem>>, vector<32x32xf32>
    tpu.vector_store %arg15[%c0_13, %c0_14], %36 {strides = array<i32>} : memref<32x128xf32, #tpu.memory_space<vmem>>, vector<32x32xf32>,
    %38 = vector.extract_strided_slice %20 {offsets = [0, 0, 32], sizes = [2, 16, 32], strides = [1, 1, 1]} : vector<2x16x384xbf16> to vector<2x16x32xbf16>
    %39 = vector.extract_strided_slice %20 {offsets = [0, 0, 160], sizes = [2, 16, 32], strides = [1, 1, 1]} : vector<2x16x384xbf16> to vector<2x16x32xbf16>
    %40 = vector.extract_strided_slice %20 {offsets = [0, 0, 288], sizes = [2, 16, 32], strides = [1, 1, 1]} : vector<2x16x384xbf16> to vector<2x16x32xbf16>
    "tpu.trace_start"() <{level = 10 : i32, message = "bnk,bmk->bnm"}> : () -> ()
    %cst_15 = arith.constant dense<0.000000e+00> : vector<2x16x16xf32>
    %41 = tpu.matmul %38, %39, %cst_15 {dimension_numbers = #tpu.dot_dimension_numbers<[2], [2], [1], [1], [0, 0, 0, 1, 1, 1], [0], [0]>} : vector<2x16x32xbf16>, vector<2x16x32xbf16>, vector<2x16x16xf32> -> vector<2x16x16xf32>
    "tpu.trace_stop"() : () -> ()
    %cst_16 = arith.constant dense<0xFF800000> : vector<2x16xf32>
    %42 = vector.multi_reduction <maximumf>, %41, %cst_16 [2] : vector<2x16x16xf32> to vector<2x16xf32>
    %43 = vector.shape_cast %42 : vector<2x16xf32> to vector<2x16x1xf32>
    %44 = vector.broadcast %43 : vector<2x16x1xf32> to vector<2x16x16xf32>
    %45 = arith.subf %41, %44 : vector<2x16x16xf32>
    %46 = math.exp %45 : vector<2x16x16xf32>
    %cst_17 = arith.constant dense<0.000000e+00> : vector<2x16xf32>
    %47 = vector.multi_reduction <add>, %46, %cst_17 [2] : vector<2x16x16xf32> to vector<2x16xf32>
    %48 = vector.shape_cast %47 : vector<2x16xf32> to vector<2x16x1xf32>
    %49 = vector.broadcast %48 : vector<2x16x1xf32> to vector<2x16x16xf32>
    %50 = arith.divf %46, %49 : vector<2x16x16xf32>
    %51 = arith.truncf %50 : vector<2x16x16xf32> to vector<2x16x16xbf16>
    "tpu.trace_start"() <{level = 10 : i32, message = "bnm,bmk->bnk"}> : () -> ()
    %cst_18 = arith.constant dense<0.000000e+00> : vector<2x16x32xf32>
    %52 = tpu.matmul %51, %40, %cst_18 {dimension_numbers = #tpu.dot_dimension_numbers<[2], [1], [1], [2], [0, 0, 0, 1, 1, 2], [0], [0]>} : vector<2x16x16xbf16>, vector<2x16x32xbf16>, vector<2x16x32xf32> -> vector<2x16x32xf32>
    "tpu.trace_stop"() : () -> ()
    %53 = vector.shape_cast %52 : vector<2x16x32xf32> to vector<32x32xf32>
    %c0_19 = arith.constant 0 : index
    %c32 = arith.constant 32 : index
    %54 = vector.load %arg15[%c0_19, %c32] : memref<32x128xf32, #tpu.memory_space<vmem>>, vector<32x32xf32>
    tpu.vector_store %arg15[%c0_19, %c32], %53 {strides = array<i32>} : memref<32x128xf32, #tpu.memory_space<vmem>>, vector<32x32xf32>,
    %55 = vector.extract_strided_slice %20 {offsets = [0, 0, 64], sizes = [2, 16, 32], strides = [1, 1, 1]} : vector<2x16x384xbf16> to vector<2x16x32xbf16>
    %56 = vector.extract_strided_slice %20 {offsets = [0, 0, 192], sizes = [2, 16, 32], strides = [1, 1, 1]} : vector<2x16x384xbf16> to vector<2x16x32xbf16>
    %57 = vector.extract_strided_slice %20 {offsets = [0, 0, 320], sizes = [2, 16, 32], strides = [1, 1, 1]} : vector<2x16x384xbf16> to vector<2x16x32xbf16>
    "tpu.trace_start"() <{level = 10 : i32, message = "bnk,bmk->bnm"}> : () -> ()
    %cst_20 = arith.constant dense<0.000000e+00> : vector<2x16x16xf32>
    %58 = tpu.matmul %55, %56, %cst_20 {dimension_numbers = #tpu.dot_dimension_numbers<[2], [2], [1], [1], [0, 0, 0, 1, 1, 1], [0], [0]>} : vector<2x16x32xbf16>, vector<2x16x32xbf16>, vector<2x16x16xf32> -> vector<2x16x16xf32>
    "tpu.trace_stop"() : () -> ()
    %cst_21 = arith.constant dense<0xFF800000> : vector<2x16xf32>
    %59 = vector.multi_reduction <maximumf>, %58, %cst_21 [2] : vector<2x16x16xf32> to vector<2x16xf32>
    %60 = vector.shape_cast %59 : vector<2x16xf32> to vector<2x16x1xf32>
    %61 = vector.broadcast %60 : vector<2x16x1xf32> to vector<2x16x16xf32>
    %62 = arith.subf %58, %61 : vector<2x16x16xf32>
    %63 = math.exp %62 : vector<2x16x16xf32>
    %cst_22 = arith.constant dense<0.000000e+00> : vector<2x16xf32>
    %64 = vector.multi_reduction <add>, %63, %cst_22 [2] : vector<2x16x16xf32> to vector<2x16xf32>
    %65 = vector.shape_cast %64 : vector<2x16xf32> to vector<2x16x1xf32>
    %66 = vector.broadcast %65 : vector<2x16x1xf32> to vector<2x16x16xf32>
    %67 = arith.divf %63, %66 : vector<2x16x16xf32>
    %68 = arith.truncf %67 : vector<2x16x16xf32> to vector<2x16x16xbf16>
    "tpu.trace_start"() <{level = 10 : i32, message = "bnm,bmk->bnk"}> : () -> ()
    %cst_23 = arith.constant dense<0.000000e+00> : vector<2x16x32xf32>
    %69 = tpu.matmul %68, %57, %cst_23 {dimension_numbers = #tpu.dot_dimension_numbers<[2], [1], [1], [2], [0, 0, 0, 1, 1, 2], [0], [0]>} : vector<2x16x16xbf16>, vector<2x16x32xbf16>, vector<2x16x32xf32> -> vector<2x16x32xf32>
    "tpu.trace_stop"() : () -> ()
    %70 = vector.shape_cast %69 : vector<2x16x32xf32> to vector<32x32xf32>
    %c0_24 = arith.constant 0 : index
    %c64 = arith.constant 64 : index
    %71 = vector.load %arg15[%c0_24, %c64] : memref<32x128xf32, #tpu.memory_space<vmem>>, vector<32x32xf32>
    tpu.vector_store %arg15[%c0_24, %c64], %70 {strides = array<i32>} : memref<32x128xf32, #tpu.memory_space<vmem>>, vector<32x32xf32>,
    %72 = vector.extract_strided_slice %20 {offsets = [0, 0, 96], sizes = [2, 16, 32], strides = [1, 1, 1]} : vector<2x16x384xbf16> to vector<2x16x32xbf16>
    %73 = vector.extract_strided_slice %20 {offsets = [0, 0, 224], sizes = [2, 16, 32], strides = [1, 1, 1]} : vector<2x16x384xbf16> to vector<2x16x32xbf16>
    %74 = vector.extract_strided_slice %20 {offsets = [0, 0, 352], sizes = [2, 16, 32], strides = [1, 1, 1]} : vector<2x16x384xbf16> to vector<2x16x32xbf16>
    "tpu.trace_start"() <{level = 10 : i32, message = "bnk,bmk->bnm"}> : () -> ()
    %cst_25 = arith.constant dense<0.000000e+00> : vector<2x16x16xf32>
    %75 = tpu.matmul %72, %73, %cst_25 {dimension_numbers = #tpu.dot_dimension_numbers<[2], [2], [1], [1], [0, 0, 0, 1, 1, 1], [0], [0]>} : vector<2x16x32xbf16>, vector<2x16x32xbf16>, vector<2x16x16xf32> -> vector<2x16x16xf32>
    "tpu.trace_stop"() : () -> ()
    %cst_26 = arith.constant dense<0xFF800000> : vector<2x16xf32>
    %76 = vector.multi_reduction <maximumf>, %75, %cst_26 [2] : vector<2x16x16xf32> to vector<2x16xf32>
    %77 = vector.shape_cast %76 : vector<2x16xf32> to vector<2x16x1xf32>
    %78 = vector.broadcast %77 : vector<2x16x1xf32> to vector<2x16x16xf32>
    %79 = arith.subf %75, %78 : vector<2x16x16xf32>
    %80 = math.exp %79 : vector<2x16x16xf32>
    %cst_27 = arith.constant dense<0.000000e+00> : vector<2x16xf32>
    %81 = vector.multi_reduction <add>, %80, %cst_27 [2] : vector<2x16x16xf32> to vector<2x16xf32>
    %82 = vector.shape_cast %81 : vector<2x16xf32> to vector<2x16x1xf32>
    %83 = vector.broadcast %82 : vector<2x16x1xf32> to vector<2x16x16xf32>
    %84 = arith.divf %80, %83 : vector<2x16x16xf32>
    %85 = arith.truncf %84 : vector<2x16x16xf32> to vector<2x16x16xbf16>
    "tpu.trace_start"() <{level = 10 : i32, message = "bnm,bmk->bnk"}> : () -> ()
    %cst_28 = arith.constant dense<0.000000e+00> : vector<2x16x32xf32>
    %86 = tpu.matmul %85, %74, %cst_28 {dimension_numbers = #tpu.dot_dimension_numbers<[2], [1], [1], [2], [0, 0, 0, 1, 1, 2], [0], [0]>} : vector<2x16x16xbf16>, vector<2x16x32xbf16>, vector<2x16x32xf32> -> vector<2x16x32xf32>
    "tpu.trace_stop"() : () -> ()
    %87 = vector.shape_cast %86 : vector<2x16x32xf32> to vector<32x32xf32>
    %c0_29 = arith.constant 0 : index
    %c96 = arith.constant 96 : index
    %88 = vector.load %arg15[%c0_29, %c96] : memref<32x128xf32, #tpu.memory_space<vmem>>, vector<32x32xf32>
    tpu.vector_store %arg15[%c0_29, %c96], %87 {strides = array<i32>} : memref<32x128xf32, #tpu.memory_space<vmem>>, vector<32x32xf32>,
    %c0_30 = arith.constant 0 : index
    %c0_31 = arith.constant 0 : index
    %89 = vector.load %arg15[%c0_30, %c0_31] : memref<32x128xf32, #tpu.memory_space<vmem>>, vector<32x128xf32>
    %90 = arith.truncf %89 : vector<32x128xf32> to vector<32x128xbf16>
    %c0_32 = arith.constant 0 : index
    %c0_33 = arith.constant 0 : index
    %c0_34 = arith.constant 0 : index
    %91 = vector.load %arg4[%c0_32, %c0_33, %c0_34] : memref<2x128x128xbf16, #tpu.memory_space<vmem>>, vector<1x128x128xbf16>
    %92 = vector.shape_cast %91 : vector<1x128x128xbf16> to vector<128x128xbf16>
    %cst_35 = arith.constant dense<0.000000e+00> : vector<32x128xf32>
    %93 = tpu.matmul %90, %92, %cst_35 {dimension_numbers = #tpu.dot_dimension_numbers<[1], [0], [0], [1], [0, 0, 1, 1], [], []>} : vector<32x128xbf16>, vector<128x128xbf16>, vector<32x128xf32> -> vector<32x128xf32>
    %c0_36 = arith.constant 0 : index
    %c0_37 = arith.constant 0 : index
    %c0_38 = arith.constant 0 : index
    %94 = vector.load %arg5[%c0_36, %c0_37, %c0_38] : memref<2x1x128xf32, #tpu.memory_space<vmem>>, vector<1x1x128xf32>
    %95 = vector.shape_cast %94 : vector<1x1x128xf32> to vector<1x128xf32>
    %96 = vector.broadcast %95 : vector<1x128xf32> to vector<32x128xf32>
    %97 = arith.addf %93, %96 : vector<32x128xf32>
    %98 = arith.addf %14, %97 : vector<32x128xf32>
    %c0_39 = arith.constant 0 : index
    %c0_40 = arith.constant 0 : index
    %c0_41 = arith.constant 0 : index
    %99 = vector.load %arg6[%c0_39, %c0_40, %c0_41] : memref<2x1x128xf32, #tpu.memory_space<vmem>>, vector<1x1x128xf32>
    %100 = vector.shape_cast %99 : vector<1x1x128xf32> to vector<1x128xf32>
    %c0_42 = arith.constant 0 : index
    %c0_43 = arith.constant 0 : index
    %c0_44 = arith.constant 0 : index
    %101 = vector.load %arg7[%c0_42, %c0_43, %c0_44] : memref<2x1x128xf32, #tpu.memory_space<vmem>>, vector<1x1x128xf32>
    %102 = vector.shape_cast %101 : vector<1x1x128xf32> to vector<1x128xf32>
    %cst_45 = arith.constant dense<0.000000e+00> : vector<128xf32>
    %103 = vector.multi_reduction <add>, %98, %cst_45 [0] : vector<32x128xf32> to vector<128xf32>
    %104 = vector.shape_cast %103 : vector<128xf32> to vector<1x128xf32>
    %cst_46 = arith.constant 3.125000e-02 : f32
    %105 = vector.broadcast %cst_46 : f32 to vector<1x128xf32>
    %106 = arith.mulf %104, %105 : vector<1x128xf32>
    %107 = vector.broadcast %106 : vector<1x128xf32> to vector<32x128xf32>
    %108 = arith.subf %98, %107 : vector<32x128xf32>
    %109 = arith.mulf %108, %108 : vector<32x128xf32>
    %cst_47 = arith.constant dense<0.000000e+00> : vector<128xf32>
    %110 = vector.multi_reduction <add>, %109, %cst_47 [0] : vector<32x128xf32> to vector<128xf32>
    %111 = vector.shape_cast %110 : vector<128xf32> to vector<1x128xf32>
    %cst_48 = arith.constant 3.125000e-02 : f32
    %112 = vector.broadcast %cst_48 : f32 to vector<1x128xf32>
    %113 = arith.mulf %111, %112 : vector<1x128xf32>
    %cst_49 = arith.constant 9.99999974E-6 : f32
    %114 = vector.broadcast %cst_49 : f32 to vector<1x128xf32>
    %115 = arith.addf %113, %114 : vector<1x128xf32>
    %116 = math.rsqrt %115 : vector<1x128xf32>
    %117 = arith.mulf %116, %100 : vector<1x128xf32>
    %118 = vector.broadcast %117 : vector<1x128xf32> to vector<32x128xf32>
    %119 = arith.mulf %108, %118 : vector<32x128xf32>
    %120 = vector.broadcast %102 : vector<1x128xf32> to vector<32x128xf32>
    %121 = arith.addf %119, %120 : vector<32x128xf32>
    %122 = arith.truncf %121 : vector<32x128xf32> to vector<32x128xbf16>
    %c0_50 = arith.constant 0 : index
    %c0_51 = arith.constant 0 : index
    %c0_52 = arith.constant 0 : index
    %123 = vector.load %arg8[%c0_50, %c0_51, %c0_52] : memref<2x128x256xbf16, #tpu.memory_space<vmem>>, vector<1x128x256xbf16>
    %124 = vector.shape_cast %123 : vector<1x128x256xbf16> to vector<128x256xbf16>
    %cst_53 = arith.constant dense<0.000000e+00> : vector<32x256xf32>
    %125 = tpu.matmul %122, %124, %cst_53 {dimension_numbers = #tpu.dot_dimension_numbers<[1], [0], [0], [1], [0, 0, 1, 1], [], []>} : vector<32x128xbf16>, vector<128x256xbf16>, vector<32x256xf32> -> vector<32x256xf32>
    %c0_54 = arith.constant 0 : index
    %c0_55 = arith.constant 0 : index
    %c0_56 = arith.constant 0 : index
    %126 = vector.load %arg9[%c0_54, %c0_55, %c0_56] : memref<2x1x256xf32, #tpu.memory_space<vmem>>, vector<1x1x256xf32>
    %127 = vector.shape_cast %126 : vector<1x1x256xf32> to vector<1x256xf32>
    %128 = vector.broadcast %127 : vector<1x256xf32> to vector<32x256xf32>
    %129 = arith.addf %125, %128 : vector<32x256xf32>
    %cst_57 = arith.constant 0.000000e+00 : f32
    %130 = vector.broadcast %cst_57 : f32 to vector<32x256xf32>
    %131 = arith.maximumf %129, %130 : vector<32x256xf32>
    %132 = arith.truncf %131 : vector<32x256xf32> to vector<32x256xbf16>
    %c0_58 = arith.constant 0 : index
    %c0_59 = arith.constant 0 : index
    %c0_60 = arith.constant 0 : index
    %133 = vector.load %arg10[%c0_58, %c0_59, %c0_60] : memref<2x256x128xbf16, #tpu.memory_space<vmem>>, vector<1x256x128xbf16>
    %134 = vector.shape_cast %133 : vector<1x256x128xbf16> to vector<256x128xbf16>
    %cst_61 = arith.constant dense<0.000000e+00> : vector<32x128xf32>
    %135 = tpu.matmul %132, %134, %cst_61 {dimension_numbers = #tpu.dot_dimension_numbers<[1], [0], [0], [1], [0, 0, 1, 1], [], []>} : vector<32x256xbf16>, vector<256x128xbf16>, vector<32x128xf32> -> vector<32x128xf32>
    %c0_62 = arith.constant 0 : index
    %c0_63 = arith.constant 0 : index
    %c0_64 = arith.constant 0 : index
    %136 = vector.load %arg11[%c0_62, %c0_63, %c0_64] : memref<2x1x128xf32, #tpu.memory_space<vmem>>, vector<1x1x128xf32>
    %137 = vector.shape_cast %136 : vector<1x1x128xf32> to vector<1x128xf32>
    %138 = vector.broadcast %137 : vector<1x128xf32> to vector<32x128xf32>
    %139 = arith.addf %135, %138 : vector<32x128xf32>
    %140 = arith.addf %121, %139 : vector<32x128xf32>
    %c0_65 = arith.constant 0 : index
    %c0_66 = arith.constant 0 : index
    %c0_67 = arith.constant 0 : index
    %141 = vector.load %arg12[%c0_65, %c0_66, %c0_67] : memref<2x1x128xf32, #tpu.memory_space<vmem>>, vector<1x1x128xf32>
    %142 = vector.shape_cast %141 : vector<1x1x128xf32> to vector<1x128xf32>
    %c0_68 = arith.constant 0 : index
    %c0_69 = arith.constant 0 : index
    %c0_70 = arith.constant 0 : index
    %143 = vector.load %arg13[%c0_68, %c0_69, %c0_70] : memref<2x1x128xf32, #tpu.memory_space<vmem>>, vector<1x1x128xf32>
    %144 = vector.shape_cast %143 : vector<1x1x128xf32> to vector<1x128xf32>
    %cst_71 = arith.constant dense<0.000000e+00> : vector<128xf32>
    %145 = vector.multi_reduction <add>, %140, %cst_71 [0] : vector<32x128xf32> to vector<128xf32>
    %146 = vector.shape_cast %145 : vector<128xf32> to vector<1x128xf32>
    %cst_72 = arith.constant 3.125000e-02 : f32
    %147 = vector.broadcast %cst_72 : f32 to vector<1x128xf32>
    %148 = arith.mulf %146, %147 : vector<1x128xf32>
    %149 = vector.broadcast %148 : vector<1x128xf32> to vector<32x128xf32>
    %150 = arith.subf %140, %149 : vector<32x128xf32>
    %151 = arith.mulf %150, %150 : vector<32x128xf32>
    %cst_73 = arith.constant dense<0.000000e+00> : vector<128xf32>
    %152 = vector.multi_reduction <add>, %151, %cst_73 [0] : vector<32x128xf32> to vector<128xf32>
    %153 = vector.shape_cast %152 : vector<128xf32> to vector<1x128xf32>
    %cst_74 = arith.constant 3.125000e-02 : f32
    %154 = vector.broadcast %cst_74 : f32 to vector<1x128xf32>
    %155 = arith.mulf %153, %154 : vector<1x128xf32>
    %cst_75 = arith.constant 9.99999974E-6 : f32
    %156 = vector.broadcast %cst_75 : f32 to vector<1x128xf32>
    %157 = arith.addf %155, %156 : vector<1x128xf32>
    %158 = math.rsqrt %157 : vector<1x128xf32>
    %159 = arith.mulf %158, %142 : vector<1x128xf32>
    %160 = vector.broadcast %159 : vector<1x128xf32> to vector<32x128xf32>
    %161 = arith.mulf %150, %160 : vector<32x128xf32>
    %162 = vector.broadcast %144 : vector<1x128xf32> to vector<32x128xf32>
    %163 = arith.addf %161, %162 : vector<32x128xf32>
    %164 = arith.truncf %163 : vector<32x128xf32> to vector<32x128xbf16>
    %c1_76 = arith.constant 1 : index
    %c0_77 = arith.constant 0 : index
    %c0_78 = arith.constant 0 : index
    %165 = vector.load %arg3[%c1_76, %c0_77, %c0_78] : memref<2x128x384xbf16, #tpu.memory_space<vmem>>, vector<1x128x384xbf16>
    %166 = vector.shape_cast %165 : vector<1x128x384xbf16> to vector<128x384xbf16>
    %cst_79 = arith.constant dense<0.000000e+00> : vector<32x384xf32>
    %167 = tpu.matmul %164, %166, %cst_79 {dimension_numbers = #tpu.dot_dimension_numbers<[1], [0], [0], [1], [0, 0, 1, 1], [], []>} : vector<32x128xbf16>, vector<128x384xbf16>, vector<32x384xf32> -> vector<32x384xf32>
    %168 = arith.truncf %167 : vector<32x384xf32> to vector<32x384xbf16>
    %169 = vector.shape_cast %168 : vector<32x384xbf16> to vector<2x16x384xbf16>
    %170 = vector.extract_strided_slice %169 {offsets = [0, 0, 0], sizes = [2, 16, 32], strides = [1, 1, 1]} : vector<2x16x384xbf16> to vector<2x16x32xbf16>
    %171 = vector.extract_strided_slice %169 {offsets = [0, 0, 128], sizes = [2, 16, 32], strides = [1, 1, 1]} : vector<2x16x384xbf16> to vector<2x16x32xbf16>
    %172 = vector.extract_strided_slice %169 {offsets = [0, 0, 256], sizes = [2, 16, 32], strides = [1, 1, 1]} : vector<2x16x384xbf16> to vector<2x16x32xbf16>
    "tpu.trace_start"() <{level = 10 : i32, message = "bnk,bmk->bnm"}> : () -> ()
    %cst_80 = arith.constant dense<0.000000e+00> : vector<2x16x16xf32>
    %173 = tpu.matmul %170, %171, %cst_80 {dimension_numbers = #tpu.dot_dimension_numbers<[2], [2], [1], [1], [0, 0, 0, 1, 1, 1], [0], [0]>} : vector<2x16x32xbf16>, vector<2x16x32xbf16>, vector<2x16x16xf32> -> vector<2x16x16xf32>
    "tpu.trace_stop"() : () -> ()
    %cst_81 = arith.constant dense<0xFF800000> : vector<2x16xf32>
    %174 = vector.multi_reduction <maximumf>, %173, %cst_81 [2] : vector<2x16x16xf32> to vector<2x16xf32>
    %175 = vector.shape_cast %174 : vector<2x16xf32> to vector<2x16x1xf32>
    %176 = vector.broadcast %175 : vector<2x16x1xf32> to vector<2x16x16xf32>
    %177 = arith.subf %173, %176 : vector<2x16x16xf32>
    %178 = math.exp %177 : vector<2x16x16xf32>
    %cst_82 = arith.constant dense<0.000000e+00> : vector<2x16xf32>
    %179 = vector.multi_reduction <add>, %178, %cst_82 [2] : vector<2x16x16xf32> to vector<2x16xf32>
    %180 = vector.shape_cast %179 : vector<2x16xf32> to vector<2x16x1xf32>
    %181 = vector.broadcast %180 : vector<2x16x1xf32> to vector<2x16x16xf32>
    %182 = arith.divf %178, %181 : vector<2x16x16xf32>
    %183 = arith.truncf %182 : vector<2x16x16xf32> to vector<2x16x16xbf16>
    "tpu.trace_start"() <{level = 10 : i32, message = "bnm,bmk->bnk"}> : () -> ()
    %cst_83 = arith.constant dense<0.000000e+00> : vector<2x16x32xf32>
    %184 = tpu.matmul %183, %172, %cst_83 {dimension_numbers = #tpu.dot_dimension_numbers<[2], [1], [1], [2], [0, 0, 0, 1, 1, 2], [0], [0]>} : vector<2x16x16xbf16>, vector<2x16x32xbf16>, vector<2x16x32xf32> -> vector<2x16x32xf32>
    "tpu.trace_stop"() : () -> ()
    %185 = vector.shape_cast %184 : vector<2x16x32xf32> to vector<32x32xf32>
    %c0_84 = arith.constant 0 : index
    %c0_85 = arith.constant 0 : index
    %186 = vector.load %arg15[%c0_84, %c0_85] : memref<32x128xf32, #tpu.memory_space<vmem>>, vector<32x32xf32>
    tpu.vector_store %arg15[%c0_84, %c0_85], %185 {strides = array<i32>} : memref<32x128xf32, #tpu.memory_space<vmem>>, vector<32x32xf32>,
    %187 = vector.extract_strided_slice %169 {offsets = [0, 0, 32], sizes = [2, 16, 32], strides = [1, 1, 1]} : vector<2x16x384xbf16> to vector<2x16x32xbf16>
    %188 = vector.extract_strided_slice %169 {offsets = [0, 0, 160], sizes = [2, 16, 32], strides = [1, 1, 1]} : vector<2x16x384xbf16> to vector<2x16x32xbf16>
    %189 = vector.extract_strided_slice %169 {offsets = [0, 0, 288], sizes = [2, 16, 32], strides = [1, 1, 1]} : vector<2x16x384xbf16> to vector<2x16x32xbf16>
    "tpu.trace_start"() <{level = 10 : i32, message = "bnk,bmk->bnm"}> : () -> ()
    %cst_86 = arith.constant dense<0.000000e+00> : vector<2x16x16xf32>
    %190 = tpu.matmul %187, %188, %cst_86 {dimension_numbers = #tpu.dot_dimension_numbers<[2], [2], [1], [1], [0, 0, 0, 1, 1, 1], [0], [0]>} : vector<2x16x32xbf16>, vector<2x16x32xbf16>, vector<2x16x16xf32> -> vector<2x16x16xf32>
    "tpu.trace_stop"() : () -> ()
    %cst_87 = arith.constant dense<0xFF800000> : vector<2x16xf32>
    %191 = vector.multi_reduction <maximumf>, %190, %cst_87 [2] : vector<2x16x16xf32> to vector<2x16xf32>
    %192 = vector.shape_cast %191 : vector<2x16xf32> to vector<2x16x1xf32>
    %193 = vector.broadcast %192 : vector<2x16x1xf32> to vector<2x16x16xf32>
    %194 = arith.subf %190, %193 : vector<2x16x16xf32>
    %195 = math.exp %194 : vector<2x16x16xf32>
    %cst_88 = arith.constant dense<0.000000e+00> : vector<2x16xf32>
    %196 = vector.multi_reduction <add>, %195, %cst_88 [2] : vector<2x16x16xf32> to vector<2x16xf32>
    %197 = vector.shape_cast %196 : vector<2x16xf32> to vector<2x16x1xf32>
    %198 = vector.broadcast %197 : vector<2x16x1xf32> to vector<2x16x16xf32>
    %199 = arith.divf %195, %198 : vector<2x16x16xf32>
    %200 = arith.truncf %199 : vector<2x16x16xf32> to vector<2x16x16xbf16>
    "tpu.trace_start"() <{level = 10 : i32, message = "bnm,bmk->bnk"}> : () -> ()
    %cst_89 = arith.constant dense<0.000000e+00> : vector<2x16x32xf32>
    %201 = tpu.matmul %200, %189, %cst_89 {dimension_numbers = #tpu.dot_dimension_numbers<[2], [1], [1], [2], [0, 0, 0, 1, 1, 2], [0], [0]>} : vector<2x16x16xbf16>, vector<2x16x32xbf16>, vector<2x16x32xf32> -> vector<2x16x32xf32>
    "tpu.trace_stop"() : () -> ()
    %202 = vector.shape_cast %201 : vector<2x16x32xf32> to vector<32x32xf32>
    %c0_90 = arith.constant 0 : index
    %c32_91 = arith.constant 32 : index
    %203 = vector.load %arg15[%c0_90, %c32_91] : memref<32x128xf32, #tpu.memory_space<vmem>>, vector<32x32xf32>
    tpu.vector_store %arg15[%c0_90, %c32_91], %202 {strides = array<i32>} : memref<32x128xf32, #tpu.memory_space<vmem>>, vector<32x32xf32>,
    %204 = vector.extract_strided_slice %169 {offsets = [0, 0, 64], sizes = [2, 16, 32], strides = [1, 1, 1]} : vector<2x16x384xbf16> to vector<2x16x32xbf16>
    %205 = vector.extract_strided_slice %169 {offsets = [0, 0, 192], sizes = [2, 16, 32], strides = [1, 1, 1]} : vector<2x16x384xbf16> to vector<2x16x32xbf16>
    %206 = vector.extract_strided_slice %169 {offsets = [0, 0, 320], sizes = [2, 16, 32], strides = [1, 1, 1]} : vector<2x16x384xbf16> to vector<2x16x32xbf16>
    "tpu.trace_start"() <{level = 10 : i32, message = "bnk,bmk->bnm"}> : () -> ()
    %cst_92 = arith.constant dense<0.000000e+00> : vector<2x16x16xf32>
    %207 = tpu.matmul %204, %205, %cst_92 {dimension_numbers = #tpu.dot_dimension_numbers<[2], [2], [1], [1], [0, 0, 0, 1, 1, 1], [0], [0]>} : vector<2x16x32xbf16>, vector<2x16x32xbf16>, vector<2x16x16xf32> -> vector<2x16x16xf32>
    "tpu.trace_stop"() : () -> ()
    %cst_93 = arith.constant dense<0xFF800000> : vector<2x16xf32>
    %208 = vector.multi_reduction <maximumf>, %207, %cst_93 [2] : vector<2x16x16xf32> to vector<2x16xf32>
    %209 = vector.shape_cast %208 : vector<2x16xf32> to vector<2x16x1xf32>
    %210 = vector.broadcast %209 : vector<2x16x1xf32> to vector<2x16x16xf32>
    %211 = arith.subf %207, %210 : vector<2x16x16xf32>
    %212 = math.exp %211 : vector<2x16x16xf32>
    %cst_94 = arith.constant dense<0.000000e+00> : vector<2x16xf32>
    %213 = vector.multi_reduction <add>, %212, %cst_94 [2] : vector<2x16x16xf32> to vector<2x16xf32>
    %214 = vector.shape_cast %213 : vector<2x16xf32> to vector<2x16x1xf32>
    %215 = vector.broadcast %214 : vector<2x16x1xf32> to vector<2x16x16xf32>
    %216 = arith.divf %212, %215 : vector<2x16x16xf32>
    %217 = arith.truncf %216 : vector<2x16x16xf32> to vector<2x16x16xbf16>
    "tpu.trace_start"() <{level = 10 : i32, message = "bnm,bmk->bnk"}> : () -> ()
    %cst_95 = arith.constant dense<0.000000e+00> : vector<2x16x32xf32>
    %218 = tpu.matmul %217, %206, %cst_95 {dimension_numbers = #tpu.dot_dimension_numbers<[2], [1], [1], [2], [0, 0, 0, 1, 1, 2], [0], [0]>} : vector<2x16x16xbf16>, vector<2x16x32xbf16>, vector<2x16x32xf32> -> vector<2x16x32xf32>
    "tpu.trace_stop"() : () -> ()
    %219 = vector.shape_cast %218 : vector<2x16x32xf32> to vector<32x32xf32>
    %c0_96 = arith.constant 0 : index
    %c64_97 = arith.constant 64 : index
    %220 = vector.load %arg15[%c0_96, %c64_97] : memref<32x128xf32, #tpu.memory_space<vmem>>, vector<32x32xf32>
    tpu.vector_store %arg15[%c0_96, %c64_97], %219 {strides = array<i32>} : memref<32x128xf32, #tpu.memory_space<vmem>>, vector<32x32xf32>,
    %221 = vector.extract_strided_slice %169 {offsets = [0, 0, 96], sizes = [2, 16, 32], strides = [1, 1, 1]} : vector<2x16x384xbf16> to vector<2x16x32xbf16>
    %222 = vector.extract_strided_slice %169 {offsets = [0, 0, 224], sizes = [2, 16, 32], strides = [1, 1, 1]} : vector<2x16x384xbf16> to vector<2x16x32xbf16>
    %223 = vector.extract_strided_slice %169 {offsets = [0, 0, 352], sizes = [2, 16, 32], strides = [1, 1, 1]} : vector<2x16x384xbf16> to vector<2x16x32xbf16>
    "tpu.trace_start"() <{level = 10 : i32, message = "bnk,bmk->bnm"}> : () -> ()
    %cst_98 = arith.constant dense<0.000000e+00> : vector<2x16x16xf32>
    %224 = tpu.matmul %221, %222, %cst_98 {dimension_numbers = #tpu.dot_dimension_numbers<[2], [2], [1], [1], [0, 0, 0, 1, 1, 1], [0], [0]>} : vector<2x16x32xbf16>, vector<2x16x32xbf16>, vector<2x16x16xf32> -> vector<2x16x16xf32>
    "tpu.trace_stop"() : () -> ()
    %cst_99 = arith.constant dense<0xFF800000> : vector<2x16xf32>
    %225 = vector.multi_reduction <maximumf>, %224, %cst_99 [2] : vector<2x16x16xf32> to vector<2x16xf32>
    %226 = vector.shape_cast %225 : vector<2x16xf32> to vector<2x16x1xf32>
    %227 = vector.broadcast %226 : vector<2x16x1xf32> to vector<2x16x16xf32>
    %228 = arith.subf %224, %227 : vector<2x16x16xf32>
    %229 = math.exp %228 : vector<2x16x16xf32>
    %cst_100 = arith.constant dense<0.000000e+00> : vector<2x16xf32>
    %230 = vector.multi_reduction <add>, %229, %cst_100 [2] : vector<2x16x16xf32> to vector<2x16xf32>
    %231 = vector.shape_cast %230 : vector<2x16xf32> to vector<2x16x1xf32>
    %232 = vector.broadcast %231 : vector<2x16x1xf32> to vector<2x16x16xf32>
    %233 = arith.divf %229, %232 : vector<2x16x16xf32>
    %234 = arith.truncf %233 : vector<2x16x16xf32> to vector<2x16x16xbf16>
    "tpu.trace_start"() <{level = 10 : i32, message = "bnm,bmk->bnk"}> : () -> ()
    %cst_101 = arith.constant dense<0.000000e+00> : vector<2x16x32xf32>
    %235 = tpu.matmul %234, %223, %cst_101 {dimension_numbers = #tpu.dot_dimension_numbers<[2], [1], [1], [2], [0, 0, 0, 1, 1, 2], [0], [0]>} : vector<2x16x16xbf16>, vector<2x16x32xbf16>, vector<2x16x32xf32> -> vector<2x16x32xf32>
    "tpu.trace_stop"() : () -> ()
    %236 = vector.shape_cast %235 : vector<2x16x32xf32> to vector<32x32xf32>
    %c0_102 = arith.constant 0 : index
    %c96_103 = arith.constant 96 : index
    %237 = vector.load %arg15[%c0_102, %c96_103] : memref<32x128xf32, #tpu.memory_space<vmem>>, vector<32x32xf32>
    tpu.vector_store %arg15[%c0_102, %c96_103], %236 {strides = array<i32>} : memref<32x128xf32, #tpu.memory_space<vmem>>, vector<32x32xf32>,
    %c0_104 = arith.constant 0 : index
    %c0_105 = arith.constant 0 : index
    %238 = vector.load %arg15[%c0_104, %c0_105] : memref<32x128xf32, #tpu.memory_space<vmem>>, vector<32x128xf32>
    %239 = arith.truncf %238 : vector<32x128xf32> to vector<32x128xbf16>
    %c1_106 = arith.constant 1 : index
    %c0_107 = arith.constant 0 : index
    %c0_108 = arith.constant 0 : index
    %240 = vector.load %arg4[%c1_106, %c0_107, %c0_108] : memref<2x128x128xbf16, #tpu.memory_space<vmem>>, vector<1x128x128xbf16>
    %241 = vector.shape_cast %240 : vector<1x128x128xbf16> to vector<128x128xbf16>
    %cst_109 = arith.constant dense<0.000000e+00> : vector<32x128xf32>
    %242 = tpu.matmul %239, %241, %cst_109 {dimension_numbers = #tpu.dot_dimension_numbers<[1], [0], [0], [1], [0, 0, 1, 1], [], []>} : vector<32x128xbf16>, vector<128x128xbf16>, vector<32x128xf32> -> vector<32x128xf32>
    %c1_110 = arith.constant 1 : index
    %c0_111 = arith.constant 0 : index
    %c0_112 = arith.constant 0 : index
    %243 = vector.load %arg5[%c1_110, %c0_111, %c0_112] : memref<2x1x128xf32, #tpu.memory_space<vmem>>, vector<1x1x128xf32>
    %244 = vector.shape_cast %243 : vector<1x1x128xf32> to vector<1x128xf32>
    %245 = vector.broadcast %244 : vector<1x128xf32> to vector<32x128xf32>
    %246 = arith.addf %242, %245 : vector<32x128xf32>
    %247 = arith.addf %163, %246 : vector<32x128xf32>
    %c1_113 = arith.constant 1 : index
    %c0_114 = arith.constant 0 : index
    %c0_115 = arith.constant 0 : index
    %248 = vector.load %arg6[%c1_113, %c0_114, %c0_115] : memref<2x1x128xf32, #tpu.memory_space<vmem>>, vector<1x1x128xf32>
    %249 = vector.shape_cast %248 : vector<1x1x128xf32> to vector<1x128xf32>
    %c1_116 = arith.constant 1 : index
    %c0_117 = arith.constant 0 : index
    %c0_118 = arith.constant 0 : index
    %250 = vector.load %arg7[%c1_116, %c0_117, %c0_118] : memref<2x1x128xf32, #tpu.memory_space<vmem>>, vector<1x1x128xf32>
    %251 = vector.shape_cast %250 : vector<1x1x128xf32> to vector<1x128xf32>
    %cst_119 = arith.constant dense<0.000000e+00> : vector<128xf32>
    %252 = vector.multi_reduction <add>, %247, %cst_119 [0] : vector<32x128xf32> to vector<128xf32>
    %253 = vector.shape_cast %252 : vector<128xf32> to vector<1x128xf32>
    %cst_120 = arith.constant 3.125000e-02 : f32
    %254 = vector.broadcast %cst_120 : f32 to vector<1x128xf32>
    %255 = arith.mulf %253, %254 : vector<1x128xf32>
    %256 = vector.broadcast %255 : vector<1x128xf32> to vector<32x128xf32>
    %257 = arith.subf %247, %256 : vector<32x128xf32>
    %258 = arith.mulf %257, %257 : vector<32x128xf32>
    %cst_121 = arith.constant dense<0.000000e+00> : vector<128xf32>
    %259 = vector.multi_reduction <add>, %258, %cst_121 [0] : vector<32x128xf32> to vector<128xf32>
    %260 = vector.shape_cast %259 : vector<128xf32> to vector<1x128xf32>
    %cst_122 = arith.constant 3.125000e-02 : f32
    %261 = vector.broadcast %cst_122 : f32 to vector<1x128xf32>
    %262 = arith.mulf %260, %261 : vector<1x128xf32>
    %cst_123 = arith.constant 9.99999974E-6 : f32
    %263 = vector.broadcast %cst_123 : f32 to vector<1x128xf32>
    %264 = arith.addf %262, %263 : vector<1x128xf32>
    %265 = math.rsqrt %264 : vector<1x128xf32>
    %266 = arith.mulf %265, %249 : vector<1x128xf32>
    %267 = vector.broadcast %266 : vector<1x128xf32> to vector<32x128xf32>
    %268 = arith.mulf %257, %267 : vector<32x128xf32>
    %269 = vector.broadcast %251 : vector<1x128xf32> to vector<32x128xf32>
    %270 = arith.addf %268, %269 : vector<32x128xf32>
    %271 = arith.truncf %270 : vector<32x128xf32> to vector<32x128xbf16>
    %c1_124 = arith.constant 1 : index
    %c0_125 = arith.constant 0 : index
    %c0_126 = arith.constant 0 : index
    %272 = vector.load %arg8[%c1_124, %c0_125, %c0_126] : memref<2x128x256xbf16, #tpu.memory_space<vmem>>, vector<1x128x256xbf16>
    %273 = vector.shape_cast %272 : vector<1x128x256xbf16> to vector<128x256xbf16>
    %cst_127 = arith.constant dense<0.000000e+00> : vector<32x256xf32>
    %274 = tpu.matmul %271, %273, %cst_127 {dimension_numbers = #tpu.dot_dimension_numbers<[1], [0], [0], [1], [0, 0, 1, 1], [], []>} : vector<32x128xbf16>, vector<128x256xbf16>, vector<32x256xf32> -> vector<32x256xf32>
    %c1_128 = arith.constant 1 : index
    %c0_129 = arith.constant 0 : index
    %c0_130 = arith.constant 0 : index
    %275 = vector.load %arg9[%c1_128, %c0_129, %c0_130] : memref<2x1x256xf32, #tpu.memory_space<vmem>>, vector<1x1x256xf32>
    %276 = vector.shape_cast %275 : vector<1x1x256xf32> to vector<1x256xf32>
    %277 = vector.broadcast %276 : vector<1x256xf32> to vector<32x256xf32>
    %278 = arith.addf %274, %277 : vector<32x256xf32>
    %cst_131 = arith.constant 0.000000e+00 : f32
    %279 = vector.broadcast %cst_131 : f32 to vector<32x256xf32>
    %280 = arith.maximumf %278, %279 : vector<32x256xf32>
    %281 = arith.truncf %280 : vector<32x256xf32> to vector<32x256xbf16>
    %c1_132 = arith.constant 1 : index
    %c0_133 = arith.constant 0 : index
    %c0_134 = arith.constant 0 : index
    %282 = vector.load %arg10[%c1_132, %c0_133, %c0_134] : memref<2x256x128xbf16, #tpu.memory_space<vmem>>, vector<1x256x128xbf16>
    %283 = vector.shape_cast %282 : vector<1x256x128xbf16> to vector<256x128xbf16>
    %cst_135 = arith.constant dense<0.000000e+00> : vector<32x128xf32>
    %284 = tpu.matmul %281, %283, %cst_135 {dimension_numbers = #tpu.dot_dimension_numbers<[1], [0], [0], [1], [0, 0, 1, 1], [], []>} : vector<32x256xbf16>, vector<256x128xbf16>, vector<32x128xf32> -> vector<32x128xf32>
    %c1_136 = arith.constant 1 : index
    %c0_137 = arith.constant 0 : index
    %c0_138 = arith.constant 0 : index
    %285 = vector.load %arg11[%c1_136, %c0_137, %c0_138] : memref<2x1x128xf32, #tpu.memory_space<vmem>>, vector<1x1x128xf32>
    %286 = vector.shape_cast %285 : vector<1x1x128xf32> to vector<1x128xf32>
    %287 = vector.broadcast %286 : vector<1x128xf32> to vector<32x128xf32>
    %288 = arith.addf %284, %287 : vector<32x128xf32>
    %289 = arith.addf %270, %288 : vector<32x128xf32>
    %c1_139 = arith.constant 1 : index
    %c0_140 = arith.constant 0 : index
    %c0_141 = arith.constant 0 : index
    %290 = vector.load %arg12[%c1_139, %c0_140, %c0_141] : memref<2x1x128xf32, #tpu.memory_space<vmem>>, vector<1x1x128xf32>
    %291 = vector.shape_cast %290 : vector<1x1x128xf32> to vector<1x128xf32>
    %c1_142 = arith.constant 1 : index
    %c0_143 = arith.constant 0 : index
    %c0_144 = arith.constant 0 : index
    %292 = vector.load %arg13[%c1_142, %c0_143, %c0_144] : memref<2x1x128xf32, #tpu.memory_space<vmem>>, vector<1x1x128xf32>
    %293 = vector.shape_cast %292 : vector<1x1x128xf32> to vector<1x128xf32>
    %cst_145 = arith.constant dense<0.000000e+00> : vector<128xf32>
    %294 = vector.multi_reduction <add>, %289, %cst_145 [0] : vector<32x128xf32> to vector<128xf32>
    %295 = vector.shape_cast %294 : vector<128xf32> to vector<1x128xf32>
    %cst_146 = arith.constant 3.125000e-02 : f32
    %296 = vector.broadcast %cst_146 : f32 to vector<1x128xf32>
    %297 = arith.mulf %295, %296 : vector<1x128xf32>
    %298 = vector.broadcast %297 : vector<1x128xf32> to vector<32x128xf32>
    %299 = arith.subf %289, %298 : vector<32x128xf32>
    %300 = arith.mulf %299, %299 : vector<32x128xf32>
    %cst_147 = arith.constant dense<0.000000e+00> : vector<128xf32>
    %301 = vector.multi_reduction <add>, %300, %cst_147 [0] : vector<32x128xf32> to vector<128xf32>
    %302 = vector.shape_cast %301 : vector<128xf32> to vector<1x128xf32>
    %cst_148 = arith.constant 3.125000e-02 : f32
    %303 = vector.broadcast %cst_148 : f32 to vector<1x128xf32>
    %304 = arith.mulf %302, %303 : vector<1x128xf32>
    %cst_149 = arith.constant 9.99999974E-6 : f32
    %305 = vector.broadcast %cst_149 : f32 to vector<1x128xf32>
    %306 = arith.addf %304, %305 : vector<1x128xf32>
    %307 = math.rsqrt %306 : vector<1x128xf32>
    %308 = arith.mulf %307, %291 : vector<1x128xf32>
    %309 = vector.broadcast %308 : vector<1x128xf32> to vector<32x128xf32>
    %310 = arith.mulf %299, %309 : vector<32x128xf32>
    %311 = vector.broadcast %293 : vector<1x128xf32> to vector<32x128xf32>
    %312 = arith.addf %310, %311 : vector<32x128xf32>
    %c0_150 = arith.constant 0 : index
    %c0_151 = arith.constant 0 : index
    %313 = vector.load %arg14[%c0_150, %c0_151] : memref<32x128xf32, #tpu.memory_space<vmem>>, vector<32x128xf32>
    tpu.vector_store %arg14[%c0_150, %c0_151], %312 {strides = array<i32>} : memref<32x128xf32, #tpu.memory_space<vmem>>, vector<32x128xf32>,
    return
  }
}

</mosaic_0001>

<llo_original>
// kernel: tpu_custom_call.1
$region0: #{tpu_custom_call.1}
  #allocation0 [shape = 'u32[]', space=smem, size = 0x4, offset = 0x4, fixed_abs, tag = 'smem constant byte address 0x4 - core index']
  #allocation1 [shape = 'u32[144,128]{1,0:T(1,128)}', space=vmem, size = 0x12000, scoped, tag = 'internal scratch']
  #allocation2 [shape = 'f32[32,128]{1,0:T(8,128)}', space=vmem, size = 0x4000, scoped, tag = 'scratch operand']
  %s0 = inlined_call_operand.vmem [shape: f32[32,2], index: 0, kind: input, shape index: {}]
  %s1 = inlined_call_operand.vmem [shape: f32[2,128], index: 1, kind: input, shape index: {}]
  %s2 = inlined_call_operand.vmem [shape: f32[1,128], index: 2, kind: input, shape index: {}]
  %s3 = inlined_call_operand.hbm [shape: bf16[2,128,384], index: 3, kind: input, shape index: {}]
  %s4 = inlined_call_operand.hbm [shape: bf16[2,128,128], index: 4, kind: input, shape index: {}]
  %s5 = inlined_call_operand.vmem [shape: f32[2,1,128], index: 5, kind: input, shape index: {}]
  %s6 = inlined_call_operand.vmem [shape: f32[2,1,128], index: 6, kind: input, shape index: {}]
  %s7 = inlined_call_operand.vmem [shape: f32[2,1,128], index: 7, kind: input, shape index: {}]
  %s8 = inlined_call_operand.hbm [shape: bf16[2,128,256], index: 8, kind: input, shape index: {}]
  %s9 = inlined_call_operand.vmem [shape: f32[2,1,256], index: 9, kind: input, shape index: {}]
  %s10 = inlined_call_operand.hbm [shape: bf16[2,256,128], index: 10, kind: input, shape index: {}]
  %s11 = inlined_call_operand.vmem [shape: f32[2,1,128], index: 11, kind: input, shape index: {}]
  %s12 = inlined_call_operand.vmem [shape: f32[2,1,128], index: 12, kind: input, shape index: {}]
  %s13 = inlined_call_operand.vmem [shape: f32[2,1,128], index: 13, kind: input, shape index: {}]
  %s14 = inlined_call_operand.hbm [shape: f32[32,128], index: 14, kind: output, shape index: {}]
  %s15 = sld [smem:[#allocation0]]
  $region82: #{tpu_custom_call.1} parent=0
    _
  %s17 = ssub.s32 1, %s15
  %s18 = scalar_select 0, %s17, %s15
  $region1: #{tpu_custom_call.1} parent=0
    #allocation3 [shape = 'u8[196608]{0}', space=vmem, size = 0x30000, scoped, tag = 'input window, operand 3, single buffered']
    #allocation4 [shape = 's32[1]{0}', space=sflag, size = 0x4, scoped, tag = 'scoped memory for tpu_custom_call.1']
    #allocation5 [shape = 's32[1]{0}', space=sflag, size = 0x4, scoped, tag = 'scoped memory for tpu_custom_call.1']
    #allocation6 [shape = 'u8[65536]{0}', space=vmem, size = 0x10000, scoped, tag = 'input window, operand 4, single buffered']
    #allocation7 [shape = 's32[1]{0}', space=sflag, size = 0x4, scoped, tag = 'scoped memory for tpu_custom_call.1']
    #allocation8 [shape = 'u8[131072]{0}', space=vmem, size = 0x20000, scoped, tag = 'input window, operand 8, single buffered']
    #allocation9 [shape = 'u8[131072]{0}', space=vmem, size = 0x20000, scoped, tag = 'input window, operand 10, single buffered']
    #allocation10 [shape = 's32[1]{0}', space=sflag, size = 0x4, scoped, tag = 'scoped memory for tpu_custom_call.1']
    #allocation11 [shape = 'u8[16384]{0}', space=vmem, size = 0x4000, scoped, tag = 'output window, operand 0, single buffered']
    %19 = vsyncpa [#allocation4], 0
    %20 = vsyncpa [#allocation7], 0
    %21 = vsyncpa [#allocation10], 0
    %22 = vsyncpa [#allocation5], 0
    // Predicated region
    $region2: #{tpu_custom_call.1} parent=1 // pred_check
      _
    $region3: #{tpu_custom_call.1} parent=1 // pred_check_branch
      %24 = sbr.rel (0) target = $region5
    $region4: #{tpu_custom_call.1} parent=1 // pred_region
      _
    $region5: #{tpu_custom_call.1} parent=1 // pred_fallthru
      _
    // Predicated region
    $region6: #{tpu_custom_call.1} parent=1 // pred_check
      _
    $region7: #{tpu_custom_call.1} parent=1 // pred_check_branch
      %26 = sbr.rel (0) target = $region9
    $region8: #{tpu_custom_call.1} parent=1 // pred_region
      _
    $region9: #{tpu_custom_call.1} parent=1 // pred_fallthru
      _
    // Predicated region
    $region10: #{tpu_custom_call.1} parent=1 // pred_check
      _
    $region11: #{tpu_custom_call.1} parent=1 // pred_check_branch
      %28 = sbr.rel (0) target = $region13
    $region12: #{tpu_custom_call.1} parent=1 // pred_region
      _
    $region13: #{tpu_custom_call.1} parent=1 // pred_fallthru
      _
    // Predicated region
    $region14: #{tpu_custom_call.1} parent=1 // pred_check
      _
    $region15: #{tpu_custom_call.1} parent=1 // pred_check_branch
      %30 = sbr.rel (0) target = $region17
    $region16: #{tpu_custom_call.1} parent=1 // pred_region
      %s32 = ssub.s32 6144, 6144
      %33 = vsyncadd [#allocation4], %s32
      %s34 = sshll.u32 [#allocation3], 4
      %s35 = int_to_ptr.vmem [resolvable:$true] %s34
      %40 = dma.hbm_to_vmem [thread:$0]  %s3, 6144, %s35, [#allocation4], 192, 192, 12
    $region17: #{tpu_custom_call.1} parent=1 // pred_fallthru
      _
    // Predicated region
    $region18: #{tpu_custom_call.1} parent=1 // pred_check
      _
    $region19: #{tpu_custom_call.1} parent=1 // pred_check_branch
      %42 = sbr.rel (0) target = $region21
    $region20: #{tpu_custom_call.1} parent=1 // pred_region
      %s44 = ssub.s32 2048, 2048
      %45 = vsyncadd [#allocation7], %s44
      %s46 = sshll.u32 [#allocation6], 4
      %s47 = int_to_ptr.vmem [resolvable:$true] %s46
      %52 = dma.hbm_to_vmem [thread:$0]  %s4, 2048, %s47, [#allocation7], 64, 64, 4
    $region21: #{tpu_custom_call.1} parent=1 // pred_fallthru
      _
    // Predicated region
    $region22: #{tpu_custom_call.1} parent=1 // pred_check
      _
    $region23: #{tpu_custom_call.1} parent=1 // pred_check_branch
      %54 = sbr.rel (0) target = $region25
    $region24: #{tpu_custom_call.1} parent=1 // pred_region
      _
    $region25: #{tpu_custom_call.1} parent=1 // pred_fallthru
      _
    // Predicated region
    $region26: #{tpu_custom_call.1} parent=1 // pred_check
      _
    $region27: #{tpu_custom_call.1} parent=1 // pred_check_branch
      %56 = sbr.rel (0) target = $region29
    $region28: #{tpu_custom_call.1} parent=1 // pred_region
      _
    $region29: #{tpu_custom_call.1} parent=1 // pred_fallthru
      _
    // Predicated region
    $region30: #{tpu_custom_call.1} parent=1 // pred_check
      _
    $region31: #{tpu_custom_call.1} parent=1 // pred_check_branch
      %58 = sbr.rel (0) target = $region33
    $region32: #{tpu_custom_call.1} parent=1 // pred_region
      _
    $region33: #{tpu_custom_call.1} parent=1 // pred_fallthru
      _
    // Predicated region
    $region34: #{tpu_custom_call.1} parent=1 // pred_check
      _
    $region35: #{tpu_custom_call.1} parent=1 // pred_check_branch
      %60 = sbr.rel (0) target = $region37
    $region36: #{tpu_custom_call.1} parent=1 // pred_region
      %s62 = ssub.s32 4096, 4096
      %63 = vsyncadd [#allocation7], %s62
      %s64 = sshll.u32 [#allocation8], 4
      %s65 = int_to_ptr.vmem [resolvable:$true] %s64
      %70 = dma.hbm_to_vmem [thread:$0]  %s8, 4096, %s65, [#allocation7], 128, 128, 8
    $region37: #{tpu_custom_call.1} parent=1 // pred_fallthru
      _
    // Predicated region
    $region38: #{tpu_custom_call.1} parent=1 // pred_check
      _
    $region39: #{tpu_custom_call.1} parent=1 // pred_check_branch
      %72 = sbr.rel (0) target = $region41
    $region40: #{tpu_custom_call.1} parent=1 // pred_region
      _
    $region41: #{tpu_custom_call.1} parent=1 // pred_fallthru
      _
    // Predicated region
    $region42: #{tpu_custom_call.1} parent=1 // pred_check
      _
    $region43: #{tpu_custom_call.1} parent=1 // pred_check_branch
      %74 = sbr.rel (0) target = $region45
    $region44: #{tpu_custom_call.1} parent=1 // pred_region
      %s76 = ssub.s32 4096, 4096
      %77 = vsyncadd [#allocation10], %s76
      %s78 = sshll.u32 [#allocation9], 4
      %s79 = int_to_ptr.vmem [resolvable:$true] %s78
      %84 = dma.hbm_to_vmem [thread:$0]  %s10, 4096, %s79, [#allocation10], 64, 64, 4
    $region45: #{tpu_custom_call.1} parent=1 // pred_fallthru
      _
    // Predicated region
    $region46: #{tpu_custom_call.1} parent=1 // pred_check
      _
    $region47: #{tpu_custom_call.1} parent=1 // pred_check_branch
      %86 = sbr.rel (0) target = $region49
    $region48: #{tpu_custom_call.1} parent=1 // pred_region
      _
    $region49: #{tpu_custom_call.1} parent=1 // pred_fallthru
      _
    // Predicated region
    $region50: #{tpu_custom_call.1} parent=1 // pred_check
      _
    $region51: #{tpu_custom_call.1} parent=1 // pred_check_branch
      %88 = sbr.rel (0) target = $region53
    $region52: #{tpu_custom_call.1} parent=1 // pred_region
      _
    $region53: #{tpu_custom_call.1} parent=1 // pred_fallthru
      _
    // Predicated region
    $region54: #{tpu_custom_call.1} parent=1 // pred_check
      _
    $region55: #{tpu_custom_call.1} parent=1 // pred_check_branch
      %90 = sbr.rel (0) target = $region57
    $region56: #{tpu_custom_call.1} parent=1 // pred_region
      _
    $region57: #{tpu_custom_call.1} parent=1 // pred_fallthru
      _
    // Predicated region
    $region58: #{tpu_custom_call.1} parent=1 // pred_check
      _
    $region59: #{tpu_custom_call.1} parent=1 // pred_check_branch
      %92 = sbr.rel (0) target = $region61
    $region60: #{tpu_custom_call.1} parent=1 // pred_region
      %93 = dma.done [#allocation4], 6144
    $region61: #{tpu_custom_call.1} parent=1 // pred_fallthru
      _
    // Predicated region
    $region62: #{tpu_custom_call.1} parent=1 // pred_check
      _
    $region63: #{tpu_custom_call.1} parent=1 // pred_check_branch
      %95 = sbr.rel (0) target = $region65
    $region64: #{tpu_custom_call.1} parent=1 // pred_region
      %96 = dma.done [#allocation7], 2048
    $region65: #{tpu_custom_call.1} parent=1 // pred_fallthru
      _
    // Predicated region
    $region66: #{tpu_custom_call.1} parent=1 // pred_check
      _
    $region67: #{tpu_custom_call.1} parent=1 // pred_check_branch
      %98 = sbr.rel (0) target = $region69
    $region68: #{tpu_custom_call.1} parent=1 // pred_region
      %99 = dma.done [#allocation7], 4096
    $region69: #{tpu_custom_call.1} parent=1 // pred_fallthru
      _
    // Predicated region
    $region70: #{tpu_custom_call.1} parent=1 // pred_check
      _
    $region71: #{tpu_custom_call.1} parent=1 // pred_check_branch
      %101 = sbr.rel (0) target = $region73
    $region72: #{tpu_custom_call.1} parent=1 // pred_region
      %102 = dma.done [#allocation10], 4096
    $region73: #{tpu_custom_call.1} parent=1 // pred_fallthru
      _
    %v104 = vld [vmem:[%s0] sm:$0xff]
    %v105 = vld [vmem:[%s0 + $0x8] sm:$0xff]
    %v106 = vld [vmem:[%s0 + $0x10] sm:$0xff]
    %v107 = vld [vmem:[%s0 + $0x18] sm:$0xff]
    %v108 = vld [vmem:[%s1] sm:$0x1]
    %110 = vset.pattern.permute.xlu0 0
    %111 = vperm.xlu0 %110, %v104
    %v112 = vpop.permute.xlu0 %111
    %115 = vset.pattern.permute.xlu0 0
    %116 = vperm.xlu0 %115, %v105
    %v117 = vpop.permute.xlu0 %116
    %120 = vset.pattern.permute.xlu0 0
    %121 = vperm.xlu0 %120, %v106
    %v122 = vpop.permute.xlu0 %121
    %125 = vset.pattern.permute.xlu0 0
    %126 = vperm.xlu0 %125, %v107
    %v127 = vpop.permute.xlu0 %126
    %v129 = vlaneseq
    %v130 = vshrl.u32 %v129, 7
    %v131 = vsub.s32 0, %v130
    %v132 = vrot.slane %v108, %v131
    %v133 = vmul.f32 %v112, %v132
    %v134 = vmul.f32 %v117, %v132
    %v135 = vmul.f32 %v122, %v132
    %v136 = vmul.f32 %v127, %v132
    %v137 = vld [vmem:[%s1 + $0x1] sm:$0x1]
    %138 = vset.pattern.permute.xlu0 1
    %139 = vperm.xlu0 %138, %v104
    %v140 = vpop.permute.xlu0 %139
    %142 = vset.pattern.permute.xlu0 1
    %143 = vperm.xlu0 %142, %v105
    %v144 = vpop.permute.xlu0 %143
    %146 = vset.pattern.permute.xlu0 1
    %147 = vperm.xlu0 %146, %v106
    %v148 = vpop.permute.xlu0 %147
    %150 = vset.pattern.permute.xlu0 1
    %151 = vperm.xlu0 %150, %v107
    %v152 = vpop.permute.xlu0 %151
    %v154 = vlaneseq
    %v155 = vshrl.u32 %v154, 7
    %v156 = vsub.s32 0, %v155
    %v157 = vrot.slane %v137, %v156
    %v158 = vmul.f32 %v140, %v157
    %v159 = vmul.f32 %v144, %v157
    %v160 = vmul.f32 %v148, %v157
    %v161 = vmul.f32 %v152, %v157
    %v162 = vadd.f32 %v133, %v158
    %v163 = vadd.f32 %v134, %v159
    %v164 = vadd.f32 %v135, %v160
    %v165 = vadd.f32 %v136, %v161
    %v166 = vld [vmem:[%s2] sm:$0x1]
    %v168 = vlaneseq
    %v169 = vshrl.u32 %v168, 7
    %v170 = vsub.s32 0, %v169
    %v171 = vrot.slane %v166, %v170
    %v173 = vadd.f32 %v162, %v171
    %v174 = vadd.f32 %v163, %v171
    %v175 = vadd.f32 %v164, %v171
    %v176 = vadd.f32 %v165, %v171
    %v177 = vpack.c.bf16 %v174, %v173
    %v178 = vpack.c.bf16 %v176, %v175
    %v179 = vld [vmem:[#allocation3] sm:$0xff]
    %v180 = vld [vmem:[#allocation3 + $0x8] sm:$0xf]
    %v181 = vld [vmem:[#allocation3 + $0xc] sm:$0xff]
    %v182 = vld [vmem:[#allocation3 + $0x14] sm:$0xf]
    %v183 = vld [vmem:[#allocation3 + $0x18] sm:$0xff]
    %v184 = vld [vmem:[#allocation3 + $0x20] sm:$0xf]
    %v185 = vld [vmem:[#allocation3 + $0x24] sm:$0xff]
    %v186 = vld [vmem:[#allocation3 + $0x2c] sm:$0xf]
    %v187 = vld [vmem:[#allocation3 + $0x30] sm:$0xff]
    %v188 = vld [vmem:[#allocation3 + $0x38] sm:$0xf]
    %v189 = vld [vmem:[#allocation3 + $0x3c] sm:$0xff]
    %v190 = vld [vmem:[#allocation3 + $0x44] sm:$0xf]
    %v191 = vld [vmem:[#allocation3 + $0x48] sm:$0xff]
    %v192 = vld [vmem:[#allocation3 + $0x50] sm:$0xf]
    %v193 = vld [vmem:[#allocation3 + $0x54] sm:$0xff]
    %v194 = vld [vmem:[#allocation3 + $0x5c] sm:$0xf]
    %v195 = vld [vmem:[#allocation3 + $0x60] sm:$0xff]
    %v196 = vld [vmem:[#allocation3 + $0x68] sm:$0xf]
    %v197 = vld [vmem:[#allocation3 + $0x6c] sm:$0xff]
    %v198 = vld [vmem:[#allocation3 + $0x74] sm:$0xf]
    %v199 = vld [vmem:[#allocation3 + $0x78] sm:$0xff]
    %v200 = vld [vmem:[#allocation3 + $0x80] sm:$0xf]
    %v201 = vld [vmem:[#allocation3 + $0x84] sm:$0xff]
    %v202 = vld [vmem:[#allocation3 + $0x8c] sm:$0xf]
    %v203 = vld [vmem:[#allocation3 + $0x90] sm:$0xff]
    %v204 = vld [vmem:[#allocation3 + $0x98] sm:$0xf]
    %v205 = vld [vmem:[#allocation3 + $0x9c] sm:$0xff]
    %v206 = vld [vmem:[#allocation3 + $0xa4] sm:$0xf]
    %v207 = vld [vmem:[#allocation3 + $0xa8] sm:$0xff]
    %v208 = vld [vmem:[#allocation3 + $0xb0] sm:$0xf]
    %v209 = vld [vmem:[#allocation3 + $0xb4] sm:$0xff]
    %v210 = vld [vmem:[#allocation3 + $0xbc] sm:$0xf]
    %v243 = vunpack.c.l.b16 %v179
    %v244 = vunpack.c.h.b16 %v179
    %v245 = vunpack.c.l.b16 %v180
    %v246 = vunpack.c.l.b16 %v181
    %v247 = vunpack.c.h.b16 %v181
    %v248 = vunpack.c.l.b16 %v182
    %v249 = vunpack.c.l.b16 %v183
    %v250 = vunpack.c.h.b16 %v183
    %v251 = vunpack.c.l.b16 %v184
    %v252 = vunpack.c.l.b16 %v185
    %v253 = vunpack.c.h.b16 %v185
    %v254 = vunpack.c.l.b16 %v186
    %v255 = vunpack.c.l.b16 %v187
    %v256 = vunpack.c.h.b16 %v187
    %v257 = vunpack.c.l.b16 %v188
    %v258 = vunpack.c.l.b16 %v189
    %v259 = vunpack.c.h.b16 %v189
    %v260 = vunpack.c.l.b16 %v190
    %v261 = vunpack.c.l.b16 %v191
    %v262 = vunpack.c.h.b16 %v191
    %v263 = vunpack.c.l.b16 %v192
    %v264 = vunpack.c.l.b16 %v193
    %v265 = vunpack.c.h.b16 %v193
    %v266 = vunpack.c.l.b16 %v194
    %v267 = vunpack.c.l.b16 %v195
    %v268 = vunpack.c.h.b16 %v195
    %v269 = vunpack.c.l.b16 %v196
    %v270 = vunpack.c.l.b16 %v197
    %v271 = vunpack.c.h.b16 %v197
    %v272 = vunpack.c.l.b16 %v198
    %v273 = vunpack.c.l.b16 %v199
    %v274 = vunpack.c.h.b16 %v199
    %v275 = vunpack.c.l.b16 %v200
    %v276 = vunpack.c.l.b16 %v201
    %v277 = vunpack.c.h.b16 %v201
    %v278 = vunpack.c.l.b16 %v202
    %v279 = vunpack.c.l.b16 %v203
    %v280 = vunpack.c.h.b16 %v203
    %v281 = vunpack.c.l.b16 %v204
    %v282 = vunpack.c.l.b16 %v205
    %v283 = vunpack.c.h.b16 %v205
    %v284 = vunpack.c.l.b16 %v206
    %v285 = vunpack.c.l.b16 %v207
    %v286 = vunpack.c.h.b16 %v207
    %v287 = vunpack.c.l.b16 %v208
    %v288 = vunpack.c.l.b16 %v209
    %v289 = vunpack.c.h.b16 %v209
    %v290 = vunpack.c.l.b16 %v210
    %v291 = vpack.c.b16 %v246, %v243
    %v292 = vpack.c.b16 %v247, %v244
    %v293 = vpack.c.b16 %v248, %v245
    %v294 = vpack.c.b16 %v252, %v249
    %v295 = vpack.c.b16 %v253, %v250
    %v296 = vpack.c.b16 %v254, %v251
    %v297 = vpack.c.b16 %v258, %v255
    %v298 = vpack.c.b16 %v259, %v256
    %v299 = vpack.c.b16 %v260, %v257
    %v300 = vpack.c.b16 %v264, %v261
    %v301 = vpack.c.b16 %v265, %v262
    %v302 = vpack.c.b16 %v266, %v263
    %v303 = vpack.c.b16 %v270, %v267
    %v304 = vpack.c.b16 %v271, %v268
    %v305 = vpack.c.b16 %v272, %v269
    %v306 = vpack.c.b16 %v276, %v273
    %v307 = vpack.c.b16 %v277, %v274
    %v308 = vpack.c.b16 %v278, %v275
    %v309 = vpack.c.b16 %v282, %v279
    %v310 = vpack.c.b16 %v283, %v280
    %v311 = vpack.c.b16 %v284, %v281
    %v312 = vpack.c.b16 %v288, %v285
    %v313 = vpack.c.b16 %v289, %v286
    %v314 = vpack.c.b16 %v290, %v287
    %339 = vmatprep.subr.bf16.mxu0 %v292
    %340 = vmatpush1.bf16.msra.mxu0 %v291
    %341 = vmatprep.subr.bf16.mxu0 %v295
    %342 = vmatpush1.bf16.msra.mxu0 %v294
    %343 = vmatprep.subr.bf16.mxu0 %v298
    %344 = vmatpush1.bf16.msra.mxu0 %v297
    %345 = vmatprep.subr.bf16.mxu0 %v301
    %346 = vmatpush1.bf16.msra.mxu0 %v300
    %347 = vmatprep.subr.bf16.mxu0 %v304
    %348 = vmatpush1.bf16.msra.mxu0 %v303
    %349 = vmatprep.subr.bf16.mxu0 %v307
    %350 = vmatpush1.bf16.msra.mxu0 %v306
    %351 = vmatprep.subr.bf16.mxu0 %v310
    %352 = vmatpush1.bf16.msra.mxu0 %v309
    %353 = vmatprep.subr.bf16.mxu0 %v313
    %354 = vmatpush1.bf16.msra.mxu0 %v312
    %355 = vmatprep.subr.bf16.mxu0 0
    %356 = vmatpush1.bf16.msra.mxu0 0
    %357 = vmatprep.subr.bf16.mxu0 0
    %358 = vmatpush1.bf16.msra.mxu0 0
    %359 = vmatprep.subr.bf16.mxu0 0
    %360 = vmatpush1.bf16.msra.mxu0 0
    %361 = vmatprep.subr.bf16.mxu0 0
    %362 = vmatpush1.bf16.msra.mxu0 0
    %363 = vmatprep.subr.bf16.mxu0 0
    %364 = vmatpush1.bf16.msra.mxu0 0
    %365 = vmatprep.subr.bf16.mxu0 0
    %366 = vmatpush1.bf16.msra.mxu0 0
    %367 = vmatprep.subr.bf16.mxu0 0
    %368 = vmatpush1.bf16.msra.mxu0 0
    %369 = vmatprep.subr.bf16.mxu0 0
    %370 = vmatpush1.bf16.msra.mxu0 0
    %371 = vmatprep.mubr.bf16.mxu0 0
    %372 = vmatmul.mubr.bf16.gmra.mrb[0].mxu0 %v177
    %v373 = vpop.f32.mrb[0].mxu0
    %v374 = vadd.f32 0.0, %v373
    %v375 = vpop.f32.mrb[0].mxu0
    %v376 = vadd.f32 0.0, %v375
    %v377 = vpop.f32.mrb[0].mxu0
    %v378 = vadd.f32 0.0, %v377
    %v379 = vpop.f32.mrb[0].mxu0
    %v380 = vadd.f32 0.0, %v379
    %381 = vmatprep.mubr.bf16.mxu0 0
    %382 = vmatmul.mubr.bf16.gmra.mrb[0].mxu0 %v178
    %v383 = vpop.f32.mrb[0].mxu0
    %v384 = vadd.f32 0.0, %v383
    %v385 = vpop.f32.mrb[0].mxu0
    %v386 = vadd.f32 0.0, %v385
    %v387 = vpop.f32.mrb[0].mxu0
    %v388 = vadd.f32 0.0, %v387
    %v389 = vpop.f32.mrb[0].mxu0
    %v390 = vadd.f32 0.0, %v389
    %391 = vdwg.mxu0
    %392 = vmatprep.subr.bf16.mxu0 0
    %393 = vmatpush1.bf16.msra.mxu0 %v293
    %394 = vmatprep.subr.bf16.mxu0 0
    %395 = vmatpush1.bf16.msra.mxu0 %v296
    %396 = vmatprep.subr.bf16.mxu0 0
    %397 = vmatpush1.bf16.msra.mxu0 %v299
    %398 = vmatprep.subr.bf16.mxu0 0
    %399 = vmatpush1.bf16.msra.mxu0 %v302
    %400 = vmatprep.subr.bf16.mxu0 0
    %401 = vmatpush1.bf16.msra.mxu0 %v305
    %402 = vmatprep.subr.bf16.mxu0 0
    %403 = vmatpush1.bf16.msra.mxu0 %v308
    %404 = vmatprep.subr.bf16.mxu0 0
    %405 = vmatpush1.bf16.msra.mxu0 %v311
    %406 = vmatprep.subr.bf16.mxu0 0
    %407 = vmatpush1.bf16.msra.mxu0 %v314
    %408 = vmatprep.subr.bf16.mxu0 0
    %409 = vmatpush1.bf16.msra.mxu0 0
    %410 = vmatprep.subr.bf16.mxu0 0
    %411 = vmatpush1.bf16.msra.mxu0 0
    %412 = vmatprep.subr.bf16.mxu0 0
    %413 = vmatpush1.bf16.msra.mxu0 0
    %414 = vmatprep.subr.bf16.mxu0 0
    %415 = vmatpush1.bf16.msra.mxu0 0
    %416 = vmatprep.subr.bf16.mxu0 0
    %417 = vmatpush1.bf16.msra.mxu0 0
    %418 = vmatprep.subr.bf16.mxu0 0
    %419 = vmatpush1.bf16.msra.mxu0 0
    %420 = vmatprep.subr.bf16.mxu0 0
    %421 = vmatpush1.bf16.msra.mxu0 0
    %422 = vmatprep.subr.bf16.mxu0 0
    %423 = vmatpush1.bf16.msra.mxu0 0
    %424 = vmatprep.mubr.bf16.mxu0 0
    %425 = vmatmul.mubr.bf16.gmra.mrb[0].mxu0 %v177
    %v426 = vpop.f32.mrb[0].mxu0
    %v427 = vadd.f32 0.0, %v426
    %v428 = vpop.f32.mrb[0].mxu0
    %v429 = vpop.f32.mrb[0].mxu0
    %v430 = vadd.f32 0.0, %v429
    %v431 = vpop.f32.mrb[0].mxu0
    %432 = vmatprep.mubr.bf16.mxu0 0
    %433 = vmatmul.mubr.bf16.gmra.mrb[0].mxu0 %v178
    %v434 = vpop.f32.mrb[0].mxu0
    %v435 = vadd.f32 0.0, %v434
    %v436 = vpop.f32.mrb[0].mxu0
    %v437 = vpop.f32.mrb[0].mxu0
    %v438 = vadd.f32 0.0, %v437
    %v439 = vpop.f32.mrb[0].mxu0
    %440 = vdwg.mxu0
    %v441 = vpack.c.bf16 %v378, %v374
    %v442 = vpack.c.bf16 %v380, %v376
    %v443 = vpack.c.bf16 %v430, %v427
    %v444 = vpack.c.bf16 %v388, %v384
    %v445 = vpack.c.bf16 %v390, %v386
    %v446 = vpack.c.bf16 %v438, %v435
    %vm447 = vcmask 261120
    %v449 = vsel %vm447, %v441, 0
    %v452 = vsel %vm447, %v442, 0
    %454 = vmatprep.subr.bf16.mxu0 0
    %455 = vmatpush1.bf16.xpose.msra.mxu0 %v452
    %456 = vmatprep.subr.bf16.mxu0 0
    %457 = vmatpush1.bf16.xpose.msra.mxu0 0
    %458 = vmatprep.subr.bf16.mxu0 0
    %459 = vmatpush1.bf16.xpose.msra.mxu0 0
    %460 = vmatprep.subr.bf16.mxu0 0
    %461 = vmatpush1.bf16.xpose.msra.mxu0 0
    %462 = vmatprep.subr.bf16.mxu0 0
    %463 = vmatpush1.bf16.xpose.msra.mxu0 0
    %464 = vmatprep.subr.bf16.mxu0 0
    %465 = vmatpush1.bf16.xpose.msra.mxu0 0
    %466 = vmatprep.subr.bf16.mxu0 0
    %467 = vmatpush1.bf16.xpose.msra.mxu0 0
    %468 = vmatprep.subr.bf16.mxu0 0
    %469 = vmatpush1.bf16.xpose.msra.mxu0 0
    %470 = vmatprep.subr.bf16.mxu0 0
    %471 = vmatpush1.bf16.xpose.msra.mxu0 0
    %472 = vmatprep.subr.bf16.mxu0 0
    %473 = vmatpush1.bf16.xpose.msra.mxu0 0
    %474 = vmatprep.subr.bf16.mxu0 0
    %475 = vmatpush1.bf16.xpose.msra.mxu0 0
    %476 = vmatprep.subr.bf16.mxu0 0
    %477 = vmatpush1.bf16.xpose.msra.mxu0 0
    %478 = vmatprep.subr.bf16.mxu0 0
    %479 = vmatpush1.bf16.xpose.msra.mxu0 0
    %480 = vmatprep.subr.bf16.mxu0 0
    %481 = vmatpush1.bf16.xpose.msra.mxu0 0
    %482 = vmatprep.subr.bf16.mxu0 0
    %483 = vmatpush1.bf16.xpose.msra.mxu0 0
    %484 = vmatprep.subr.bf16.mxu0 0
    %485 = vmatpush1.bf16.xpose.msra.mxu0 0
    %486 = vmatprep.mubr.bf16.mxu0 0
    %487 = vmatmul.mubr.bf16.gmra.mrb[0].mxu0 %v449
    %v488 = vpop.f32.mrb[0].mxu0
    %v489 = vadd.f32 0.0, %v488
    %v490 = vpop.f32.mrb[0].mxu0
    %v491 = vpop.f32.mrb[0].mxu0
    %v492 = vadd.f32 0.0, %v491
    %v493 = vpop.f32.mrb[0].mxu0
    %494 = vdwg.mxu0
    %v496 = vsel %vm447, %v444, 0
    %v499 = vsel %vm447, %v445, 0
    %501 = vmatprep.subr.bf16.mxu0 0
    %502 = vmatpush1.bf16.xpose.msra.mxu0 %v499
    %503 = vmatprep.subr.bf16.mxu0 0
    %504 = vmatpush1.bf16.xpose.msra.mxu0 0
    %505 = vmatprep.subr.bf16.mxu0 0
    %506 = vmatpush1.bf16.xpose.msra.mxu0 0
    %507 = vmatprep.subr.bf16.mxu0 0
    %508 = vmatpush1.bf16.xpose.msra.mxu0 0
    %509 = vmatprep.subr.bf16.mxu0 0
    %510 = vmatpush1.bf16.xpose.msra.mxu0 0
    %511 = vmatprep.subr.bf16.mxu0 0
    %512 = vmatpush1.bf16.xpose.msra.mxu0 0
    %513 = vmatprep.subr.bf16.mxu0 0
    %514 = vmatpush1.bf16.xpose.msra.mxu0 0
    %515 = vmatprep.subr.bf16.mxu0 0
    %516 = vmatpush1.bf16.xpose.msra.mxu0 0
    %517 = vmatprep.subr.bf16.mxu0 0
    %518 = vmatpush1.bf16.xpose.msra.mxu0 0
    %519 = vmatprep.subr.bf16.mxu0 0
    %520 = vmatpush1.bf16.xpose.msra.mxu0 0
    %521 = vmatprep.subr.bf16.mxu0 0
    %522 = vmatpush1.bf16.xpose.msra.mxu0 0
    %523 = vmatprep.subr.bf16.mxu0 0
    %524 = vmatpush1.bf16.xpose.msra.mxu0 0
    %525 = vmatprep.subr.bf16.mxu0 0
    %526 = vmatpush1.bf16.xpose.msra.mxu0 0
    %527 = vmatprep.subr.bf16.mxu0 0
    %528 = vmatpush1.bf16.xpose.msra.mxu0 0
    %529 = vmatprep.subr.bf16.mxu0 0
    %530 = vmatpush1.bf16.xpose.msra.mxu0 0
    %531 = vmatprep.subr.bf16.mxu0 0
    %532 = vmatpush1.bf16.xpose.msra.mxu0 0
    %533 = vmatprep.mubr.bf16.mxu0 0
    %534 = vmatmul.mubr.bf16.gmra.mrb[0].mxu0 %v496
    %v535 = vpop.f32.mrb[0].mxu0
    %v536 = vadd.f32 0.0, %v535
    %v537 = vpop.f32.mrb[0].mxu0
    %v538 = vpop.f32.mrb[0].mxu0
    %v539 = vadd.f32 0.0, %v538
    %v540 = vpop.f32.mrb[0].mxu0
    %541 = vdwg.mxu0
    %vm542 = vcmask 130048
    %v543 = vsel %vm542, %v489, -inf
    %544 = vmax.xlane.f32.xlu0 %v543
    %v545 = vpop.xlane.xlu0 %544
    %v546 = vsel %vm542, %v492, -inf
    %547 = vmax.xlane.f32.xlu0 %v546
    %v548 = vpop.xlane.xlu0 %547
    %v549 = vsel %vm542, %v536, -inf
    %550 = vmax.xlane.f32.xlu0 %v549
    %v551 = vpop.xlane.xlu0 %550
    %v552 = vsel %vm542, %v539, -inf
    %553 = vmax.xlane.f32.xlu0 %v552
    %v554 = vpop.xlane.xlu0 %553
    %v555 = vsub.f32 %v489, %v545
    %v556 = vsub.f32 %v492, %v548
    %v557 = vsub.f32 %v536, %v551
    %v558 = vsub.f32 %v539, %v554
    %v559 = vmul.f32 %v555, 1.442695
    %v560 = vpow.pop %v559
    %v561 = vmul.f32 %v556, 1.442695
    %v562 = vpow.pop %v561
    %v563 = vmul.f32 %v557, 1.442695
    %v564 = vpow.pop %v563
    %v565 = vmul.f32 %v558, 1.442695
    %v566 = vpow.pop %v565
    %v567 = vsel %vm542, %v560, 0.0
    %568 = vadd.xlane.f32.xlu0 %v567
    %v569 = vpop.xlane.xlu0 %568
    %v570 = vsel %vm542, %v562, 0.0
    %571 = vadd.xlane.f32.xlu0 %v570
    %v572 = vpop.xlane.xlu0 %571
    %v573 = vsel %vm542, %v564, 0.0
    %574 = vadd.xlane.f32.xlu0 %v573
    %v575 = vpop.xlane.xlu0 %574
    %v576 = vsel %vm542, %v566, 0.0
    %577 = vadd.xlane.f32.xlu0 %v576
    %v578 = vpop.xlane.xlu0 %577
    %v579 = vrcp.pop %v569
    %v580 = vmul.f32 %v560, %v579
    %v581 = vrcp.pop %v572
    %v582 = vmul.f32 %v562, %v581
    %v583 = vrcp.pop %v575
    %v584 = vmul.f32 %v564, %v583
    %v585 = vrcp.pop %v578
    %v586 = vmul.f32 %v566, %v585
    %v587 = vpack.c.bf16 %v582, %v580
    %v588 = vpack.c.bf16 %v586, %v584
    %v590 = vsel %vm542, %v587, 0
    %592 = vmatprep.subr.bf16.mxu0 0
    %593 = vmatpush1.bf16.msra.mxu0 %v443
    %594 = vmatprep.subr.bf16.mxu0 0
    %595 = vmatpush1.bf16.msra.mxu0 0
    %596 = vmatprep.subr.bf16.mxu0 0
    %597 = vmatpush1.bf16.msra.mxu0 0
    %598 = vmatprep.subr.bf16.mxu0 0
    %599 = vmatpush1.bf16.msra.mxu0 0
    %600 = vmatprep.subr.bf16.mxu0 0
    %601 = vmatpush1.bf16.msra.mxu0 0
    %602 = vmatprep.subr.bf16.mxu0 0
    %603 = vmatpush1.bf16.msra.mxu0 0
    %604 = vmatprep.subr.bf16.mxu0 0
    %605 = vmatpush1.bf16.msra.mxu0 0
    %606 = vmatprep.subr.bf16.mxu0 0
    %607 = vmatpush1.bf16.msra.mxu0 0
    %608 = vmatprep.subr.bf16.mxu0 0
    %609 = vmatpush1.bf16.msra.mxu0 0
    %610 = vmatprep.subr.bf16.mxu0 0
    %611 = vmatpush1.bf16.msra.mxu0 0
    %612 = vmatprep.subr.bf16.mxu0 0
    %613 = vmatpush1.bf16.msra.mxu0 0
    %614 = vmatprep.subr.bf16.mxu0 0
    %615 = vmatpush1.bf16.msra.mxu0 0
    %616 = vmatprep.subr.bf16.mxu0 0
    %617 = vmatpush1.bf16.msra.mxu0 0
    %618 = vmatprep.subr.bf16.mxu0 0
    %619 = vmatpush1.bf16.msra.mxu0 0
    %620 = vmatprep.subr.bf16.mxu0 0
    %621 = vmatpush1.bf16.msra.mxu0 0
    %622 = vmatprep.subr.bf16.mxu0 0
    %623 = vmatpush1.bf16.msra.mxu0 0
    %624 = vmatprep.mubr.bf16.mxu0 0
    %625 = vmatmul.mubr.bf16.gmra.mrb[0].mxu0 %v590
    %v626 = vpop.f32.mrb[0].mxu0
    %v627 = vadd.f32 0.0, %v626
    %v628 = vpop.f32.mrb[0].mxu0
    %v629 = vpop.f32.mrb[0].mxu0
    %v630 = vadd.f32 0.0, %v629
    %v631 = vpop.f32.mrb[0].mxu0
    %632 = vdwg.mxu0
    %v634 = vsel %vm542, %v588, 0
    %636 = vmatprep.subr.bf16.mxu0 0
    %637 = vmatpush1.bf16.msra.mxu0 %v446
    %638 = vmatprep.subr.bf16.mxu0 0
    %639 = vmatpush1.bf16.msra.mxu0 0
    %640 = vmatprep.subr.bf16.mxu0 0
    %641 = vmatpush1.bf16.msra.mxu0 0
    %642 = vmatprep.subr.bf16.mxu0 0
    %643 = vmatpush1.bf16.msra.mxu0 0
    %644 = vmatprep.subr.bf16.mxu0 0
    %645 = vmatpush1.bf16.msra.mxu0 0
    %646 = vmatprep.subr.bf16.mxu0 0
    %647 = vmatpush1.bf16.msra.mxu0 0
    %648 = vmatprep.subr.bf16.mxu0 0
    %649 = vmatpush1.bf16.msra.mxu0 0
    %650 = vmatprep.subr.bf16.mxu0 0
    %651 = vmatpush1.bf16.msra.mxu0 0
    %652 = vmatprep.subr.bf16.mxu0 0
    %653 = vmatpush1.bf16.msra.mxu0 0
    %654 = vmatprep.subr.bf16.mxu0 0
    %655 = vmatpush1.bf16.msra.mxu0 0
    %656 = vmatprep.subr.bf16.mxu0 0
    %657 = vmatpush1.bf16.msra.mxu0 0
    %658 = vmatprep.subr.bf16.mxu0 0
    %659 = vmatpush1.bf16.msra.mxu0 0
    %660 = vmatprep.subr.bf16.mxu0 0
    %661 = vmatpush1.bf16.msra.mxu0 0
    %662 = vmatprep.subr.bf16.mxu0 0
    %663 = vmatpush1.bf16.msra.mxu0 0
    %664 = vmatprep.subr.bf16.mxu0 0
    %665 = vmatpush1.bf16.msra.mxu0 0
    %666 = vmatprep.subr.bf16.mxu0 0
    %667 = vmatpush1.bf16.msra.mxu0 0
    %668 = vmatprep.mubr.bf16.mxu0 0
    %669 = vmatmul.mubr.bf16.gmra.mrb[0].mxu0 %v634
    %v670 = vpop.f32.mrb[0].mxu0
    %v671 = vadd.f32 0.0, %v670
    %v672 = vpop.f32.mrb[0].mxu0
    %v673 = vpop.f32.mrb[0].mxu0
    %v674 = vadd.f32 0.0, %v673
    %v675 = vpop.f32.mrb[0].mxu0
    %676 = vdwg.mxu0
    %677 = vst.msk [vmem:[#allocation2] sm:$0xff] %vm447, %v627
    %678 = vst.msk [vmem:[#allocation2 + $0x8] sm:$0xff] %vm447, %v630
    %679 = vst.msk [vmem:[#allocation2 + $0x10] sm:$0xff] %vm447, %v671
    %680 = vst.msk [vmem:[#allocation2 + $0x18] sm:$0xff] %vm447, %v674
    %682 = vrot.lane.b32.xlu0 %v441, 96
    %v683 = vpop.permute.xlu0 %682
    %685 = vrot.lane.b32.xlu0 %v442, 96
    %v686 = vpop.permute.xlu0 %685
    %v688 = vsel %vm447, %v683, 0
    %v691 = vsel %vm447, %v686, 0
    %693 = vmatprep.subr.bf16.mxu0 0
    %694 = vmatpush1.bf16.xpose.msra.mxu0 %v691
    %695 = vmatprep.subr.bf16.mxu0 0
    %696 = vmatpush1.bf16.xpose.msra.mxu0 0
    %697 = vmatprep.subr.bf16.mxu0 0
    %698 = vmatpush1.bf16.xpose.msra.mxu0 0
    %699 = vmatprep.subr.bf16.mxu0 0
    %700 = vmatpush1.bf16.xpose.msra.mxu0 0
    %701 = vmatprep.subr.bf16.mxu0 0
    %702 = vmatpush1.bf16.xpose.msra.mxu0 0
    %703 = vmatprep.subr.bf16.mxu0 0
    %704 = vmatpush1.bf16.xpose.msra.mxu0 0
    %705 = vmatprep.subr.bf16.mxu0 0
    %706 = vmatpush1.bf16.xpose.msra.mxu0 0
    %707 = vmatprep.subr.bf16.mxu0 0
    %708 = vmatpush1.bf16.xpose.msra.mxu0 0
    %709 = vmatprep.subr.bf16.mxu0 0
    %710 = vmatpush1.bf16.xpose.msra.mxu0 0
    %711 = vmatprep.subr.bf16.mxu0 0
    %712 = vmatpush1.bf16.xpose.msra.mxu0 0
    %713 = vmatprep.subr.bf16.mxu0 0
    %714 = vmatpush1.bf16.xpose.msra.mxu0 0
    %715 = vmatprep.subr.bf16.mxu0 0
    %716 = vmatpush1.bf16.xpose.msra.mxu0 0
    %717 = vmatprep.subr.bf16.mxu0 0
    %718 = vmatpush1.bf16.xpose.msra.mxu0 0
    %719 = vmatprep.subr.bf16.mxu0 0
    %720 = vmatpush1.bf16.xpose.msra.mxu0 0
    %721 = vmatprep.subr.bf16.mxu0 0
    %722 = vmatpush1.bf16.xpose.msra.mxu0 0
    %723 = vmatprep.subr.bf16.mxu0 0
    %724 = vmatpush1.bf16.xpose.msra.mxu0 0
    %725 = vmatprep.mubr.bf16.mxu0 0
    %726 = vmatmul.mubr.bf16.gmra.mrb[0].mxu0 %v688
    %v727 = vpop.f32.mrb[0].mxu0
    %v728 = vadd.f32 0.0, %v727
    %v729 = vpop.f32.mrb[0].mxu0
    %v730 = vpop.f32.mrb[0].mxu0
    %v731 = vadd.f32 0.0, %v730
    %v732 = vpop.f32.mrb[0].mxu0
    %733 = vdwg.mxu0
    %735 = vrot.lane.b32.xlu0 %v444, 96
    %v736 = vpop.permute.xlu0 %735
    %738 = vrot.lane.b32.xlu0 %v445, 96
    %v739 = vpop.permute.xlu0 %738
    %v741 = vsel %vm447, %v736, 0
    %v744 = vsel %vm447, %v739, 0
    %746 = vmatprep.subr.bf16.mxu0 0
    %747 = vmatpush1.bf16.xpose.msra.mxu0 %v744
    %748 = vmatprep.subr.bf16.mxu0 0
    %749 = vmatpush1.bf16.xpose.msra.mxu0 0
    %750 = vmatprep.subr.bf16.mxu0 0
    %751 = vmatpush1.bf16.xpose.msra.mxu0 0
    %752 = vmatprep.subr.bf16.mxu0 0
    %753 = vmatpush1.bf16.xpose.msra.mxu0 0
    %754 = vmatprep.subr.bf16.mxu0 0
    %755 = vmatpush1.bf16.xpose.msra.mxu0 0
    %756 = vmatprep.subr.bf16.mxu0 0
    %757 = vmatpush1.bf16.xpose.msra.mxu0 0
    %758 = vmatprep.subr.bf16.mxu0 0
    %759 = vmatpush1.bf16.xpose.msra.mxu0 0
    %760 = vmatprep.subr.bf16.mxu0 0
    %761 = vmatpush1.bf16.xpose.msra.mxu0 0
    %762 = vmatprep.subr.bf16.mxu0 0
    %763 = vmatpush1.bf16.xpose.msra.mxu0 0
    %764 = vmatprep.subr.bf16.mxu0 0
    %765 = vmatpush1.bf16.xpose.msra.mxu0 0
    %766 = vmatprep.subr.bf16.mxu0 0
    %767 = vmatpush1.bf16.xpose.msra.mxu0 0
    %768 = vmatprep.subr.bf16.mxu0 0
    %769 = vmatpush1.bf16.xpose.msra.mxu0 0
    %770 = vmatprep.subr.bf16.mxu0 0
    %771 = vmatpush1.bf16.xpose.msra.mxu0 0
    %772 = vmatprep.subr.bf16.mxu0 0
    %773 = vmatpush1.bf16.xpose.msra.mxu0 0
    %774 = vmatprep.subr.bf16.mxu0 0
    %775 = vmatpush1.bf16.xpose.msra.mxu0 0
    %776 = vmatprep.subr.bf16.mxu0 0
    %777 = vmatpush1.bf16.xpose.msra.mxu0 0
    %778 = vmatprep.mubr.bf16.mxu0 0
    %779 = vmatmul.mubr.bf16.gmra.mrb[0].mxu0 %v741
    %v780 = vpop.f32.mrb[0].mxu0
    %v781 = vadd.f32 0.0, %v780
    %v782 = vpop.f32.mrb[0].mxu0
    %v783 = vpop.f32.mrb[0].mxu0
    %v784 = vadd.f32 0.0, %v783
    %v785 = vpop.f32.mrb[0].mxu0
    %786 = vdwg.mxu0
    %v787 = vsel %vm542, %v728, -inf
    %788 = vmax.xlane.f32.xlu0 %v787
    %v789 = vpop.xlane.xlu0 %788
    %v790 = vsel %vm542, %v731, -inf
    %791 = vmax.xlane.f32.xlu0 %v790
    %v792 = vpop.xlane.xlu0 %791
    %v793 = vsel %vm542, %v781, -inf
    %794 = vmax.xlane.f32.xlu0 %v793
    %v795 = vpop.xlane.xlu0 %794
    %v796 = vsel %vm542, %v784, -inf
    %797 = vmax.xlane.f32.xlu0 %v796
    %v798 = vpop.xlane.xlu0 %797
    %v799 = vsub.f32 %v728, %v789
    %v800 = vsub.f32 %v731, %v792
    %v801 = vsub.f32 %v781, %v795
    %v802 = vsub.f32 %v784, %v798
    %v803 = vmul.f32 %v799, 1.442695
    %v804 = vpow.pop %v803
    %v805 = vmul.f32 %v800, 1.442695
    %v806 = vpow.pop %v805
    %v807 = vmul.f32 %v801, 1.442695
    %v808 = vpow.pop %v807
    %v809 = vmul.f32 %v802, 1.442695
    %v810 = vpow.pop %v809
    %v811 = vsel %vm542, %v804, 0.0
    %812 = vadd.xlane.f32.xlu0 %v811
    %v813 = vpop.xlane.xlu0 %812
    %v814 = vsel %vm542, %v806, 0.0
    %815 = vadd.xlane.f32.xlu0 %v814
    %v816 = vpop.xlane.xlu0 %815
    %v817 = vsel %vm542, %v808, 0.0
    %818 = vadd.xlane.f32.xlu0 %v817
    %v819 = vpop.xlane.xlu0 %818
    %v820 = vsel %vm542, %v810, 0.0
    %821 = vadd.xlane.f32.xlu0 %v820
    %v822 = vpop.xlane.xlu0 %821
    %v823 = vrcp.pop %v813
    %v824 = vmul.f32 %v804, %v823
    %v825 = vrcp.pop %v816
    %v826 = vmul.f32 %v806, %v825
    %v827 = vrcp.pop %v819
    %v828 = vmul.f32 %v808, %v827
    %v829 = vrcp.pop %v822
    %v830 = vmul.f32 %v810, %v829
    %v831 = vpack.c.bf16 %v826, %v824
    %v832 = vpack.c.bf16 %v830, %v828
    %834 = vrot.lane.b32.xlu0 %v443, 96
    %v835 = vpop.permute.xlu0 %834
    %v838 = vsel %vm542, %v831, 0
    %840 = vmatprep.subr.bf16.mxu0 0
    %841 = vmatpush1.bf16.msra.mxu0 %v835
    %842 = vmatprep.subr.bf16.mxu0 0
    %843 = vmatpush1.bf16.msra.mxu0 0
    %844 = vmatprep.subr.bf16.mxu0 0
    %845 = vmatpush1.bf16.msra.mxu0 0
    %846 = vmatprep.subr.bf16.mxu0 0
    %847 = vmatpush1.bf16.msra.mxu0 0
    %848 = vmatprep.subr.bf16.mxu0 0
    %849 = vmatpush1.bf16.msra.mxu0 0
    %850 = vmatprep.subr.bf16.mxu0 0
    %851 = vmatpush1.bf16.msra.mxu0 0
    %852 = vmatprep.subr.bf16.mxu0 0
    %853 = vmatpush1.bf16.msra.mxu0 0
    %854 = vmatprep.subr.bf16.mxu0 0
    %855 = vmatpush1.bf16.msra.mxu0 0
    %856 = vmatprep.subr.bf16.mxu0 0
    %857 = vmatpush1.bf16.msra.mxu0 0
    %858 = vmatprep.subr.bf16.mxu0 0
    %859 = vmatpush1.bf16.msra.mxu0 0
    %860 = vmatprep.subr.bf16.mxu0 0
    %861 = vmatpush1.bf16.msra.mxu0 0
    %862 = vmatprep.subr.bf16.mxu0 0
    %863 = vmatpush1.bf16.msra.mxu0 0
    %864 = vmatprep.subr.bf16.mxu0 0
    %865 = vmatpush1.bf16.msra.mxu0 0
    %866 = vmatprep.subr.bf16.mxu0 0
    %867 = vmatpush1.bf16.msra.mxu0 0
    %868 = vmatprep.subr.bf16.mxu0 0
    %869 = vmatpush1.bf16.msra.mxu0 0
    %870 = vmatprep.subr.bf16.mxu0 0
    %871 = vmatpush1.bf16.msra.mxu0 0
    %872 = vmatprep.mubr.bf16.mxu0 0
    %873 = vmatmul.mubr.bf16.gmra.mrb[0].mxu0 %v838
    %v874 = vpop.f32.mrb[0].mxu0
    %v875 = vadd.f32 0.0, %v874
    %v876 = vpop.f32.mrb[0].mxu0
    %v877 = vpop.f32.mrb[0].mxu0
    %v878 = vadd.f32 0.0, %v877
    %v879 = vpop.f32.mrb[0].mxu0
    %880 = vdwg.mxu0
    %882 = vrot.lane.b32.xlu0 %v446, 96
    %v883 = vpop.permute.xlu0 %882
    %v886 = vsel %vm542, %v832, 0
    %888 = vmatprep.subr.bf16.mxu0 0
    %889 = vmatpush1.bf16.msra.mxu0 %v883
    %890 = vmatprep.subr.bf16.mxu0 0
    %891 = vmatpush1.bf16.msra.mxu0 0
    %892 = vmatprep.subr.bf16.mxu0 0
    %893 = vmatpush1.bf16.msra.mxu0 0
    %894 = vmatprep.subr.bf16.mxu0 0
    %895 = vmatpush1.bf16.msra.mxu0 0
    %896 = vmatprep.subr.bf16.mxu0 0
    %897 = vmatpush1.bf16.msra.mxu0 0
    %898 = vmatprep.subr.bf16.mxu0 0
    %899 = vmatpush1.bf16.msra.mxu0 0
    %900 = vmatprep.subr.bf16.mxu0 0
    %901 = vmatpush1.bf16.msra.mxu0 0
    %902 = vmatprep.subr.bf16.mxu0 0
    %903 = vmatpush1.bf16.msra.mxu0 0
    %904 = vmatprep.subr.bf16.mxu0 0
    %905 = vmatpush1.bf16.msra.mxu0 0
    %906 = vmatprep.subr.bf16.mxu0 0
    %907 = vmatpush1.bf16.msra.mxu0 0
    %908 = vmatprep.subr.bf16.mxu0 0
    %909 = vmatpush1.bf16.msra.mxu0 0
    %910 = vmatprep.subr.bf16.mxu0 0
    %911 = vmatpush1.bf16.msra.mxu0 0
    %912 = vmatprep.subr.bf16.mxu0 0
    %913 = vmatpush1.bf16.msra.mxu0 0
    %914 = vmatprep.subr.bf16.mxu0 0
    %915 = vmatpush1.bf16.msra.mxu0 0
    %916 = vmatprep.subr.bf16.mxu0 0
    %917 = vmatpush1.bf16.msra.mxu0 0
    %918 = vmatprep.subr.bf16.mxu0 0
    %919 = vmatpush1.bf16.msra.mxu0 0
    %920 = vmatprep.mubr.bf16.mxu0 0
    %921 = vmatmul.mubr.bf16.gmra.mrb[0].mxu0 %v886
    %v922 = vpop.f32.mrb[0].mxu0
    %v923 = vadd.f32 0.0, %v922
    %v924 = vpop.f32.mrb[0].mxu0
    %v925 = vpop.f32.mrb[0].mxu0
    %v926 = vadd.f32 0.0, %v925
    %v927 = vpop.f32.mrb[0].mxu0
    %928 = vdwg.mxu0
    %933 = vrot.lane.b32.xlu0 %v875, 32
    %v934 = vpop.permute.xlu0 %933
    %935 = vrot.lane.b32.xlu0 %v878, 32
    %v936 = vpop.permute.xlu0 %935
    %937 = vrot.lane.b32.xlu0 %v923, 32
    %v938 = vpop.permute.xlu0 %937
    %939 = vrot.lane.b32.xlu0 %v926, 32
    %v940 = vpop.permute.xlu0 %939
    %vm945 = vcmask 523520
    %946 = vst.msk [vmem:[#allocation2] sm:$0xff] %vm945, %v934
    %947 = vst.msk [vmem:[#allocation2 + $0x8] sm:$0xff] %vm945, %v936
    %948 = vst.msk [vmem:[#allocation2 + $0x10] sm:$0xff] %vm945, %v938
    %949 = vst.msk [vmem:[#allocation2 + $0x18] sm:$0xff] %vm945, %v940
    %950 = vrot.lane.b32.xlu0 %v441, 64
    %v951 = vpop.permute.xlu0 %950
    %952 = vrot.lane.b32.xlu0 %v442, 64
    %v953 = vpop.permute.xlu0 %952
    %v955 = vsel %vm447, %v951, 0
    %v958 = vsel %vm447, %v953, 0
    %960 = vmatprep.subr.bf16.mxu0 0
    %961 = vmatpush1.bf16.xpose.msra.mxu0 %v958
    %962 = vmatprep.subr.bf16.mxu0 0
    %963 = vmatpush1.bf16.xpose.msra.mxu0 0
    %964 = vmatprep.subr.bf16.mxu0 0
    %965 = vmatpush1.bf16.xpose.msra.mxu0 0
    %966 = vmatprep.subr.bf16.mxu0 0
    %967 = vmatpush1.bf16.xpose.msra.mxu0 0
    %968 = vmatprep.subr.bf16.mxu0 0
    %969 = vmatpush1.bf16.xpose.msra.mxu0 0
    %970 = vmatprep.subr.bf16.mxu0 0
    %971 = vmatpush1.bf16.xpose.msra.mxu0 0
    %972 = vmatprep.subr.bf16.mxu0 0
    %973 = vmatpush1.bf16.xpose.msra.mxu0 0
    %974 = vmatprep.subr.bf16.mxu0 0
    %975 = vmatpush1.bf16.xpose.msra.mxu0 0
    %976 = vmatprep.subr.bf16.mxu0 0
    %977 = vmatpush1.bf16.xpose.msra.mxu0 0
    %978 = vmatprep.subr.bf16.mxu0 0
    %979 = vmatpush1.bf16.xpose.msra.mxu0 0
    %980 = vmatprep.subr.bf16.mxu0 0
    %981 = vmatpush1.bf16.xpose.msra.mxu0 0
    %982 = vmatprep.subr.bf16.mxu0 0
    %983 = vmatpush1.bf16.xpose.msra.mxu0 0
    %984 = vmatprep.subr.bf16.mxu0 0
    %985 = vmatpush1.bf16.xpose.msra.mxu0 0
    %986 = vmatprep.subr.bf16.mxu0 0
    %987 = vmatpush1.bf16.xpose.msra.mxu0 0
    %988 = vmatprep.subr.bf16.mxu0 0
    %989 = vmatpush1.bf16.xpose.msra.mxu0 0
    %990 = vmatprep.subr.bf16.mxu0 0
    %991 = vmatpush1.bf16.xpose.msra.mxu0 0
    %992 = vmatprep.mubr.bf16.mxu0 0
    %993 = vmatmul.mubr.bf16.gmra.mrb[0].mxu0 %v955
    %v994 = vpop.f32.mrb[0].mxu0
    %v995 = vadd.f32 0.0, %v994
    %v996 = vpop.f32.mrb[0].mxu0
    %v997 = vpop.f32.mrb[0].mxu0
    %v998 = vadd.f32 0.0, %v997
    %v999 = vpop.f32.mrb[0].mxu0
    %1000 = vdwg.mxu0
    %1001 = vrot.lane.b32.xlu0 %v444, 64
    %v1002 = vpop.permute.xlu0 %1001
    %1003 = vrot.lane.b32.xlu0 %v445, 64
    %v1004 = vpop.permute.xlu0 %1003
    %v1006 = vsel %vm447, %v1002, 0
    %v1009 = vsel %vm447, %v1004, 0
    %1011 = vmatprep.subr.bf16.mxu0 0
    %1012 = vmatpush1.bf16.xpose.msra.mxu0 %v1009
    %1013 = vmatprep.subr.bf16.mxu0 0
    %1014 = vmatpush1.bf16.xpose.msra.mxu0 0
    %1015 = vmatprep.subr.bf16.mxu0 0
    %1016 = vmatpush1.bf16.xpose.msra.mxu0 0
    %1017 = vmatprep.subr.bf16.mxu0 0
    %1018 = vmatpush1.bf16.xpose.msra.mxu0 0
    %1019 = vmatprep.subr.bf16.mxu0 0
    %1020 = vmatpush1.bf16.xpose.msra.mxu0 0
    %1021 = vmatprep.subr.bf16.mxu0 0
    %1022 = vmatpush1.bf16.xpose.msra.mxu0 0
    %1023 = vmatprep.subr.bf16.mxu0 0
    %1024 = vmatpush1.bf16.xpose.msra.mxu0 0
    %1025 = vmatprep.subr.bf16.mxu0 0
    %1026 = vmatpush1.bf16.xpose.msra.mxu0 0
    %1027 = vmatprep.subr.bf16.mxu0 0
    %1028 = vmatpush1.bf16.xpose.msra.mxu0 0
    %1029 = vmatprep.subr.bf16.mxu0 0
    %1030 = vmatpush1.bf16.xpose.msra.mxu0 0
    %1031 = vmatprep.subr.bf16.mxu0 0
    %1032 = vmatpush1.bf16.xpose.msra.mxu0 0
    %1033 = vmatprep.subr.bf16.mxu0 0
    %1034 = vmatpush1.bf16.xpose.msra.mxu0 0
    %1035 = vmatprep.subr.bf16.mxu0 0
    %1036 = vmatpush1.bf16.xpose.msra.mxu0 0
    %1037 = vmatprep.subr.bf16.mxu0 0
    %1038 = vmatpush1.bf16.xpose.msra.mxu0 0
    %1039 = vmatprep.subr.bf16.mxu0 0
    %1040 = vmatpush1.bf16.xpose.msra.mxu0 0
    %1041 = vmatprep.subr.bf16.mxu0 0
    %1042 = vmatpush1.bf16.xpose.msra.mxu0 0
    %1043 = vmatprep.mubr.bf16.mxu0 0
    %1044 = vmatmul.mubr.bf16.gmra.mrb[0].mxu0 %v1006
    %v1045 = vpop.f32.mrb[0].mxu0
    %v1046 = vadd.f32 0.0, %v1045
    %v1047 = vpop.f32.mrb[0].mxu0
    %v1048 = vpop.f32.mrb[0].mxu0
    %v1049 = vadd.f32 0.0, %v1048
    %v1050 = vpop.f32.mrb[0].mxu0
    %1051 = vdwg.mxu0
    %v1052 = vsel %vm542, %v995, -inf
    %1053 = vmax.xlane.f32.xlu0 %v1052
    %v1054 = vpop.xlane.xlu0 %1053
    %v1055 = vsel %vm542, %v998, -inf
    %1056 = vmax.xlane.f32.xlu0 %v1055
    %v1057 = vpop.xlane.xlu0 %1056
    %v1058 = vsel %vm542, %v1046, -inf
    %1059 = vmax.xlane.f32.xlu0 %v1058
    %v1060 = vpop.xlane.xlu0 %1059
    %v1061 = vsel %vm542, %v1049, -inf
    %1062 = vmax.xlane.f32.xlu0 %v1061
    %v1063 = vpop.xlane.xlu0 %1062
    %v1064 = vsub.f32 %v995, %v1054
    %v1065 = vsub.f32 %v998, %v1057
    %v1066 = vsub.f32 %v1046, %v1060
    %v1067 = vsub.f32 %v1049, %v1063
    %v1068 = vmul.f32 %v1064, 1.442695
    %v1069 = vpow.pop %v1068
    %v1070 = vmul.f32 %v1065, 1.442695
    %v1071 = vpow.pop %v1070
    %v1072 = vmul.f32 %v1066, 1.442695
    %v1073 = vpow.pop %v1072
    %v1074 = vmul.f32 %v1067, 1.442695
    %v1075 = vpow.pop %v1074
    %v1076 = vsel %vm542, %v1069, 0.0
    %1077 = vadd.xlane.f32.xlu0 %v1076
    %v1078 = vpop.xlane.xlu0 %1077
    %v1079 = vsel %vm542, %v1071, 0.0
    %1080 = vadd.xlane.f32.xlu0 %v1079
    %v1081 = vpop.xlane.xlu0 %1080
    %v1082 = vsel %vm542, %v1073, 0.0
    %1083 = vadd.xlane.f32.xlu0 %v1082
    %v1084 = vpop.xlane.xlu0 %1083
    %v1085 = vsel %vm542, %v1075, 0.0
    %1086 = vadd.xlane.f32.xlu0 %v1085
    %v1087 = vpop.xlane.xlu0 %1086
    %v1088 = vrcp.pop %v1078
    %v1089 = vmul.f32 %v1069, %v1088
    %v1090 = vrcp.pop %v1081
    %v1091 = vmul.f32 %v1071, %v1090
    %v1092 = vrcp.pop %v1084
    %v1093 = vmul.f32 %v1073, %v1092
    %v1094 = vrcp.pop %v1087
    %v1095 = vmul.f32 %v1075, %v1094
    %v1096 = vpack.c.bf16 %v1091, %v1089
    %v1097 = vpack.c.bf16 %v1095, %v1093
    %1098 = vrot.lane.b32.xlu0 %v443, 64
    %v1099 = vpop.permute.xlu0 %1098
    %v1102 = vsel %vm542, %v1096, 0
    %1104 = vmatprep.subr.bf16.mxu0 0
    %1105 = vmatpush1.bf16.msra.mxu0 %v1099
    %1106 = vmatprep.subr.bf16.mxu0 0
    %1107 = vmatpush1.bf16.msra.mxu0 0
    %1108 = vmatprep.subr.bf16.mxu0 0
    %1109 = vmatpush1.bf16.msra.mxu0 0
    %1110 = vmatprep.subr.bf16.mxu0 0
    %1111 = vmatpush1.bf16.msra.mxu0 0
    %1112 = vmatprep.subr.bf16.mxu0 0
    %1113 = vmatpush1.bf16.msra.mxu0 0
    %1114 = vmatprep.subr.bf16.mxu0 0
    %1115 = vmatpush1.bf16.msra.mxu0 0
    %1116 = vmatprep.subr.bf16.mxu0 0
    %1117 = vmatpush1.bf16.msra.mxu0 0
    %1118 = vmatprep.subr.bf16.mxu0 0
    %1119 = vmatpush1.bf16.msra.mxu0 0
    %1120 = vmatprep.subr.bf16.mxu0 0
    %1121 = vmatpush1.bf16.msra.mxu0 0
    %1122 = vmatprep.subr.bf16.mxu0 0
    %1123 = vmatpush1.bf16.msra.mxu0 0
    %1124 = vmatprep.subr.bf16.mxu0 0
    %1125 = vmatpush1.bf16.msra.mxu0 0
    %1126 = vmatprep.subr.bf16.mxu0 0
    %1127 = vmatpush1.bf16.msra.mxu0 0
    %1128 = vmatprep.subr.bf16.mxu0 0
    %1129 = vmatpush1.bf16.msra.mxu0 0
    %1130 = vmatprep.subr.bf16.mxu0 0
    %1131 = vmatpush1.bf16.msra.mxu0 0
    %1132 = vmatprep.subr.bf16.mxu0 0
    %1133 = vmatpush1.bf16.msra.mxu0 0
    %1134 = vmatprep.subr.bf16.mxu0 0
    %1135 = vmatpush1.bf16.msra.mxu0 0
    %1136 = vmatprep.mubr.bf16.mxu0 0
    %1137 = vmatmul.mubr.bf16.gmra.mrb[0].mxu0 %v1102
    %v1138 = vpop.f32.mrb[0].mxu0
    %v1139 = vadd.f32 0.0, %v1138
    %v1140 = vpop.f32.mrb[0].mxu0
    %v1141 = vpop.f32.mrb[0].mxu0
    %v1142 = vadd.f32 0.0, %v1141
    %v1143 = vpop.f32.mrb[0].mxu0
    %1144 = vdwg.mxu0
    %1145 = vrot.lane.b32.xlu0 %v446, 64
    %v1146 = vpop.permute.xlu0 %1145
    %v1149 = vsel %vm542, %v1097, 0
    %1151 = vmatprep.subr.bf16.mxu0 0
    %1152 = vmatpush1.bf16.msra.mxu0 %v1146
    %1153 = vmatprep.subr.bf16.mxu0 0
    %1154 = vmatpush1.bf16.msra.mxu0 0
    %1155 = vmatprep.subr.bf16.mxu0 0
    %1156 = vmatpush1.bf16.msra.mxu0 0
    %1157 = vmatprep.subr.bf16.mxu0 0
    %1158 = vmatpush1.bf16.msra.mxu0 0
    %1159 = vmatprep.subr.bf16.mxu0 0
    %1160 = vmatpush1.bf16.msra.mxu0 0
    %1161 = vmatprep.subr.bf16.mxu0 0
    %1162 = vmatpush1.bf16.msra.mxu0 0
    %1163 = vmatprep.subr.bf16.mxu0 0
    %1164 = vmatpush1.bf16.msra.mxu0 0
    %1165 = vmatprep.subr.bf16.mxu0 0
    %1166 = vmatpush1.bf16.msra.mxu0 0
    %1167 = vmatprep.subr.bf16.mxu0 0
    %1168 = vmatpush1.bf16.msra.mxu0 0
    %1169 = vmatprep.subr.bf16.mxu0 0
    %1170 = vmatpush1.bf16.msra.mxu0 0
    %1171 = vmatprep.subr.bf16.mxu0 0
    %1172 = vmatpush1.bf16.msra.mxu0 0
    %1173 = vmatprep.subr.bf16.mxu0 0
    %1174 = vmatpush1.bf16.msra.mxu0 0
    %1175 = vmatprep.subr.bf16.mxu0 0
    %1176 = vmatpush1.bf16.msra.mxu0 0
    %1177 = vmatprep.subr.bf16.mxu0 0
    %1178 = vmatpush1.bf16.msra.mxu0 0
    %1179 = vmatprep.subr.bf16.mxu0 0
    %1180 = vmatpush1.bf16.msra.mxu0 0
    %1181 = vmatprep.subr.bf16.mxu0 0
    %1182 = vmatpush1.bf16.msra.mxu0 0
    %1183 = vmatprep.mubr.bf16.mxu0 0
    %1184 = vmatmul.mubr.bf16.gmra.mrb[0].mxu0 %v1149
    %v1185 = vpop.f32.mrb[0].mxu0
    %v1186 = vadd.f32 0.0, %v1185
    %v1187 = vpop.f32.mrb[0].mxu0
    %v1188 = vpop.f32.mrb[0].mxu0
    %v1189 = vadd.f32 0.0, %v1188
    %v1190 = vpop.f32.mrb[0].mxu0
    %1191 = vdwg.mxu0
    %1196 = vrot.lane.b32.xlu0 %v1139, 64
    %v1197 = vpop.permute.xlu0 %1196
    %1198 = vrot.lane.b32.xlu0 %v1142, 64
    %v1199 = vpop.permute.xlu0 %1198
    %1200 = vrot.lane.b32.xlu0 %v1186, 64
    %v1201 = vpop.permute.xlu0 %1200
    %1202 = vrot.lane.b32.xlu0 %v1189, 64
    %v1203 = vpop.permute.xlu0 %1202
    %vm1208 = vcmask 785920
    %1209 = vst.msk [vmem:[#allocation2] sm:$0xff] %vm1208, %v1197
    %1210 = vst.msk [vmem:[#allocation2 + $0x8] sm:$0xff] %vm1208, %v1199
    %1211 = vst.msk [vmem:[#allocation2 + $0x10] sm:$0xff] %vm1208, %v1201
    %1212 = vst.msk [vmem:[#allocation2 + $0x18] sm:$0xff] %vm1208, %v1203
    %1213 = vrot.lane.b32.xlu0 %v441, 32
    %v1214 = vpop.permute.xlu0 %1213
    %1215 = vrot.lane.b32.xlu0 %v442, 32
    %v1216 = vpop.permute.xlu0 %1215
    %v1218 = vsel %vm447, %v1214, 0
    %v1221 = vsel %vm447, %v1216, 0
    %1223 = vmatprep.subr.bf16.mxu0 0
    %1224 = vmatpush1.bf16.xpose.msra.mxu0 %v1221
    %1225 = vmatprep.subr.bf16.mxu0 0
    %1226 = vmatpush1.bf16.xpose.msra.mxu0 0
    %1227 = vmatprep.subr.bf16.mxu0 0
    %1228 = vmatpush1.bf16.xpose.msra.mxu0 0
    %1229 = vmatprep.subr.bf16.mxu0 0
    %1230 = vmatpush1.bf16.xpose.msra.mxu0 0
    %1231 = vmatprep.subr.bf16.mxu0 0
    %1232 = vmatpush1.bf16.xpose.msra.mxu0 0
    %1233 = vmatprep.subr.bf16.mxu0 0
    %1234 = vmatpush1.bf16.xpose.msra.mxu0 0
    %1235 = vmatprep.subr.bf16.mxu0 0
    %1236 = vmatpush1.bf16.xpose.msra.mxu0 0
    %1237 = vmatprep.subr.bf16.mxu0 0
    %1238 = vmatpush1.bf16.xpose.msra.mxu0 0
    %1239 = vmatprep.subr.bf16.mxu0 0
    %1240 = vmatpush1.bf16.xpose.msra.mxu0 0
    %1241 = vmatprep.subr.bf16.mxu0 0
    %1242 = vmatpush1.bf16.xpose.msra.mxu0 0
    %1243 = vmatprep.subr.bf16.mxu0 0
    %1244 = vmatpush1.bf16.xpose.msra.mxu0 0
    %1245 = vmatprep.subr.bf16.mxu0 0
    %1246 = vmatpush1.bf16.xpose.msra.mxu0 0
    %1247 = vmatprep.subr.bf16.mxu0 0
    %1248 = vmatpush1.bf16.xpose.msra.mxu0 0
    %1249 = vmatprep.subr.bf16.mxu0 0
    %1250 = vmatpush1.bf16.xpose.msra.mxu0 0
    %1251 = vmatprep.subr.bf16.mxu0 0
    %1252 = vmatpush1.bf16.xpose.msra.mxu0 0
    %1253 = vmatprep.subr.bf16.mxu0 0
    %1254 = vmatpush1.bf16.xpose.msra.mxu0 0
    %1255 = vmatprep.mubr.bf16.mxu0 0
    %1256 = vmatmul.mubr.bf16.gmra.mrb[0].mxu0 %v1218
    %v1257 = vpop.f32.mrb[0].mxu0
    %v1258 = vadd.f32 0.0, %v1257
    %v1259 = vpop.f32.mrb[0].mxu0
    %v1260 = vpop.f32.mrb[0].mxu0
    %v1261 = vadd.f32 0.0, %v1260
    %v1262 = vpop.f32.mrb[0].mxu0
    %1263 = vdwg.mxu0
    %1264 = vrot.lane.b32.xlu0 %v444, 32
    %v1265 = vpop.permute.xlu0 %1264
    %1266 = vrot.lane.b32.xlu0 %v445, 32
    %v1267 = vpop.permute.xlu0 %1266
    %v1269 = vsel %vm447, %v1265, 0
    %v1272 = vsel %vm447, %v1267, 0
    %1274 = vmatprep.subr.bf16.mxu0 0
    %1275 = vmatpush1.bf16.xpose.msra.mxu0 %v1272
    %1276 = vmatprep.subr.bf16.mxu0 0
    %1277 = vmatpush1.bf16.xpose.msra.mxu0 0
    %1278 = vmatprep.subr.bf16.mxu0 0
    %1279 = vmatpush1.bf16.xpose.msra.mxu0 0
    %1280 = vmatprep.subr.bf16.mxu0 0
    %1281 = vmatpush1.bf16.xpose.msra.mxu0 0
    %1282 = vmatprep.subr.bf16.mxu0 0
    %1283 = vmatpush1.bf16.xpose.msra.mxu0 0
    %1284 = vmatprep.subr.bf16.mxu0 0
    %1285 = vmatpush1.bf16.xpose.msra.mxu0 0
    %1286 = vmatprep.subr.bf16.mxu0 0
    %1287 = vmatpush1.bf16.xpose.msra.mxu0 0
    %1288 = vmatprep.subr.bf16.mxu0 0
    %1289 = vmatpush1.bf16.xpose.msra.mxu0 0
    %1290 = vmatprep.subr.bf16.mxu0 0
    %1291 = vmatpush1.bf16.xpose.msra.mxu0 0
    %1292 = vmatprep.subr.bf16.mxu0 0
    %1293 = vmatpush1.bf16.xpose.msra.mxu0 0
    %1294 = vmatprep.subr.bf16.mxu0 0
    %1295 = vmatpush1.bf16.xpose.msra.mxu0 0
    %1296 = vmatprep.subr.bf16.mxu0 0
    %1297 = vmatpush1.bf16.xpose.msra.mxu0 0
    %1298 = vmatprep.subr.bf16.mxu0 0
    %1299 = vmatpush1.bf16.xpose.msra.mxu0 0
    %1300 = vmatprep.subr.bf16.mxu0 0
    %1301 = vmatpush1.bf16.xpose.msra.mxu0 0
    %1302 = vmatprep.subr.bf16.mxu0 0
    %1303 = vmatpush1.bf16.xpose.msra.mxu0 0
    %1304 = vmatprep.subr.bf16.mxu0 0
    %1305 = vmatpush1.bf16.xpose.msra.mxu0 0
    %1306 = vmatprep.mubr.bf16.mxu0 0
    %1307 = vmatmul.mubr.bf16.gmra.mrb[0].mxu0 %v1269
    %v1308 = vpop.f32.mrb[0].mxu0
    %v1309 = vadd.f32 0.0, %v1308
    %v1310 = vpop.f32.mrb[0].mxu0
    %v1311 = vpop.f32.mrb[0].mxu0
    %v1312 = vadd.f32 0.0, %v1311
    %v1313 = vpop.f32.mrb[0].mxu0
    %1314 = vdwg.mxu0
    %v1315 = vsel %vm542, %v1258, -inf
    %1316 = vmax.xlane.f32.xlu0 %v1315
    %v1317 = vpop.xlane.xlu0 %1316
    %v1318 = vsel %vm542, %v1261, -inf
    %1319 = vmax.xlane.f32.xlu0 %v1318
    %v1320 = vpop.xlane.xlu0 %1319
    %v1321 = vsel %vm542, %v1309, -inf
    %1322 = vmax.xlane.f32.xlu0 %v1321
    %v1323 = vpop.xlane.xlu0 %1322
    %v1324 = vsel %vm542, %v1312, -inf
    %1325 = vmax.xlane.f32.xlu0 %v1324
    %v1326 = vpop.xlane.xlu0 %1325
    %v1327 = vsub.f32 %v1258, %v1317
    %v1328 = vsub.f32 %v1261, %v1320
    %v1329 = vsub.f32 %v1309, %v1323
    %v1330 = vsub.f32 %v1312, %v1326
    %v1331 = vmul.f32 %v1327, 1.442695
    %v1332 = vpow.pop %v1331
    %v1333 = vmul.f32 %v1328, 1.442695
    %v1334 = vpow.pop %v1333
    %v1335 = vmul.f32 %v1329, 1.442695
    %v1336 = vpow.pop %v1335
    %v1337 = vmul.f32 %v1330, 1.442695
    %v1338 = vpow.pop %v1337
    %v1339 = vsel %vm542, %v1332, 0.0
    %1340 = vadd.xlane.f32.xlu0 %v1339
    %v1341 = vpop.xlane.xlu0 %1340
    %v1342 = vsel %vm542, %v1334, 0.0
    %1343 = vadd.xlane.f32.xlu0 %v1342
    %v1344 = vpop.xlane.xlu0 %1343
    %v1345 = vsel %vm542, %v1336, 0.0
    %1346 = vadd.xlane.f32.xlu0 %v1345
    %v1347 = vpop.xlane.xlu0 %1346
    %v1348 = vsel %vm542, %v1338, 0.0
    %1349 = vadd.xlane.f32.xlu0 %v1348
    %v1350 = vpop.xlane.xlu0 %1349
    %v1351 = vrcp.pop %v1341
    %v1352 = vmul.f32 %v1332, %v1351
    %v1353 = vrcp.pop %v1344
    %v1354 = vmul.f32 %v1334, %v1353
    %v1355 = vrcp.pop %v1347
    %v1356 = vmul.f32 %v1336, %v1355
    %v1357 = vrcp.pop %v1350
    %v1358 = vmul.f32 %v1338, %v1357
    %v1359 = vpack.c.bf16 %v1354, %v1352
    %v1360 = vpack.c.bf16 %v1358, %v1356
    %1361 = vrot.lane.b32.xlu0 %v443, 32
    %v1362 = vpop.permute.xlu0 %1361
    %v1365 = vsel %vm542, %v1359, 0
    %1367 = vmatprep.subr.bf16.mxu0 0
    %1368 = vmatpush1.bf16.msra.mxu0 %v1362
    %1369 = vmatprep.subr.bf16.mxu0 0
    %1370 = vmatpush1.bf16.msra.mxu0 0
    %1371 = vmatprep.subr.bf16.mxu0 0
    %1372 = vmatpush1.bf16.msra.mxu0 0
    %1373 = vmatprep.subr.bf16.mxu0 0
    %1374 = vmatpush1.bf16.msra.mxu0 0
    %1375 = vmatprep.subr.bf16.mxu0 0
    %1376 = vmatpush1.bf16.msra.mxu0 0
    %1377 = vmatprep.subr.bf16.mxu0 0
    %1378 = vmatpush1.bf16.msra.mxu0 0
    %1379 = vmatprep.subr.bf16.mxu0 0
    %1380 = vmatpush1.bf16.msra.mxu0 0
    %1381 = vmatprep.subr.bf16.mxu0 0
    %1382 = vmatpush1.bf16.msra.mxu0 0
    %1383 = vmatprep.subr.bf16.mxu0 0
    %1384 = vmatpush1.bf16.msra.mxu0 0
    %1385 = vmatprep.subr.bf16.mxu0 0
    %1386 = vmatpush1.bf16.msra.mxu0 0
    %1387 = vmatprep.subr.bf16.mxu0 0
    %1388 = vmatpush1.bf16.msra.mxu0 0
    %1389 = vmatprep.subr.bf16.mxu0 0
    %1390 = vmatpush1.bf16.msra.mxu0 0
    %1391 = vmatprep.subr.bf16.mxu0 0
    %1392 = vmatpush1.bf16.msra.mxu0 0
    %1393 = vmatprep.subr.bf16.mxu0 0
    %1394 = vmatpush1.bf16.msra.mxu0 0
    %1395 = vmatprep.subr.bf16.mxu0 0
    %1396 = vmatpush1.bf16.msra.mxu0 0
    %1397 = vmatprep.subr.bf16.mxu0 0
    %1398 = vmatpush1.bf16.msra.mxu0 0
    %1399 = vmatprep.mubr.bf16.mxu0 0
    %1400 = vmatmul.mubr.bf16.gmra.mrb[0].mxu0 %v1365
    %v1401 = vpop.f32.mrb[0].mxu0
    %v1402 = vadd.f32 0.0, %v1401
    %v1403 = vpop.f32.mrb[0].mxu0
    %v1404 = vpop.f32.mrb[0].mxu0
    %v1405 = vadd.f32 0.0, %v1404
    %v1406 = vpop.f32.mrb[0].mxu0
    %1407 = vdwg.mxu0
    %1408 = vrot.lane.b32.xlu0 %v446, 32
    %v1409 = vpop.permute.xlu0 %1408
    %v1412 = vsel %vm542, %v1360, 0
    %1414 = vmatprep.subr.bf16.mxu0 0
    %1415 = vmatpush1.bf16.msra.mxu0 %v1409
    %1416 = vmatprep.subr.bf16.mxu0 0
    %1417 = vmatpush1.bf16.msra.mxu0 0
    %1418 = vmatprep.subr.bf16.mxu0 0
    %1419 = vmatpush1.bf16.msra.mxu0 0
    %1420 = vmatprep.subr.bf16.mxu0 0
    %1421 = vmatpush1.bf16.msra.mxu0 0
    %1422 = vmatprep.subr.bf16.mxu0 0
    %1423 = vmatpush1.bf16.msra.mxu0 0
    %1424 = vmatprep.subr.bf16.mxu0 0
    %1425 = vmatpush1.bf16.msra.mxu0 0
    %1426 = vmatprep.subr.bf16.mxu0 0
    %1427 = vmatpush1.bf16.msra.mxu0 0
    %1428 = vmatprep.subr.bf16.mxu0 0
    %1429 = vmatpush1.bf16.msra.mxu0 0
    %1430 = vmatprep.subr.bf16.mxu0 0
    %1431 = vmatpush1.bf16.msra.mxu0 0
    %1432 = vmatprep.subr.bf16.mxu0 0
    %1433 = vmatpush1.bf16.msra.mxu0 0
    %1434 = vmatprep.subr.bf16.mxu0 0
    %1435 = vmatpush1.bf16.msra.mxu0 0
    %1436 = vmatprep.subr.bf16.mxu0 0
    %1437 = vmatpush1.bf16.msra.mxu0 0
    %1438 = vmatprep.subr.bf16.mxu0 0
    %1439 = vmatpush1.bf16.msra.mxu0 0
    %1440 = vmatprep.subr.bf16.mxu0 0
    %1441 = vmatpush1.bf16.msra.mxu0 0
    %1442 = vmatprep.subr.bf16.mxu0 0
    %1443 = vmatpush1.bf16.msra.mxu0 0
    %1444 = vmatprep.subr.bf16.mxu0 0
    %1445 = vmatpush1.bf16.msra.mxu0 0
    %1446 = vmatprep.mubr.bf16.mxu0 0
    %1447 = vmatmul.mubr.bf16.gmra.mrb[0].mxu0 %v1412
    %v1448 = vpop.f32.mrb[0].mxu0
    %v1449 = vadd.f32 0.0, %v1448
    %v1450 = vpop.f32.mrb[0].mxu0
    %v1451 = vpop.f32.mrb[0].mxu0
    %v1452 = vadd.f32 0.0, %v1451
    %v1453 = vpop.f32.mrb[0].mxu0
    %1454 = vdwg.mxu0
    %1459 = vrot.lane.b32.xlu0 %v1402, 96
    %v1460 = vpop.permute.xlu0 %1459
    %1461 = vrot.lane.b32.xlu0 %v1405, 96
    %v1462 = vpop.permute.xlu0 %1461
    %1463 = vrot.lane.b32.xlu0 %v1449, 96
    %v1464 = vpop.permute.xlu0 %1463
    %1465 = vrot.lane.b32.xlu0 %v1452, 96
    %v1466 = vpop.permute.xlu0 %1465
    %vm1471 = vcmask 1048320
    %1472 = vst.msk [vmem:[#allocation2] sm:$0xff] %vm1471, %v1460
    %1473 = vst.msk [vmem:[#allocation2 + $0x8] sm:$0xff] %vm1471, %v1462
    %1474 = vst.msk [vmem:[#allocation2 + $0x10] sm:$0xff] %vm1471, %v1464
    %1475 = vst.msk [vmem:[#allocation2 + $0x18] sm:$0xff] %vm1471, %v1466
    %v1476 = vld [vmem:[#allocation2] sm:$0xff]
    %v1477 = vld [vmem:[#allocation2 + $0x8] sm:$0xff]
    %v1478 = vld [vmem:[#allocation2 + $0x10] sm:$0xff]
    %v1479 = vld [vmem:[#allocation2 + $0x18] sm:$0xff]
    %v1480 = vpack.c.bf16 %v1477, %v1476
    %v1481 = vpack.c.bf16 %v1479, %v1478
    %v1482 = vld [vmem:[#allocation6] sm:$0xf]
    %v1483 = vld [vmem:[#allocation6 + $0x4] sm:$0xf]
    %v1484 = vld [vmem:[#allocation6 + $0x8] sm:$0xf]
    %v1485 = vld [vmem:[#allocation6 + $0xc] sm:$0xf]
    %v1486 = vld [vmem:[#allocation6 + $0x10] sm:$0xf]
    %v1487 = vld [vmem:[#allocation6 + $0x14] sm:$0xf]
    %v1488 = vld [vmem:[#allocation6 + $0x18] sm:$0xf]
    %v1489 = vld [vmem:[#allocation6 + $0x1c] sm:$0xf]
    %v1490 = vld [vmem:[#allocation6 + $0x20] sm:$0xf]
    %v1491 = vld [vmem:[#allocation6 + $0x24] sm:$0xf]
    %v1492 = vld [vmem:[#allocation6 + $0x28] sm:$0xf]
    %v1493 = vld [vmem:[#allocation6 + $0x2c] sm:$0xf]
    %v1494 = vld [vmem:[#allocation6 + $0x30] sm:$0xf]
    %v1495 = vld [vmem:[#allocation6 + $0x34] sm:$0xf]
    %v1496 = vld [vmem:[#allocation6 + $0x38] sm:$0xf]
    %v1497 = vld [vmem:[#allocation6 + $0x3c] sm:$0xf]
    %v1498 = vld [vmem:[%s5] sm:$0x1]
    %v1500 = vlaneseq
    %v1501 = vshrl.u32 %v1500, 7
    %v1502 = vsub.s32 0, %v1501
    %v1503 = vrot.slane %v1498, %v1502
    %v1521 = vunpack.c.l.b16 %v1482
    %v1522 = vunpack.c.l.b16 %v1483
    %v1523 = vunpack.c.l.b16 %v1484
    %v1524 = vunpack.c.l.b16 %v1485
    %v1525 = vunpack.c.l.b16 %v1486
    %v1526 = vunpack.c.l.b16 %v1487
    %v1527 = vunpack.c.l.b16 %v1488
    %v1528 = vunpack.c.l.b16 %v1489
    %v1529 = vunpack.c.l.b16 %v1490
    %v1530 = vunpack.c.l.b16 %v1491
    %v1531 = vunpack.c.l.b16 %v1492
    %v1532 = vunpack.c.l.b16 %v1493
    %v1533 = vunpack.c.l.b16 %v1494
    %v1534 = vunpack.c.l.b16 %v1495
    %v1535 = vunpack.c.l.b16 %v1496
    %v1536 = vunpack.c.l.b16 %v1497
    %v1537 = vpack.c.b16 %v1522, %v1521
    %v1538 = vpack.c.b16 %v1524, %v1523
    %v1539 = vpack.c.b16 %v1526, %v1525
    %v1540 = vpack.c.b16 %v1528, %v1527
    %v1541 = vpack.c.b16 %v1530, %v1529
    %v1542 = vpack.c.b16 %v1532, %v1531
    %v1543 = vpack.c.b16 %v1534, %v1533
    %v1544 = vpack.c.b16 %v1536, %v1535
    %1553 = vmatprep.subr.bf16.mxu0 0
    %1554 = vmatpush1.bf16.msra.mxu0 %v1537
    %1555 = vmatprep.subr.bf16.mxu0 0
    %1556 = vmatpush1.bf16.msra.mxu0 %v1538
    %1557 = vmatprep.subr.bf16.mxu0 0
    %1558 = vmatpush1.bf16.msra.mxu0 %v1539
    %1559 = vmatprep.subr.bf16.mxu0 0
    %1560 = vmatpush1.bf16.msra.mxu0 %v1540
    %1561 = vmatprep.subr.bf16.mxu0 0
    %1562 = vmatpush1.bf16.msra.mxu0 %v1541
    %1563 = vmatprep.subr.bf16.mxu0 0
    %1564 = vmatpush1.bf16.msra.mxu0 %v1542
    %1565 = vmatprep.subr.bf16.mxu0 0
    %1566 = vmatpush1.bf16.msra.mxu0 %v1543
    %1567 = vmatprep.subr.bf16.mxu0 0
    %1568 = vmatpush1.bf16.msra.mxu0 %v1544
    %1569 = vmatprep.subr.bf16.mxu0 0
    %1570 = vmatpush1.bf16.msra.mxu0 0
    %1571 = vmatprep.subr.bf16.mxu0 0
    %1572 = vmatpush1.bf16.msra.mxu0 0
    %1573 = vmatprep.subr.bf16.mxu0 0
    %1574 = vmatpush1.bf16.msra.mxu0 0
    %1575 = vmatprep.subr.bf16.mxu0 0
    %1576 = vmatpush1.bf16.msra.mxu0 0
    %1577 = vmatprep.subr.bf16.mxu0 0
    %1578 = vmatpush1.bf16.msra.mxu0 0
    %1579 = vmatprep.subr.bf16.mxu0 0
    %1580 = vmatpush1.bf16.msra.mxu0 0
    %1581 = vmatprep.subr.bf16.mxu0 0
    %1582 = vmatpush1.bf16.msra.mxu0 0
    %1583 = vmatprep.subr.bf16.mxu0 0
    %1584 = vmatpush1.bf16.msra.mxu0 0
    %1585 = vmatprep.mubr.bf16.mxu0 0
    %1586 = vmatmul.mubr.bf16.gmra.mrb[0].mxu0 %v1480
    %v1587 = vpop.f32.mrb[0].mxu0
    %v1588 = vadd.f32 %v1503, %v1587
    %v1589 = vpop.f32.mrb[0].mxu0
    %v1590 = vpop.f32.mrb[0].mxu0
    %v1591 = vadd.f32 %v1503, %v1590
    %v1592 = vpop.f32.mrb[0].mxu0
    %1593 = vmatprep.mubr.bf16.mxu0 0
    %1594 = vmatmul.mubr.bf16.gmra.mrb[0].mxu0 %v1481
    %v1595 = vpop.f32.mrb[0].mxu0
    %v1596 = vadd.f32 %v1503, %v1595
    %v1597 = vpop.f32.mrb[0].mxu0
    %v1598 = vpop.f32.mrb[0].mxu0
    %v1599 = vadd.f32 %v1503, %v1598
    %v1600 = vpop.f32.mrb[0].mxu0
    %1601 = vdwg.mxu0
    %v1602 = vadd.f32 %v173, %v1588
    %v1603 = vadd.f32 %v174, %v1591
    %v1604 = vadd.f32 %v175, %v1596
    %v1605 = vadd.f32 %v176, %v1599
    %v1606 = vld [vmem:[%s6] sm:$0x1]
    %v1607 = vld [vmem:[%s7] sm:$0x1]
    %v1608 = vadd.f32 %v1602, %v1603
    %v1609 = vadd.f32 %v1608, %v1604
    %v1610 = vadd.f32 %v1609, %v1605
    %v1611 = vrot.slane %v1610, 4
    %v1612 = vadd.f32 %v1610, %v1611
    %v1613 = vrot.slane %v1612, 2
    %v1614 = vadd.f32 %v1612, %v1613
    %v1615 = vrot.slane %v1614, 1
    %v1616 = vadd.f32 %v1614, %v1615
    %v1617 = vmul.f32 %v1616, 0.03125
    %v1618 = vsub.f32 %v1602, %v1617
    %v1619 = vsub.f32 %v1603, %v1617
    %v1620 = vsub.f32 %v1604, %v1617
    %v1621 = vsub.f32 %v1605, %v1617
    %v1622 = vmul.f32 %v1618, %v1618
    %v1623 = vmul.f32 %v1619, %v1619
    %v1624 = vmul.f32 %v1620, %v1620
    %v1625 = vmul.f32 %v1621, %v1621
    %v1626 = vadd.f32 %v1622, %v1623
    %v1627 = vadd.f32 %v1626, %v1624
    %v1628 = vadd.f32 %v1627, %v1625
    %v1629 = vrot.slane %v1628, 4
    %v1630 = vadd.f32 %v1628, %v1629
    %v1631 = vrot.slane %v1630, 2
    %v1632 = vadd.f32 %v1630, %v1631
    %v1633 = vrot.slane %v1632, 1
    %v1634 = vadd.f32 %v1632, %v1633
    %v1635 = vmul.f32 %v1634, 0.03125
    %v1636 = vadd.f32 %v1635, 1e-05
    %v1637 = vrsqrt.pop %v1636
    %v1638 = vmul.f32 %v1637, %v1606
    %v1639 = vlaneseq
    %v1640 = vshrl.u32 %v1639, 7
    %v1641 = vsub.s32 0, %v1640
    %v1642 = vrot.slane %v1638, %v1641
    %v1643 = vmul.f32 %v1618, %v1642
    %v1644 = vmul.f32 %v1619, %v1642
    %v1645 = vmul.f32 %v1620, %v1642
    %v1646 = vmul.f32 %v1621, %v1642
    %v1648 = vlaneseq
    %v1649 = vshrl.u32 %v1648, 7
    %v1650 = vsub.s32 0, %v1649
    %v1651 = vrot.slane %v1607, %v1650
    %v1653 = vadd.f32 %v1643, %v1651
    %v1654 = vadd.f32 %v1644, %v1651
    %v1655 = vadd.f32 %v1645, %v1651
    %v1656 = vadd.f32 %v1646, %v1651
    %v1657 = vpack.c.bf16 %v1654, %v1653
    %v1658 = vpack.c.bf16 %v1656, %v1655
    %v1659 = vld [vmem:[#allocation8] sm:$0xff]
    %v1660 = vld [vmem:[#allocation8 + $0x8] sm:$0xff]
    %v1661 = vld [vmem:[#allocation8 + $0x10] sm:$0xff]
    %v1662 = vld [vmem:[#allocation8 + $0x18] sm:$0xff]
    %v1663 = vld [vmem:[#allocation8 + $0x20] sm:$0xff]
    %v1664 = vld [vmem:[#allocation8 + $0x28] sm:$0xff]
    %v1665 = vld [vmem:[#allocation8 + $0x30] sm:$0xff]
    %v1666 = vld [vmem:[#allocation8 + $0x38] sm:$0xff]
    %v1667 = vld [vmem:[#allocation8 + $0x40] sm:$0xff]
    %v1668 = vld [vmem:[#allocation8 + $0x48] sm:$0xff]
    %v1669 = vld [vmem:[#allocation8 + $0x50] sm:$0xff]
    %v1670 = vld [vmem:[#allocation8 + $0x58] sm:$0xff]
    %v1671 = vld [vmem:[#allocation8 + $0x60] sm:$0xff]
    %v1672 = vld [vmem:[#allocation8 + $0x68] sm:$0xff]
    %v1673 = vld [vmem:[#allocation8 + $0x70] sm:$0xff]
    %v1674 = vld [vmem:[#allocation8 + $0x78] sm:$0xff]
    %v1675 = vld [vmem:[%s9] sm:$0x3]
    %v1677 = vlaneseq
    %v1678 = vshrl.u32 %v1677, 7
    %v1679 = vsub.s32 0, %v1678
    %v1680 = vrot.slane %v1675, %v1679
    %v1681 = vlaneseq
    %v1682 = vshrl.u32 %v1681, 7
    %v1683 = vsub.s32 1, %v1682
    %v1684 = vrot.slane %v1675, %v1683
    %v1703 = vunpack.c.l.b16 %v1659
    %v1704 = vunpack.c.h.b16 %v1659
    %v1705 = vunpack.c.l.b16 %v1660
    %v1706 = vunpack.c.h.b16 %v1660
    %v1707 = vunpack.c.l.b16 %v1661
    %v1708 = vunpack.c.h.b16 %v1661
    %v1709 = vunpack.c.l.b16 %v1662
    %v1710 = vunpack.c.h.b16 %v1662
    %v1711 = vunpack.c.l.b16 %v1663
    %v1712 = vunpack.c.h.b16 %v1663
    %v1713 = vunpack.c.l.b16 %v1664
    %v1714 = vunpack.c.h.b16 %v1664
    %v1715 = vunpack.c.l.b16 %v1665
    %v1716 = vunpack.c.h.b16 %v1665
    %v1717 = vunpack.c.l.b16 %v1666
    %v1718 = vunpack.c.h.b16 %v1666
    %v1719 = vunpack.c.l.b16 %v1667
    %v1720 = vunpack.c.h.b16 %v1667
    %v1721 = vunpack.c.l.b16 %v1668
    %v1722 = vunpack.c.h.b16 %v1668
    %v1723 = vunpack.c.l.b16 %v1669
    %v1724 = vunpack.c.h.b16 %v1669
    %v1725 = vunpack.c.l.b16 %v1670
    %v1726 = vunpack.c.h.b16 %v1670
    %v1727 = vunpack.c.l.b16 %v1671
    %v1728 = vunpack.c.h.b16 %v1671
    %v1729 = vunpack.c.l.b16 %v1672
    %v1730 = vunpack.c.h.b16 %v1672
    %v1731 = vunpack.c.l.b16 %v1673
    %v1732 = vunpack.c.h.b16 %v1673
    %v1733 = vunpack.c.l.b16 %v1674
    %v1734 = vunpack.c.h.b16 %v1674
    %v1735 = vpack.c.b16 %v1705, %v1703
    %v1736 = vpack.c.b16 %v1706, %v1704
    %v1737 = vpack.c.b16 %v1709, %v1707
    %v1738 = vpack.c.b16 %v1710, %v1708
    %v1739 = vpack.c.b16 %v1713, %v1711
    %v1740 = vpack.c.b16 %v1714, %v1712
    %v1741 = vpack.c.b16 %v1717, %v1715
    %v1742 = vpack.c.b16 %v1718, %v1716
    %v1743 = vpack.c.b16 %v1721, %v1719
    %v1744 = vpack.c.b16 %v1722, %v1720
    %v1745 = vpack.c.b16 %v1725, %v1723
    %v1746 = vpack.c.b16 %v1726, %v1724
    %v1747 = vpack.c.b16 %v1729, %v1727
    %v1748 = vpack.c.b16 %v1730, %v1728
    %v1749 = vpack.c.b16 %v1733, %v1731
    %v1750 = vpack.c.b16 %v1734, %v1732
    %1767 = vmatprep.subr.bf16.mxu0 %v1736
    %1768 = vmatpush1.bf16.msra.mxu0 %v1735
    %1769 = vmatprep.subr.bf16.mxu0 %v1738
    %1770 = vmatpush1.bf16.msra.mxu0 %v1737
    %1771 = vmatprep.subr.bf16.mxu0 %v1740
    %1772 = vmatpush1.bf16.msra.mxu0 %v1739
    %1773 = vmatprep.subr.bf16.mxu0 %v1742
    %1774 = vmatpush1.bf16.msra.mxu0 %v1741
    %1775 = vmatprep.subr.bf16.mxu0 %v1744
    %1776 = vmatpush1.bf16.msra.mxu0 %v1743
    %1777 = vmatprep.subr.bf16.mxu0 %v1746
    %1778 = vmatpush1.bf16.msra.mxu0 %v1745
    %1779 = vmatprep.subr.bf16.mxu0 %v1748
    %1780 = vmatpush1.bf16.msra.mxu0 %v1747
    %1781 = vmatprep.subr.bf16.mxu0 %v1750
    %1782 = vmatpush1.bf16.msra.mxu0 %v1749
    %1783 = vmatprep.subr.bf16.mxu0 0
    %1784 = vmatpush1.bf16.msra.mxu0 0
    %1785 = vmatprep.subr.bf16.mxu0 0
    %1786 = vmatpush1.bf16.msra.mxu0 0
    %1787 = vmatprep.subr.bf16.mxu0 0
    %1788 = vmatpush1.bf16.msra.mxu0 0
    %1789 = vmatprep.subr.bf16.mxu0 0
    %1790 = vmatpush1.bf16.msra.mxu0 0
    %1791 = vmatprep.subr.bf16.mxu0 0
    %1792 = vmatpush1.bf16.msra.mxu0 0
    %1793 = vmatprep.subr.bf16.mxu0 0
    %1794 = vmatpush1.bf16.msra.mxu0 0
    %1795 = vmatprep.subr.bf16.mxu0 0
    %1796 = vmatpush1.bf16.msra.mxu0 0
    %1797 = vmatprep.subr.bf16.mxu0 0
    %1798 = vmatpush1.bf16.msra.mxu0 0
    %1799 = vmatprep.mubr.bf16.mxu0 0
    %1800 = vmatmul.mubr.bf16.gmra.mrb[0].mxu0 %v1657
    %v1801 = vpop.f32.mrb[0].mxu0
    %v1802 = vadd.f32 %v1680, %v1801
    %v1803 = vpop.f32.mrb[0].mxu0
    %v1804 = vadd.f32 %v1684, %v1803
    %v1805 = vpop.f32.mrb[0].mxu0
    %v1806 = vadd.f32 %v1680, %v1805
    %v1807 = vpop.f32.mrb[0].mxu0
    %v1808 = vadd.f32 %v1684, %v1807
    %1809 = vmatprep.mubr.bf16.mxu0 0
    %1810 = vmatmul.mubr.bf16.gmra.mrb[0].mxu0 %v1658
    %v1811 = vpop.f32.mrb[0].mxu0
    %v1812 = vadd.f32 %v1680, %v1811
    %v1813 = vpop.f32.mrb[0].mxu0
    %v1814 = vadd.f32 %v1684, %v1813
    %v1815 = vpop.f32.mrb[0].mxu0
    %v1816 = vadd.f32 %v1680, %v1815
    %v1817 = vpop.f32.mrb[0].mxu0
    %v1818 = vadd.f32 %v1684, %v1817
    %1819 = vdwg.mxu0
    %v1820 = vmax.f32 %v1802, 0.0
    %v1821 = vmax.f32 %v1804, 0.0
    %v1822 = vmax.f32 %v1806, 0.0
    %v1823 = vmax.f32 %v1808, 0.0
    %v1824 = vmax.f32 %v1812, 0.0
    %v1825 = vmax.f32 %v1814, 0.0
    %v1826 = vmax.f32 %v1816, 0.0
    %v1827 = vmax.f32 %v1818, 0.0
    %v1828 = vpack.c.bf16 %v1822, %v1820
    %v1829 = vpack.c.bf16 %v1823, %v1821
    %v1830 = vpack.c.bf16 %v1826, %v1824
    %v1831 = vpack.c.bf16 %v1827, %v1825
    %v1832 = vld [vmem:[#allocation9] sm:$0xf]
    %v1833 = vld [vmem:[#allocation9 + $0x4] sm:$0xf]
    %v1834 = vld [vmem:[#allocation9 + $0x8] sm:$0xf]
    %v1835 = vld [vmem:[#allocation9 + $0xc] sm:$0xf]
    %v1836 = vld [vmem:[#allocation9 + $0x10] sm:$0xf]
    %v1837 = vld [vmem:[#allocation9 + $0x14] sm:$0xf]
    %v1838 = vld [vmem:[#allocation9 + $0x18] sm:$0xf]
    %v1839 = vld [vmem:[#allocation9 + $0x1c] sm:$0xf]
    %v1840 = vld [vmem:[#allocation9 + $0x20] sm:$0xf]
    %v1841 = vld [vmem:[#allocation9 + $0x24] sm:$0xf]
    %v1842 = vld [vmem:[#allocation9 + $0x28] sm:$0xf]
    %v1843 = vld [vmem:[#allocation9 + $0x2c] sm:$0xf]
    %v1844 = vld [vmem:[#allocation9 + $0x30] sm:$0xf]
    %v1845 = vld [vmem:[#allocation9 + $0x34] sm:$0xf]
    %v1846 = vld [vmem:[#allocation9 + $0x38] sm:$0xf]
    %v1847 = vld [vmem:[#allocation9 + $0x3c] sm:$0xf]
    %v1848 = vld [vmem:[#allocation9 + $0x40] sm:$0xf]
    %v1849 = vld [vmem:[#allocation9 + $0x44] sm:$0xf]
    %v1850 = vld [vmem:[#allocation9 + $0x48] sm:$0xf]
    %v1851 = vld [vmem:[#allocation9 + $0x4c] sm:$0xf]
    %v1852 = vld [vmem:[#allocation9 + $0x50] sm:$0xf]
    %v1853 = vld [vmem:[#allocation9 + $0x54] sm:$0xf]
    %v1854 = vld [vmem:[#allocation9 + $0x58] sm:$0xf]
    %v1855 = vld [vmem:[#allocation9 + $0x5c] sm:$0xf]
    %v1856 = vld [vmem:[#allocation9 + $0x60] sm:$0xf]
    %v1857 = vld [vmem:[#allocation9 + $0x64] sm:$0xf]
    %v1858 = vld [vmem:[#allocation9 + $0x68] sm:$0xf]
    %v1859 = vld [vmem:[#allocation9 + $0x6c] sm:$0xf]
    %v1860 = vld [vmem:[#allocation9 + $0x70] sm:$0xf]
    %v1861 = vld [vmem:[#allocation9 + $0x74] sm:$0xf]
    %v1862 = vld [vmem:[#allocation9 + $0x78] sm:$0xf]
    %v1863 = vld [vmem:[#allocation9 + $0x7c] sm:$0xf]
    %v1864 = vld [vmem:[%s11] sm:$0x1]
    %v1866 = vlaneseq
    %v1867 = vshrl.u32 %v1866, 7
    %v1868 = vsub.s32 0, %v1867
    %v1869 = vrot.slane %v1864, %v1868
    %v1903 = vunpack.c.l.b16 %v1832
    %v1904 = vunpack.c.l.b16 %v1833
    %v1905 = vunpack.c.l.b16 %v1834
    %v1906 = vunpack.c.l.b16 %v1835
    %v1907 = vunpack.c.l.b16 %v1836
    %v1908 = vunpack.c.l.b16 %v1837
    %v1909 = vunpack.c.l.b16 %v1838
    %v1910 = vunpack.c.l.b16 %v1839
    %v1911 = vunpack.c.l.b16 %v1840
    %v1912 = vunpack.c.l.b16 %v1841
    %v1913 = vunpack.c.l.b16 %v1842
    %v1914 = vunpack.c.l.b16 %v1843
    %v1915 = vunpack.c.l.b16 %v1844
    %v1916 = vunpack.c.l.b16 %v1845
    %v1917 = vunpack.c.l.b16 %v1846
    %v1918 = vunpack.c.l.b16 %v1847
    %v1919 = vunpack.c.l.b16 %v1848
    %v1920 = vunpack.c.l.b16 %v1849
    %v1921 = vunpack.c.l.b16 %v1850
    %v1922 = vunpack.c.l.b16 %v1851
    %v1923 = vunpack.c.l.b16 %v1852
    %v1924 = vunpack.c.l.b16 %v1853
    %v1925 = vunpack.c.l.b16 %v1854
    %v1926 = vunpack.c.l.b16 %v1855
    %v1927 = vunpack.c.l.b16 %v1856
    %v1928 = vunpack.c.l.b16 %v1857
    %v1929 = vunpack.c.l.b16 %v1858
    %v1930 = vunpack.c.l.b16 %v1859
    %v1931 = vunpack.c.l.b16 %v1860
    %v1932 = vunpack.c.l.b16 %v1861
    %v1933 = vunpack.c.l.b16 %v1862
    %v1934 = vunpack.c.l.b16 %v1863
    %v1935 = vpack.c.b16 %v1904, %v1903
    %v1936 = vpack.c.b16 %v1906, %v1905
    %v1937 = vpack.c.b16 %v1908, %v1907
    %v1938 = vpack.c.b16 %v1910, %v1909
    %v1939 = vpack.c.b16 %v1912, %v1911
    %v1940 = vpack.c.b16 %v1914, %v1913
    %v1941 = vpack.c.b16 %v1916, %v1915
    %v1942 = vpack.c.b16 %v1918, %v1917
    %v1943 = vpack.c.b16 %v1920, %v1919
    %v1944 = vpack.c.b16 %v1922, %v1921
    %v1945 = vpack.c.b16 %v1924, %v1923
    %v1946 = vpack.c.b16 %v1926, %v1925
    %v1947 = vpack.c.b16 %v1928, %v1927
    %v1948 = vpack.c.b16 %v1930, %v1929
    %v1949 = vpack.c.b16 %v1932, %v1931
    %v1950 = vpack.c.b16 %v1934, %v1933
    %1967 = vmatprep.subr.bf16.mxu0 0
    %1968 = vmatpush1.bf16.msra.mxu0 %v1935
    %1969 = vmatprep.subr.bf16.mxu0 0
    %1970 = vmatpush1.bf16.msra.mxu0 %v1936
    %1971 = vmatprep.subr.bf16.mxu0 0
    %1972 = vmatpush1.bf16.msra.mxu0 %v1937
    %1973 = vmatprep.subr.bf16.mxu0 0
    %1974 = vmatpush1.bf16.msra.mxu0 %v1938
    %1975 = vmatprep.subr.bf16.mxu0 0
    %1976 = vmatpush1.bf16.msra.mxu0 %v1939
    %1977 = vmatprep.subr.bf16.mxu0 0
    %1978 = vmatpush1.bf16.msra.mxu0 %v1940
    %1979 = vmatprep.subr.bf16.mxu0 0
    %1980 = vmatpush1.bf16.msra.mxu0 %v1941
    %1981 = vmatprep.subr.bf16.mxu0 0
    %1982 = vmatpush1.bf16.msra.mxu0 %v1942
    %1983 = vmatprep.subr.bf16.mxu0 0
    %1984 = vmatpush1.bf16.msra.mxu0 %v1943
    %1985 = vmatprep.subr.bf16.mxu0 0
    %1986 = vmatpush1.bf16.msra.mxu0 %v1944
    %1987 = vmatprep.subr.bf16.mxu0 0
    %1988 = vmatpush1.bf16.msra.mxu0 %v1945
    %1989 = vmatprep.subr.bf16.mxu0 0
    %1990 = vmatpush1.bf16.msra.mxu0 %v1946
    %1991 = vmatprep.subr.bf16.mxu0 0
    %1992 = vmatpush1.bf16.msra.mxu0 %v1947
    %1993 = vmatprep.subr.bf16.mxu0 0
    %1994 = vmatpush1.bf16.msra.mxu0 %v1948
    %1995 = vmatprep.subr.bf16.mxu0 0
    %1996 = vmatpush1.bf16.msra.mxu0 %v1949
    %1997 = vmatprep.subr.bf16.mxu0 0
    %1998 = vmatpush1.bf16.msra.mxu0 %v1950
    %1999 = vmatprep.mubr.bf16.mxu0 %v1829
    %2000 = vmatmul.mubr.bf16.gmra.mrb[0].mxu0 %v1828
    %v2001 = vpop.f32.mrb[0].mxu0
    %v2002 = vadd.f32 %v1869, %v2001
    %v2003 = vpop.f32.mrb[0].mxu0
    %v2004 = vpop.f32.mrb[0].mxu0
    %v2005 = vadd.f32 %v1869, %v2004
    %v2006 = vpop.f32.mrb[0].mxu0
    %2007 = vmatprep.mubr.bf16.mxu0 %v1831
    %2008 = vmatmul.mubr.bf16.gmra.mrb[0].mxu0 %v1830
    %v2009 = vpop.f32.mrb[0].mxu0
    %v2010 = vadd.f32 %v1869, %v2009
    %v2011 = vpop.f32.mrb[0].mxu0
    %v2012 = vpop.f32.mrb[0].mxu0
    %v2013 = vadd.f32 %v1869, %v2012
    %v2014 = vpop.f32.mrb[0].mxu0
    %2015 = vdwg.mxu0
    %v2016 = vadd.f32 %v1653, %v2002
    %v2017 = vadd.f32 %v1654, %v2005
    %v2018 = vadd.f32 %v1655, %v2010
    %v2019 = vadd.f32 %v1656, %v2013
    %v2020 = vld [vmem:[%s12] sm:$0x1]
    %v2021 = vld [vmem:[%s13] sm:$0x1]
    %v2022 = vadd.f32 %v2016, %v2017
    %v2023 = vadd.f32 %v2022, %v2018
    %v2024 = vadd.f32 %v2023, %v2019
    %v2025 = vrot.slane %v2024, 4
    %v2026 = vadd.f32 %v2024, %v2025
    %v2027 = vrot.slane %v2026, 2
    %v2028 = vadd.f32 %v2026, %v2027
    %v2029 = vrot.slane %v2028, 1
    %v2030 = vadd.f32 %v2028, %v2029
    %v2031 = vmul.f32 %v2030, 0.03125
    %v2032 = vsub.f32 %v2016, %v2031
    %v2033 = vsub.f32 %v2017, %v2031
    %v2034 = vsub.f32 %v2018, %v2031
    %v2035 = vsub.f32 %v2019, %v2031
    %v2036 = vmul.f32 %v2032, %v2032
    %v2037 = vmul.f32 %v2033, %v2033
    %v2038 = vmul.f32 %v2034, %v2034
    %v2039 = vmul.f32 %v2035, %v2035
    %v2040 = vadd.f32 %v2036, %v2037
    %v2041 = vadd.f32 %v2040, %v2038
    %v2042 = vadd.f32 %v2041, %v2039
    %v2043 = vrot.slane %v2042, 4
    %v2044 = vadd.f32 %v2042, %v2043
    %v2045 = vrot.slane %v2044, 2
    %v2046 = vadd.f32 %v2044, %v2045
    %v2047 = vrot.slane %v2046, 1
    %v2048 = vadd.f32 %v2046, %v2047
    %v2049 = vmul.f32 %v2048, 0.03125
    %v2050 = vadd.f32 %v2049, 1e-05
    %v2051 = vrsqrt.pop %v2050
    %v2052 = vmul.f32 %v2051, %v2020
    %v2053 = vlaneseq
    %v2054 = vshrl.u32 %v2053, 7
    %v2055 = vsub.s32 0, %v2054
    %v2056 = vrot.slane %v2052, %v2055
    %v2057 = vmul.f32 %v2032, %v2056
    %v2058 = vmul.f32 %v2033, %v2056
    %v2059 = vmul.f32 %v2034, %v2056
    %v2060 = vmul.f32 %v2035, %v2056
    %v2062 = vlaneseq
    %v2063 = vshrl.u32 %v2062, 7
    %v2064 = vsub.s32 0, %v2063
    %v2065 = vrot.slane %v2021, %v2064
    %v2067 = vadd.f32 %v2057, %v2065
    %v2068 = vadd.f32 %v2058, %v2065
    %v2069 = vadd.f32 %v2059, %v2065
    %v2070 = vadd.f32 %v2060, %v2065
    %v2071 = vpack.c.bf16 %v2068, %v2067
    %v2072 = vpack.c.bf16 %v2070, %v2069
    %s2073 = scalar_lea.vmem [#allocation3], 192
    %v2074 = vld [vmem:[%s2073] sm:$0xff]
    %v2075 = vld [vmem:[%s2073 + $0x8] sm:$0xf]
    %v2076 = vld [vmem:[%s2073 + $0xc] sm:$0xff]
    %v2077 = vld [vmem:[%s2073 + $0x14] sm:$0xf]
    %v2078 = vld [vmem:[%s2073 + $0x18] sm:$0xff]
    %v2079 = vld [vmem:[%s2073 + $0x20] sm:$0xf]
    %v2080 = vld [vmem:[%s2073 + $0x24] sm:$0xff]
    %v2081 = vld [vmem:[%s2073 + $0x2c] sm:$0xf]
    %v2082 = vld [vmem:[%s2073 + $0x30] sm:$0xff]
    %v2083 = vld [vmem:[%s2073 + $0x38] sm:$0xf]
    %v2084 = vld [vmem:[%s2073 + $0x3c] sm:$0xff]
    %v2085 = vld [vmem:[%s2073 + $0x44] sm:$0xf]
    %v2086 = vld [vmem:[%s2073 + $0x48] sm:$0xff]
    %v2087 = vld [vmem:[%s2073 + $0x50] sm:$0xf]
    %v2088 = vld [vmem:[%s2073 + $0x54] sm:$0xff]
    %v2089 = vld [vmem:[%s2073 + $0x5c] sm:$0xf]
    %v2090 = vld [vmem:[%s2073 + $0x60] sm:$0xff]
    %v2091 = vld [vmem:[%s2073 + $0x68] sm:$0xf]
    %v2092 = vld [vmem:[%s2073 + $0x6c] sm:$0xff]
    %v2093 = vld [vmem:[%s2073 + $0x74] sm:$0xf]
    %v2094 = vld [vmem:[%s2073 + $0x78] sm:$0xff]
    %v2095 = vld [vmem:[%s2073 + $0x80] sm:$0xf]
    %v2096 = vld [vmem:[%s2073 + $0x84] sm:$0xff]
    %v2097 = vld [vmem:[%s2073 + $0x8c] sm:$0xf]
    %v2098 = vld [vmem:[%s2073 + $0x90] sm:$0xff]
    %v2099 = vld [vmem:[%s2073 + $0x98] sm:$0xf]
    %v2100 = vld [vmem:[%s2073 + $0x9c] sm:$0xff]
    %v2101 = vld [vmem:[%s2073 + $0xa4] sm:$0xf]
    %v2102 = vld [vmem:[%s2073 + $0xa8] sm:$0xff]
    %v2103 = vld [vmem:[%s2073 + $0xb0] sm:$0xf]
    %v2104 = vld [vmem:[%s2073 + $0xb4] sm:$0xff]
    %v2105 = vld [vmem:[%s2073 + $0xbc] sm:$0xf]
    %v2138 = vunpack.c.l.b16 %v2074
    %v2139 = vunpack.c.h.b16 %v2074
    %v2140 = vunpack.c.l.b16 %v2075
    %v2141 = vunpack.c.l.b16 %v2076
    %v2142 = vunpack.c.h.b16 %v2076
    %v2143 = vunpack.c.l.b16 %v2077
    %v2144 = vunpack.c.l.b16 %v2078
    %v2145 = vunpack.c.h.b16 %v2078
    %v2146 = vunpack.c.l.b16 %v2079
    %v2147 = vunpack.c.l.b16 %v2080
    %v2148 = vunpack.c.h.b16 %v2080
    %v2149 = vunpack.c.l.b16 %v2081
    %v2150 = vunpack.c.l.b16 %v2082
    %v2151 = vunpack.c.h.b16 %v2082
    %v2152 = vunpack.c.l.b16 %v2083
    %v2153 = vunpack.c.l.b16 %v2084
    %v2154 = vunpack.c.h.b16 %v2084
    %v2155 = vunpack.c.l.b16 %v2085
    %v2156 = vunpack.c.l.b16 %v2086
    %v2157 = vunpack.c.h.b16 %v2086
    %v2158 = vunpack.c.l.b16 %v2087
    %v2159 = vunpack.c.l.b16 %v2088
    %v2160 = vunpack.c.h.b16 %v2088
    %v2161 = vunpack.c.l.b16 %v2089
    %v2162 = vunpack.c.l.b16 %v2090
    %v2163 = vunpack.c.h.b16 %v2090
    %v2164 = vunpack.c.l.b16 %v2091
    %v2165 = vunpack.c.l.b16 %v2092
    %v2166 = vunpack.c.h.b16 %v2092
    %v2167 = vunpack.c.l.b16 %v2093
    %v2168 = vunpack.c.l.b16 %v2094
    %v2169 = vunpack.c.h.b16 %v2094
    %v2170 = vunpack.c.l.b16 %v2095
    %v2171 = vunpack.c.l.b16 %v2096
    %v2172 = vunpack.c.h.b16 %v2096
    %v2173 = vunpack.c.l.b16 %v2097
    %v2174 = vunpack.c.l.b16 %v2098
    %v2175 = vunpack.c.h.b16 %v2098
    %v2176 = vunpack.c.l.b16 %v2099
    %v2177 = vunpack.c.l.b16 %v2100
    %v2178 = vunpack.c.h.b16 %v2100
    %v2179 = vunpack.c.l.b16 %v2101
    %v2180 = vunpack.c.l.b16 %v2102
    %v2181 = vunpack.c.h.b16 %v2102
    %v2182 = vunpack.c.l.b16 %v2103
    %v2183 = vunpack.c.l.b16 %v2104
    %v2184 = vunpack.c.h.b16 %v2104
    %v2185 = vunpack.c.l.b16 %v2105
    %v2186 = vpack.c.b16 %v2141, %v2138
    %v2187 = vpack.c.b16 %v2142, %v2139
    %v2188 = vpack.c.b16 %v2143, %v2140
    %v2189 = vpack.c.b16 %v2147, %v2144
    %v2190 = vpack.c.b16 %v2148, %v2145
    %v2191 = vpack.c.b16 %v2149, %v2146
    %v2192 = vpack.c.b16 %v2153, %v2150
    %v2193 = vpack.c.b16 %v2154, %v2151
    %v2194 = vpack.c.b16 %v2155, %v2152
    %v2195 = vpack.c.b16 %v2159, %v2156
    %v2196 = vpack.c.b16 %v2160, %v2157
    %v2197 = vpack.c.b16 %v2161, %v2158
    %v2198 = vpack.c.b16 %v2165, %v2162
    %v2199 = vpack.c.b16 %v2166, %v2163
    %v2200 = vpack.c.b16 %v2167, %v2164
    %v2201 = vpack.c.b16 %v2171, %v2168
    %v2202 = vpack.c.b16 %v2172, %v2169
    %v2203 = vpack.c.b16 %v2173, %v2170
    %v2204 = vpack.c.b16 %v2177, %v2174
    %v2205 = vpack.c.b16 %v2178, %v2175
    %v2206 = vpack.c.b16 %v2179, %v2176
    %v2207 = vpack.c.b16 %v2183, %v2180
    %v2208 = vpack.c.b16 %v2184, %v2181
    %v2209 = vpack.c.b16 %v2185, %v2182
    %2234 = vmatprep.subr.bf16.mxu0 %v2187
    %2235 = vmatpush1.bf16.msra.mxu0 %v2186
    %2236 = vmatprep.subr.bf16.mxu0 %v2190
    %2237 = vmatpush1.bf16.msra.mxu0 %v2189
    %2238 = vmatprep.subr.bf16.mxu0 %v2193
    %2239 = vmatpush1.bf16.msra.mxu0 %v2192
    %2240 = vmatprep.subr.bf16.mxu0 %v2196
    %2241 = vmatpush1.bf16.msra.mxu0 %v2195
    %2242 = vmatprep.subr.bf16.mxu0 %v2199
    %2243 = vmatpush1.bf16.msra.mxu0 %v2198
    %2244 = vmatprep.subr.bf16.mxu0 %v2202
    %2245 = vmatpush1.bf16.msra.mxu0 %v2201
    %2246 = vmatprep.subr.bf16.mxu0 %v2205
    %2247 = vmatpush1.bf16.msra.mxu0 %v2204
    %2248 = vmatprep.subr.bf16.mxu0 %v2208
    %2249 = vmatpush1.bf16.msra.mxu0 %v2207
    %2250 = vmatprep.subr.bf16.mxu0 0
    %2251 = vmatpush1.bf16.msra.mxu0 0
    %2252 = vmatprep.subr.bf16.mxu0 0
    %2253 = vmatpush1.bf16.msra.mxu0 0
    %2254 = vmatprep.subr.bf16.mxu0 0
    %2255 = vmatpush1.bf16.msra.mxu0 0
    %2256 = vmatprep.subr.bf16.mxu0 0
    %2257 = vmatpush1.bf16.msra.mxu0 0
    %2258 = vmatprep.subr.bf16.mxu0 0
    %2259 = vmatpush1.bf16.msra.mxu0 0
    %2260 = vmatprep.subr.bf16.mxu0 0
    %2261 = vmatpush1.bf16.msra.mxu0 0
    %2262 = vmatprep.subr.bf16.mxu0 0
    %2263 = vmatpush1.bf16.msra.mxu0 0
    %2264 = vmatprep.subr.bf16.mxu0 0
    %2265 = vmatpush1.bf16.msra.mxu0 0
    %2266 = vmatprep.mubr.bf16.mxu0 0
    %2267 = vmatmul.mubr.bf16.gmra.mrb[0].mxu0 %v2071
    %v2268 = vpop.f32.mrb[0].mxu0
    %v2269 = vadd.f32 0.0, %v2268
    %v2270 = vpop.f32.mrb[0].mxu0
    %v2271 = vadd.f32 0.0, %v2270
    %v2272 = vpop.f32.mrb[0].mxu0
    %v2273 = vadd.f32 0.0, %v2272
    %v2274 = vpop.f32.mrb[0].mxu0
    %v2275 = vadd.f32 0.0, %v2274
    %2276 = vmatprep.mubr.bf16.mxu0 0
    %2277 = vmatmul.mubr.bf16.gmra.mrb[0].mxu0 %v2072
    %v2278 = vpop.f32.mrb[0].mxu0
    %v2279 = vadd.f32 0.0, %v2278
    %v2280 = vpop.f32.mrb[0].mxu0
    %v2281 = vadd.f32 0.0, %v2280
    %v2282 = vpop.f32.mrb[0].mxu0
    %v2283 = vadd.f32 0.0, %v2282
    %v2284 = vpop.f32.mrb[0].mxu0
    %v2285 = vadd.f32 0.0, %v2284
    %2286 = vdwg.mxu0
    %2287 = vmatprep.subr.bf16.mxu0 0
    %2288 = vmatpush1.bf16.msra.mxu0 %v2188
    %2289 = vmatprep.subr.bf16.mxu0 0
    %2290 = vmatpush1.bf16.msra.mxu0 %v2191
    %2291 = vmatprep.subr.bf16.mxu0 0
    %2292 = vmatpush1.bf16.msra.mxu0 %v2194
    %2293 = vmatprep.subr.bf16.mxu0 0
    %2294 = vmatpush1.bf16.msra.mxu0 %v2197
    %2295 = vmatprep.subr.bf16.mxu0 0
    %2296 = vmatpush1.bf16.msra.mxu0 %v2200
    %2297 = vmatprep.subr.bf16.mxu0 0
    %2298 = vmatpush1.bf16.msra.mxu0 %v2203
    %2299 = vmatprep.subr.bf16.mxu0 0
    %2300 = vmatpush1.bf16.msra.mxu0 %v2206
    %2301 = vmatprep.subr.bf16.mxu0 0
    %2302 = vmatpush1.bf16.msra.mxu0 %v2209
    %2303 = vmatprep.subr.bf16.mxu0 0
    %2304 = vmatpush1.bf16.msra.mxu0 0
    %2305 = vmatprep.subr.bf16.mxu0 0
    %2306 = vmatpush1.bf16.msra.mxu0 0
    %2307 = vmatprep.subr.bf16.mxu0 0
    %2308 = vmatpush1.bf16.msra.mxu0 0
    %2309 = vmatprep.subr.bf16.mxu0 0
    %2310 = vmatpush1.bf16.msra.mxu0 0
    %2311 = vmatprep.subr.bf16.mxu0 0
    %2312 = vmatpush1.bf16.msra.mxu0 0
    %2313 = vmatprep.subr.bf16.mxu0 0
    %2314 = vmatpush1.bf16.msra.mxu0 0
    %2315 = vmatprep.subr.bf16.mxu0 0
    %2316 = vmatpush1.bf16.msra.mxu0 0
    %2317 = vmatprep.subr.bf16.mxu0 0
    %2318 = vmatpush1.bf16.msra.mxu0 0
    %2319 = vmatprep.mubr.bf16.mxu0 0
    %2320 = vmatmul.mubr.bf16.gmra.mrb[0].mxu0 %v2071
    %v2321 = vpop.f32.mrb[0].mxu0
    %v2322 = vadd.f32 0.0, %v2321
    %v2323 = vpop.f32.mrb[0].mxu0
    %v2324 = vpop.f32.mrb[0].mxu0
    %v2325 = vadd.f32 0.0, %v2324
    %v2326 = vpop.f32.mrb[0].mxu0
    %2327 = vmatprep.mubr.bf16.mxu0 0
    %2328 = vmatmul.mubr.bf16.gmra.mrb[0].mxu0 %v2072
    %v2329 = vpop.f32.mrb[0].mxu0
    %v2330 = vadd.f32 0.0, %v2329
    %v2331 = vpop.f32.mrb[0].mxu0
    %v2332 = vpop.f32.mrb[0].mxu0
    %v2333 = vadd.f32 0.0, %v2332
    %v2334 = vpop.f32.mrb[0].mxu0
    %2335 = vdwg.mxu0
    %v2336 = vpack.c.bf16 %v2273, %v2269
    %v2337 = vpack.c.bf16 %v2275, %v2271
    %v2338 = vpack.c.bf16 %v2325, %v2322
    %v2339 = vpack.c.bf16 %v2283, %v2279
    %v2340 = vpack.c.bf16 %v2285, %v2281
    %v2341 = vpack.c.bf16 %v2333, %v2330
    %v2343 = vsel %vm447, %v2336, 0
    %v2346 = vsel %vm447, %v2337, 0
    %2348 = vmatprep.subr.bf16.mxu0 0
    %2349 = vmatpush1.bf16.xpose.msra.mxu0 %v2346
    %2350 = vmatprep.subr.bf16.mxu0 0
    %2351 = vmatpush1.bf16.xpose.msra.mxu0 0
    %2352 = vmatprep.subr.bf16.mxu0 0
    %2353 = vmatpush1.bf16.xpose.msra.mxu0 0
    %2354 = vmatprep.subr.bf16.mxu0 0
    %2355 = vmatpush1.bf16.xpose.msra.mxu0 0
    %2356 = vmatprep.subr.bf16.mxu0 0
    %2357 = vmatpush1.bf16.xpose.msra.mxu0 0
    %2358 = vmatprep.subr.bf16.mxu0 0
    %2359 = vmatpush1.bf16.xpose.msra.mxu0 0
    %2360 = vmatprep.subr.bf16.mxu0 0
    %2361 = vmatpush1.bf16.xpose.msra.mxu0 0
    %2362 = vmatprep.subr.bf16.mxu0 0
    %2363 = vmatpush1.bf16.xpose.msra.mxu0 0
    %2364 = vmatprep.subr.bf16.mxu0 0
    %2365 = vmatpush1.bf16.xpose.msra.mxu0 0
    %2366 = vmatprep.subr.bf16.mxu0 0
    %2367 = vmatpush1.bf16.xpose.msra.mxu0 0
    %2368 = vmatprep.subr.bf16.mxu0 0
    %2369 = vmatpush1.bf16.xpose.msra.mxu0 0
    %2370 = vmatprep.subr.bf16.mxu0 0
    %2371 = vmatpush1.bf16.xpose.msra.mxu0 0
    %2372 = vmatprep.subr.bf16.mxu0 0
    %2373 = vmatpush1.bf16.xpose.msra.mxu0 0
    %2374 = vmatprep.subr.bf16.mxu0 0
    %2375 = vmatpush1.bf16.xpose.msra.mxu0 0
    %2376 = vmatprep.subr.bf16.mxu0 0
    %2377 = vmatpush1.bf16.xpose.msra.mxu0 0
    %2378 = vmatprep.subr.bf16.mxu0 0
    %2379 = vmatpush1.bf16.xpose.msra.mxu0 0
    %2380 = vmatprep.mubr.bf16.mxu0 0
    %2381 = vmatmul.mubr.bf16.gmra.mrb[0].mxu0 %v2343
    %v2382 = vpop.f32.mrb[0].mxu0
    %v2383 = vadd.f32 0.0, %v2382
    %v2384 = vpop.f32.mrb[0].mxu0
    %v2385 = vpop.f32.mrb[0].mxu0
    %v2386 = vadd.f32 0.0, %v2385
    %v2387 = vpop.f32.mrb[0].mxu0
    %2388 = vdwg.mxu0
    %v2390 = vsel %vm447, %v2339, 0
    %v2393 = vsel %vm447, %v2340, 0
    %2395 = vmatprep.subr.bf16.mxu0 0
    %2396 = vmatpush1.bf16.xpose.msra.mxu0 %v2393
    %2397 = vmatprep.subr.bf16.mxu0 0
    %2398 = vmatpush1.bf16.xpose.msra.mxu0 0
    %2399 = vmatprep.subr.bf16.mxu0 0
    %2400 = vmatpush1.bf16.xpose.msra.mxu0 0
    %2401 = vmatprep.subr.bf16.mxu0 0
    %2402 = vmatpush1.bf16.xpose.msra.mxu0 0
    %2403 = vmatprep.subr.bf16.mxu0 0
    %2404 = vmatpush1.bf16.xpose.msra.mxu0 0
    %2405 = vmatprep.subr.bf16.mxu0 0
    %2406 = vmatpush1.bf16.xpose.msra.mxu0 0
    %2407 = vmatprep.subr.bf16.mxu0 0
    %2408 = vmatpush1.bf16.xpose.msra.mxu0 0
    %2409 = vmatprep.subr.bf16.mxu0 0
    %2410 = vmatpush1.bf16.xpose.msra.mxu0 0
    %2411 = vmatprep.subr.bf16.mxu0 0
    %2412 = vmatpush1.bf16.xpose.msra.mxu0 0
    %2413 = vmatprep.subr.bf16.mxu0 0
    %2414 = vmatpush1.bf16.xpose.msra.mxu0 0
    %2415 = vmatprep.subr.bf16.mxu0 0
    %2416 = vmatpush1.bf16.xpose.msra.mxu0 0
    %2417 = vmatprep.subr.bf16.mxu0 0
    %2418 = vmatpush1.bf16.xpose.msra.mxu0 0
    %2419 = vmatprep.subr.bf16.mxu0 0
    %2420 = vmatpush1.bf16.xpose.msra.mxu0 0
    %2421 = vmatprep.subr.bf16.mxu0 0
    %2422 = vmatpush1.bf16.xpose.msra.mxu0 0
    %2423 = vmatprep.subr.bf16.mxu0 0
    %2424 = vmatpush1.bf16.xpose.msra.mxu0 0
    %2425 = vmatprep.subr.bf16.mxu0 0
    %2426 = vmatpush1.bf16.xpose.msra.mxu0 0
    %2427 = vmatprep.mubr.bf16.mxu0 0
    %2428 = vmatmul.mubr.bf16.gmra.mrb[0].mxu0 %v2390
    %v2429 = vpop.f32.mrb[0].mxu0
    %v2430 = vadd.f32 0.0, %v2429
    %v2431 = vpop.f32.mrb[0].mxu0
    %v2432 = vpop.f32.mrb[0].mxu0
    %v2433 = vadd.f32 0.0, %v2432
    %v2434 = vpop.f32.mrb[0].mxu0
    %2435 = vdwg.mxu0
    %v2436 = vsel %vm542, %v2383, -inf
    %2437 = vmax.xlane.f32.xlu0 %v2436
    %v2438 = vpop.xlane.xlu0 %2437
    %v2439 = vsel %vm542, %v2386, -inf
    %2440 = vmax.xlane.f32.xlu0 %v2439
    %v2441 = vpop.xlane.xlu0 %2440
    %v2442 = vsel %vm542, %v2430, -inf
    %2443 = vmax.xlane.f32.xlu0 %v2442
    %v2444 = vpop.xlane.xlu0 %2443
    %v2445 = vsel %vm542, %v2433, -inf
    %2446 = vmax.xlane.f32.xlu0 %v2445
    %v2447 = vpop.xlane.xlu0 %2446
    %v2448 = vsub.f32 %v2383, %v2438
    %v2449 = vsub.f32 %v2386, %v2441
    %v2450 = vsub.f32 %v2430, %v2444
    %v2451 = vsub.f32 %v2433, %v2447
    %v2452 = vmul.f32 %v2448, 1.442695
    %v2453 = vpow.pop %v2452
    %v2454 = vmul.f32 %v2449, 1.442695
    %v2455 = vpow.pop %v2454
    %v2456 = vmul.f32 %v2450, 1.442695
    %v2457 = vpow.pop %v2456
    %v2458 = vmul.f32 %v2451, 1.442695
    %v2459 = vpow.pop %v2458
    %v2460 = vsel %vm542, %v2453, 0.0
    %2461 = vadd.xlane.f32.xlu0 %v2460
    %v2462 = vpop.xlane.xlu0 %2461
    %v2463 = vsel %vm542, %v2455, 0.0
    %2464 = vadd.xlane.f32.xlu0 %v2463
    %v2465 = vpop.xlane.xlu0 %2464
    %v2466 = vsel %vm542, %v2457, 0.0
    %2467 = vadd.xlane.f32.xlu0 %v2466
    %v2468 = vpop.xlane.xlu0 %2467
    %v2469 = vsel %vm542, %v2459, 0.0
    %2470 = vadd.xlane.f32.xlu0 %v2469
    %v2471 = vpop.xlane.xlu0 %2470
    %v2472 = vrcp.pop %v2462
    %v2473 = vmul.f32 %v2453, %v2472
    %v2474 = vrcp.pop %v2465
    %v2475 = vmul.f32 %v2455, %v2474
    %v2476 = vrcp.pop %v2468
    %v2477 = vmul.f32 %v2457, %v2476
    %v2478 = vrcp.pop %v2471
    %v2479 = vmul.f32 %v2459, %v2478
    %v2480 = vpack.c.bf16 %v2475, %v2473
    %v2481 = vpack.c.bf16 %v2479, %v2477
    %v2483 = vsel %vm542, %v2480, 0
    %2485 = vmatprep.subr.bf16.mxu0 0
    %2486 = vmatpush1.bf16.msra.mxu0 %v2338
    %2487 = vmatprep.subr.bf16.mxu0 0
    %2488 = vmatpush1.bf16.msra.mxu0 0
    %2489 = vmatprep.subr.bf16.mxu0 0
    %2490 = vmatpush1.bf16.msra.mxu0 0
    %2491 = vmatprep.subr.bf16.mxu0 0
    %2492 = vmatpush1.bf16.msra.mxu0 0
    %2493 = vmatprep.subr.bf16.mxu0 0
    %2494 = vmatpush1.bf16.msra.mxu0 0
    %2495 = vmatprep.subr.bf16.mxu0 0
    %2496 = vmatpush1.bf16.msra.mxu0 0
    %2497 = vmatprep.subr.bf16.mxu0 0
    %2498 = vmatpush1.bf16.msra.mxu0 0
    %2499 = vmatprep.subr.bf16.mxu0 0
    %2500 = vmatpush1.bf16.msra.mxu0 0
    %2501 = vmatprep.subr.bf16.mxu0 0
    %2502 = vmatpush1.bf16.msra.mxu0 0
    %2503 = vmatprep.subr.bf16.mxu0 0
    %2504 = vmatpush1.bf16.msra.mxu0 0
    %2505 = vmatprep.subr.bf16.mxu0 0
    %2506 = vmatpush1.bf16.msra.mxu0 0
    %2507 = vmatprep.subr.bf16.mxu0 0
    %2508 = vmatpush1.bf16.msra.mxu0 0
    %2509 = vmatprep.subr.bf16.mxu0 0
    %2510 = vmatpush1.bf16.msra.mxu0 0
    %2511 = vmatprep.subr.bf16.mxu0 0
    %2512 = vmatpush1.bf16.msra.mxu0 0
    %2513 = vmatprep.subr.bf16.mxu0 0
    %2514 = vmatpush1.bf16.msra.mxu0 0
    %2515 = vmatprep.subr.bf16.mxu0 0
    %2516 = vmatpush1.bf16.msra.mxu0 0
    %2517 = vmatprep.mubr.bf16.mxu0 0
    %2518 = vmatmul.mubr.bf16.gmra.mrb[0].mxu0 %v2483
    %v2519 = vpop.f32.mrb[0].mxu0
    %v2520 = vadd.f32 0.0, %v2519
    %v2521 = vpop.f32.mrb[0].mxu0
    %v2522 = vpop.f32.mrb[0].mxu0
    %v2523 = vadd.f32 0.0, %v2522
    %v2524 = vpop.f32.mrb[0].mxu0
    %2525 = vdwg.mxu0
    %v2527 = vsel %vm542, %v2481, 0
    %2529 = vmatprep.subr.bf16.mxu0 0
    %2530 = vmatpush1.bf16.msra.mxu0 %v2341
    %2531 = vmatprep.subr.bf16.mxu0 0
    %2532 = vmatpush1.bf16.msra.mxu0 0
    %2533 = vmatprep.subr.bf16.mxu0 0
    %2534 = vmatpush1.bf16.msra.mxu0 0
    %2535 = vmatprep.subr.bf16.mxu0 0
    %2536 = vmatpush1.bf16.msra.mxu0 0
    %2537 = vmatprep.subr.bf16.mxu0 0
    %2538 = vmatpush1.bf16.msra.mxu0 0
    %2539 = vmatprep.subr.bf16.mxu0 0
    %2540 = vmatpush1.bf16.msra.mxu0 0
    %2541 = vmatprep.subr.bf16.mxu0 0
    %2542 = vmatpush1.bf16.msra.mxu0 0
    %2543 = vmatprep.subr.bf16.mxu0 0
    %2544 = vmatpush1.bf16.msra.mxu0 0
    %2545 = vmatprep.subr.bf16.mxu0 0
    %2546 = vmatpush1.bf16.msra.mxu0 0
    %2547 = vmatprep.subr.bf16.mxu0 0
    %2548 = vmatpush1.bf16.msra.mxu0 0
    %2549 = vmatprep.subr.bf16.mxu0 0
    %2550 = vmatpush1.bf16.msra.mxu0 0
    %2551 = vmatprep.subr.bf16.mxu0 0
    %2552 = vmatpush1.bf16.msra.mxu0 0
    %2553 = vmatprep.subr.bf16.mxu0 0
    %2554 = vmatpush1.bf16.msra.mxu0 0
    %2555 = vmatprep.subr.bf16.mxu0 0
    %2556 = vmatpush1.bf16.msra.mxu0 0
    %2557 = vmatprep.subr.bf16.mxu0 0
    %2558 = vmatpush1.bf16.msra.mxu0 0
    %2559 = vmatprep.subr.bf16.mxu0 0
    %2560 = vmatpush1.bf16.msra.mxu0 0
    %2561 = vmatprep.mubr.bf16.mxu0 0
    %2562 = vmatmul.mubr.bf16.gmra.mrb[0].mxu0 %v2527
    %v2563 = vpop.f32.mrb[0].mxu0
    %v2564 = vadd.f32 0.0, %v2563
    %v2565 = vpop.f32.mrb[0].mxu0
    %v2566 = vpop.f32.mrb[0].mxu0
    %v2567 = vadd.f32 0.0, %v2566
    %v2568 = vpop.f32.mrb[0].mxu0
    %2569 = vdwg.mxu0
    %2570 = vst.msk [vmem:[#allocation2] sm:$0xff] %vm447, %v2520
    %2571 = vst.msk [vmem:[#allocation2 + $0x8] sm:$0xff] %vm447, %v2523
    %2572 = vst.msk [vmem:[#allocation2 + $0x10] sm:$0xff] %vm447, %v2564
    %2573 = vst.msk [vmem:[#allocation2 + $0x18] sm:$0xff] %vm447, %v2567
    %2575 = vrot.lane.b32.xlu0 %v2336, 96
    %v2576 = vpop.permute.xlu0 %2575
    %2578 = vrot.lane.b32.xlu0 %v2337, 96
    %v2579 = vpop.permute.xlu0 %2578
    %v2581 = vsel %vm447, %v2576, 0
    %v2584 = vsel %vm447, %v2579, 0
    %2586 = vmatprep.subr.bf16.mxu0 0
    %2587 = vmatpush1.bf16.xpose.msra.mxu0 %v2584
    %2588 = vmatprep.subr.bf16.mxu0 0
    %2589 = vmatpush1.bf16.xpose.msra.mxu0 0
    %2590 = vmatprep.subr.bf16.mxu0 0
    %2591 = vmatpush1.bf16.xpose.msra.mxu0 0
    %2592 = vmatprep.subr.bf16.mxu0 0
    %2593 = vmatpush1.bf16.xpose.msra.mxu0 0
    %2594 = vmatprep.subr.bf16.mxu0 0
    %2595 = vmatpush1.bf16.xpose.msra.mxu0 0
    %2596 = vmatprep.subr.bf16.mxu0 0
    %2597 = vmatpush1.bf16.xpose.msra.mxu0 0
    %2598 = vmatprep.subr.bf16.mxu0 0
    %2599 = vmatpush1.bf16.xpose.msra.mxu0 0
    %2600 = vmatprep.subr.bf16.mxu0 0
    %2601 = vmatpush1.bf16.xpose.msra.mxu0 0
    %2602 = vmatprep.subr.bf16.mxu0 0
    %2603 = vmatpush1.bf16.xpose.msra.mxu0 0
    %2604 = vmatprep.subr.bf16.mxu0 0
    %2605 = vmatpush1.bf16.xpose.msra.mxu0 0
    %2606 = vmatprep.subr.bf16.mxu0 0
    %2607 = vmatpush1.bf16.xpose.msra.mxu0 0
    %2608 = vmatprep.subr.bf16.mxu0 0
    %2609 = vmatpush1.bf16.xpose.msra.mxu0 0
    %2610 = vmatprep.subr.bf16.mxu0 0
    %2611 = vmatpush1.bf16.xpose.msra.mxu0 0
    %2612 = vmatprep.subr.bf16.mxu0 0
    %2613 = vmatpush1.bf16.xpose.msra.mxu0 0
    %2614 = vmatprep.subr.bf16.mxu0 0
    %2615 = vmatpush1.bf16.xpose.msra.mxu0 0
    %2616 = vmatprep.subr.bf16.mxu0 0
    %2617 = vmatpush1.bf16.xpose.msra.mxu0 0
    %2618 = vmatprep.mubr.bf16.mxu0 0
    %2619 = vmatmul.mubr.bf16.gmra.mrb[0].mxu0 %v2581
    %v2620 = vpop.f32.mrb[0].mxu0
    %v2621 = vadd.f32 0.0, %v2620
    %v2622 = vpop.f32.mrb[0].mxu0
    %v2623 = vpop.f32.mrb[0].mxu0
    %v2624 = vadd.f32 0.0, %v2623
    %v2625 = vpop.f32.mrb[0].mxu0
    %2626 = vdwg.mxu0
    %2628 = vrot.lane.b32.xlu0 %v2339, 96
    %v2629 = vpop.permute.xlu0 %2628
    %2631 = vrot.lane.b32.xlu0 %v2340, 96
    %v2632 = vpop.permute.xlu0 %2631
    %v2634 = vsel %vm447, %v2629, 0
    %v2637 = vsel %vm447, %v2632, 0
    %2639 = vmatprep.subr.bf16.mxu0 0
    %2640 = vmatpush1.bf16.xpose.msra.mxu0 %v2637
    %2641 = vmatprep.subr.bf16.mxu0 0
    %2642 = vmatpush1.bf16.xpose.msra.mxu0 0
    %2643 = vmatprep.subr.bf16.mxu0 0
    %2644 = vmatpush1.bf16.xpose.msra.mxu0 0
    %2645 = vmatprep.subr.bf16.mxu0 0
    %2646 = vmatpush1.bf16.xpose.msra.mxu0 0
    %2647 = vmatprep.subr.bf16.mxu0 0
    %2648 = vmatpush1.bf16.xpose.msra.mxu0 0
    %2649 = vmatprep.subr.bf16.mxu0 0
    %2650 = vmatpush1.bf16.xpose.msra.mxu0 0
    %2651 = vmatprep.subr.bf16.mxu0 0
    %2652 = vmatpush1.bf16.xpose.msra.mxu0 0
    %2653 = vmatprep.subr.bf16.mxu0 0
    %2654 = vmatpush1.bf16.xpose.msra.mxu0 0
    %2655 = vmatprep.subr.bf16.mxu0 0
    %2656 = vmatpush1.bf16.xpose.msra.mxu0 0
    %2657 = vmatprep.subr.bf16.mxu0 0
    %2658 = vmatpush1.bf16.xpose.msra.mxu0 0
    %2659 = vmatprep.subr.bf16.mxu0 0
    %2660 = vmatpush1.bf16.xpose.msra.mxu0 0
    %2661 = vmatprep.subr.bf16.mxu0 0
    %2662 = vmatpush1.bf16.xpose.msra.mxu0 0
    %2663 = vmatprep.subr.bf16.mxu0 0
    %2664 = vmatpush1.bf16.xpose.msra.mxu0 0
    %2665 = vmatprep.subr.bf16.mxu0 0
    %2666 = vmatpush1.bf16.xpose.msra.mxu0 0
    %2667 = vmatprep.subr.bf16.mxu0 0
    %2668 = vmatpush1.bf16.xpose.msra.mxu0 0
    %2669 = vmatprep.subr.bf16.mxu0 0
    %2670 = vmatpush1.bf16.xpose.msra.mxu0 0
    %2671 = vmatprep.mubr.bf16.mxu0 0
    %2672 = vmatmul.mubr.bf16.gmra.mrb[0].mxu0 %v2634
    %v2673 = vpop.f32.mrb[0].mxu0
    %v2674 = vadd.f32 0.0, %v2673
    %v2675 = vpop.f32.mrb[0].mxu0
    %v2676 = vpop.f32.mrb[0].mxu0
    %v2677 = vadd.f32 0.0, %v2676
    %v2678 = vpop.f32.mrb[0].mxu0
    %2679 = vdwg.mxu0
    %v2680 = vsel %vm542, %v2621, -inf
    %2681 = vmax.xlane.f32.xlu0 %v2680
    %v2682 = vpop.xlane.xlu0 %2681
    %v2683 = vsel %vm542, %v2624, -inf
    %2684 = vmax.xlane.f32.xlu0 %v2683
    %v2685 = vpop.xlane.xlu0 %2684
    %v2686 = vsel %vm542, %v2674, -inf
    %2687 = vmax.xlane.f32.xlu0 %v2686
    %v2688 = vpop.xlane.xlu0 %2687
    %v2689 = vsel %vm542, %v2677, -inf
    %2690 = vmax.xlane.f32.xlu0 %v2689
    %v2691 = vpop.xlane.xlu0 %2690
    %v2692 = vsub.f32 %v2621, %v2682
    %v2693 = vsub.f32 %v2624, %v2685
    %v2694 = vsub.f32 %v2674, %v2688
    %v2695 = vsub.f32 %v2677, %v2691
    %v2696 = vmul.f32 %v2692, 1.442695
    %v2697 = vpow.pop %v2696
    %v2698 = vmul.f32 %v2693, 1.442695
    %v2699 = vpow.pop %v2698
    %v2700 = vmul.f32 %v2694, 1.442695
    %v2701 = vpow.pop %v2700
    %v2702 = vmul.f32 %v2695, 1.442695
    %v2703 = vpow.pop %v2702
    %v2704 = vsel %vm542, %v2697, 0.0
    %2705 = vadd.xlane.f32.xlu0 %v2704
    %v2706 = vpop.xlane.xlu0 %2705
    %v2707 = vsel %vm542, %v2699, 0.0
    %2708 = vadd.xlane.f32.xlu0 %v2707
    %v2709 = vpop.xlane.xlu0 %2708
    %v2710 = vsel %vm542, %v2701, 0.0
    %2711 = vadd.xlane.f32.xlu0 %v2710
    %v2712 = vpop.xlane.xlu0 %2711
    %v2713 = vsel %vm542, %v2703, 0.0
    %2714 = vadd.xlane.f32.xlu0 %v2713
    %v2715 = vpop.xlane.xlu0 %2714
    %v2716 = vrcp.pop %v2706
    %v2717 = vmul.f32 %v2697, %v2716
    %v2718 = vrcp.pop %v2709
    %v2719 = vmul.f32 %v2699, %v2718
    %v2720 = vrcp.pop %v2712
    %v2721 = vmul.f32 %v2701, %v2720
    %v2722 = vrcp.pop %v2715
    %v2723 = vmul.f32 %v2703, %v2722
    %v2724 = vpack.c.bf16 %v2719, %v2717
    %v2725 = vpack.c.bf16 %v2723, %v2721
    %2727 = vrot.lane.b32.xlu0 %v2338, 96
    %v2728 = vpop.permute.xlu0 %2727
    %v2731 = vsel %vm542, %v2724, 0
    %2733 = vmatprep.subr.bf16.mxu0 0
    %2734 = vmatpush1.bf16.msra.mxu0 %v2728
    %2735 = vmatprep.subr.bf16.mxu0 0
    %2736 = vmatpush1.bf16.msra.mxu0 0
    %2737 = vmatprep.subr.bf16.mxu0 0
    %2738 = vmatpush1.bf16.msra.mxu0 0
    %2739 = vmatprep.subr.bf16.mxu0 0
    %2740 = vmatpush1.bf16.msra.mxu0 0
    %2741 = vmatprep.subr.bf16.mxu0 0
    %2742 = vmatpush1.bf16.msra.mxu0 0
    %2743 = vmatprep.subr.bf16.mxu0 0
    %2744 = vmatpush1.bf16.msra.mxu0 0
    %2745 = vmatprep.subr.bf16.mxu0 0
    %2746 = vmatpush1.bf16.msra.mxu0 0
    %2747 = vmatprep.subr.bf16.mxu0 0
    %2748 = vmatpush1.bf16.msra.mxu0 0
    %2749 = vmatprep.subr.bf16.mxu0 0
    %2750 = vmatpush1.bf16.msra.mxu0 0
    %2751 = vmatprep.subr.bf16.mxu0 0
    %2752 = vmatpush1.bf16.msra.mxu0 0
    %2753 = vmatprep.subr.bf16.mxu0 0
    %2754 = vmatpush1.bf16.msra.mxu0 0
    %2755 = vmatprep.subr.bf16.mxu0 0
    %2756 = vmatpush1.bf16.msra.mxu0 0
    %2757 = vmatprep.subr.bf16.mxu0 0
    %2758 = vmatpush1.bf16.msra.mxu0 0
    %2759 = vmatprep.subr.bf16.mxu0 0
    %2760 = vmatpush1.bf16.msra.mxu0 0
    %2761 = vmatprep.subr.bf16.mxu0 0
    %2762 = vmatpush1.bf16.msra.mxu0 0
    %2763 = vmatprep.subr.bf16.mxu0 0
    %2764 = vmatpush1.bf16.msra.mxu0 0
    %2765 = vmatprep.mubr.bf16.mxu0 0
    %2766 = vmatmul.mubr.bf16.gmra.mrb[0].mxu0 %v2731
    %v2767 = vpop.f32.mrb[0].mxu0
    %v2768 = vadd.f32 0.0, %v2767
    %v2769 = vpop.f32.mrb[0].mxu0
    %v2770 = vpop.f32.mrb[0].mxu0
    %v2771 = vadd.f32 0.0, %v2770
    %v2772 = vpop.f32.mrb[0].mxu0
    %2773 = vdwg.mxu0
    %2775 = vrot.lane.b32.xlu0 %v2341, 96
    %v2776 = vpop.permute.xlu0 %2775
    %v2779 = vsel %vm542, %v2725, 0
    %2781 = vmatprep.subr.bf16.mxu0 0
    %2782 = vmatpush1.bf16.msra.mxu0 %v2776
    %2783 = vmatprep.subr.bf16.mxu0 0
    %2784 = vmatpush1.bf16.msra.mxu0 0
    %2785 = vmatprep.subr.bf16.mxu0 0
    %2786 = vmatpush1.bf16.msra.mxu0 0
    %2787 = vmatprep.subr.bf16.mxu0 0
    %2788 = vmatpush1.bf16.msra.mxu0 0
    %2789 = vmatprep.subr.bf16.mxu0 0
    %2790 = vmatpush1.bf16.msra.mxu0 0
    %2791 = vmatprep.subr.bf16.mxu0 0
    %2792 = vmatpush1.bf16.msra.mxu0 0
    %2793 = vmatprep.subr.bf16.mxu0 0
    %2794 = vmatpush1.bf16.msra.mxu0 0
    %2795 = vmatprep.subr.bf16.mxu0 0
    %2796 = vmatpush1.bf16.msra.mxu0 0
    %2797 = vmatprep.subr.bf16.mxu0 0
    %2798 = vmatpush1.bf16.msra.mxu0 0
    %2799 = vmatprep.subr.bf16.mxu0 0
    %2800 = vmatpush1.bf16.msra.mxu0 0
    %2801 = vmatprep.subr.bf16.mxu0 0
    %2802 = vmatpush1.bf16.msra.mxu0 0
    %2803 = vmatprep.subr.bf16.mxu0 0
    %2804 = vmatpush1.bf16.msra.mxu0 0
    %2805 = vmatprep.subr.bf16.mxu0 0
    %2806 = vmatpush1.bf16.msra.mxu0 0
    %2807 = vmatprep.subr.bf16.mxu0 0
    %2808 = vmatpush1.bf16.msra.mxu0 0
    %2809 = vmatprep.subr.bf16.mxu0 0
    %2810 = vmatpush1.bf16.msra.mxu0 0
    %2811 = vmatprep.subr.bf16.mxu0 0
    %2812 = vmatpush1.bf16.msra.mxu0 0
    %2813 = vmatprep.mubr.bf16.mxu0 0
    %2814 = vmatmul.mubr.bf16.gmra.mrb[0].mxu0 %v2779
    %v2815 = vpop.f32.mrb[0].mxu0
    %v2816 = vadd.f32 0.0, %v2815
    %v2817 = vpop.f32.mrb[0].mxu0
    %v2818 = vpop.f32.mrb[0].mxu0
    %v2819 = vadd.f32 0.0, %v2818
    %v2820 = vpop.f32.mrb[0].mxu0
    %2821 = vdwg.mxu0
    %2826 = vrot.lane.b32.xlu0 %v2768, 32
    %v2827 = vpop.permute.xlu0 %2826
    %2828 = vrot.lane.b32.xlu0 %v2771, 32
    %v2829 = vpop.permute.xlu0 %2828
    %2830 = vrot.lane.b32.xlu0 %v2816, 32
    %v2831 = vpop.permute.xlu0 %2830
    %2832 = vrot.lane.b32.xlu0 %v2819, 32
    %v2833 = vpop.permute.xlu0 %2832
    %2838 = vst.msk [vmem:[#allocation2] sm:$0xff] %vm945, %v2827
    %2839 = vst.msk [vmem:[#allocation2 + $0x8] sm:$0xff] %vm945, %v2829
    %2840 = vst.msk [vmem:[#allocation2 + $0x10] sm:$0xff] %vm945, %v2831
    %2841 = vst.msk [vmem:[#allocation2 + $0x18] sm:$0xff] %vm945, %v2833
    %2842 = vrot.lane.b32.xlu0 %v2336, 64
    %v2843 = vpop.permute.xlu0 %2842
    %2844 = vrot.lane.b32.xlu0 %v2337, 64
    %v2845 = vpop.permute.xlu0 %2844
    %v2847 = vsel %vm447, %v2843, 0
    %v2850 = vsel %vm447, %v2845, 0
    %2852 = vmatprep.subr.bf16.mxu0 0
    %2853 = vmatpush1.bf16.xpose.msra.mxu0 %v2850
    %2854 = vmatprep.subr.bf16.mxu0 0
    %2855 = vmatpush1.bf16.xpose.msra.mxu0 0
    %2856 = vmatprep.subr.bf16.mxu0 0
    %2857 = vmatpush1.bf16.xpose.msra.mxu0 0
    %2858 = vmatprep.subr.bf16.mxu0 0
    %2859 = vmatpush1.bf16.xpose.msra.mxu0 0
    %2860 = vmatprep.subr.bf16.mxu0 0
    %2861 = vmatpush1.bf16.xpose.msra.mxu0 0
    %2862 = vmatprep.subr.bf16.mxu0 0
    %2863 = vmatpush1.bf16.xpose.msra.mxu0 0
    %2864 = vmatprep.subr.bf16.mxu0 0
    %2865 = vmatpush1.bf16.xpose.msra.mxu0 0
    %2866 = vmatprep.subr.bf16.mxu0 0
    %2867 = vmatpush1.bf16.xpose.msra.mxu0 0
    %2868 = vmatprep.subr.bf16.mxu0 0
    %2869 = vmatpush1.bf16.xpose.msra.mxu0 0
    %2870 = vmatprep.subr.bf16.mxu0 0
    %2871 = vmatpush1.bf16.xpose.msra.mxu0 0
    %2872 = vmatprep.subr.bf16.mxu0 0
    %2873 = vmatpush1.bf16.xpose.msra.mxu0 0
    %2874 = vmatprep.subr.bf16.mxu0 0
    %2875 = vmatpush1.bf16.xpose.msra.mxu0 0
    %2876 = vmatprep.subr.bf16.mxu0 0
    %2877 = vmatpush1.bf16.xpose.msra.mxu0 0
    %2878 = vmatprep.subr.bf16.mxu0 0
    %2879 = vmatpush1.bf16.xpose.msra.mxu0 0
    %2880 = vmatprep.subr.bf16.mxu0 0
    %2881 = vmatpush1.bf16.xpose.msra.mxu0 0
    %2882 = vmatprep.subr.bf16.mxu0 0
    %2883 = vmatpush1.bf16.xpose.msra.mxu0 0
    %2884 = vmatprep.mubr.bf16.mxu0 0
    %2885 = vmatmul.mubr.bf16.gmra.mrb[0].mxu0 %v2847
    %v2886 = vpop.f32.mrb[0].mxu0
    %v2887 = vadd.f32 0.0, %v2886
    %v2888 = vpop.f32.mrb[0].mxu0
    %v2889 = vpop.f32.mrb[0].mxu0
    %v2890 = vadd.f32 0.0, %v2889
    %v2891 = vpop.f32.mrb[0].mxu0
    %2892 = vdwg.mxu0
    %2893 = vrot.lane.b32.xlu0 %v2339, 64
    %v2894 = vpop.permute.xlu0 %2893
    %2895 = vrot.lane.b32.xlu0 %v2340, 64
    %v2896 = vpop.permute.xlu0 %2895
    %v2898 = vsel %vm447, %v2894, 0
    %v2901 = vsel %vm447, %v2896, 0
    %2903 = vmatprep.subr.bf16.mxu0 0
    %2904 = vmatpush1.bf16.xpose.msra.mxu0 %v2901
    %2905 = vmatprep.subr.bf16.mxu0 0
    %2906 = vmatpush1.bf16.xpose.msra.mxu0 0
    %2907 = vmatprep.subr.bf16.mxu0 0
    %2908 = vmatpush1.bf16.xpose.msra.mxu0 0
    %2909 = vmatprep.subr.bf16.mxu0 0
    %2910 = vmatpush1.bf16.xpose.msra.mxu0 0
    %2911 = vmatprep.subr.bf16.mxu0 0
    %2912 = vmatpush1.bf16.xpose.msra.mxu0 0
    %2913 = vmatprep.subr.bf16.mxu0 0
    %2914 = vmatpush1.bf16.xpose.msra.mxu0 0
    %2915 = vmatprep.subr.bf16.mxu0 0
    %2916 = vmatpush1.bf16.xpose.msra.mxu0 0
    %2917 = vmatprep.subr.bf16.mxu0 0
    %2918 = vmatpush1.bf16.xpose.msra.mxu0 0
    %2919 = vmatprep.subr.bf16.mxu0 0
    %2920 = vmatpush1.bf16.xpose.msra.mxu0 0
    %2921 = vmatprep.subr.bf16.mxu0 0
    %2922 = vmatpush1.bf16.xpose.msra.mxu0 0
    %2923 = vmatprep.subr.bf16.mxu0 0
    %2924 = vmatpush1.bf16.xpose.msra.mxu0 0
    %2925 = vmatprep.subr.bf16.mxu0 0
    %2926 = vmatpush1.bf16.xpose.msra.mxu0 0
    %2927 = vmatprep.subr.bf16.mxu0 0
    %2928 = vmatpush1.bf16.xpose.msra.mxu0 0
    %2929 = vmatprep.subr.bf16.mxu0 0
    %2930 = vmatpush1.bf16.xpose.msra.mxu0 0
    %2931 = vmatprep.subr.bf16.mxu0 0
    %2932 = vmatpush1.bf16.xpose.msra.mxu0 0
    %2933 = vmatprep.subr.bf16.mxu0 0
    %2934 = vmatpush1.bf16.xpose.msra.mxu0 0
    %2935 = vmatprep.mubr.bf16.mxu0 0
    %2936 = vmatmul.mubr.bf16.gmra.mrb[0].mxu0 %v2898
    %v2937 = vpop.f32.mrb[0].mxu0
    %v2938 = vadd.f32 0.0, %v2937
    %v2939 = vpop.f32.mrb[0].mxu0
    %v2940 = vpop.f32.mrb[0].mxu0
    %v2941 = vadd.f32 0.0, %v2940
    %v2942 = vpop.f32.mrb[0].mxu0
    %2943 = vdwg.mxu0
    %v2944 = vsel %vm542, %v2887, -inf
    %2945 = vmax.xlane.f32.xlu0 %v2944
    %v2946 = vpop.xlane.xlu0 %2945
    %v2947 = vsel %vm542, %v2890, -inf
    %2948 = vmax.xlane.f32.xlu0 %v2947
    %v2949 = vpop.xlane.xlu0 %2948
    %v2950 = vsel %vm542, %v2938, -inf
    %2951 = vmax.xlane.f32.xlu0 %v2950
    %v2952 = vpop.xlane.xlu0 %2951
    %v2953 = vsel %vm542, %v2941, -inf
    %2954 = vmax.xlane.f32.xlu0 %v2953
    %v2955 = vpop.xlane.xlu0 %2954
    %v2956 = vsub.f32 %v2887, %v2946
    %v2957 = vsub.f32 %v2890, %v2949
    %v2958 = vsub.f32 %v2938, %v2952
    %v2959 = vsub.f32 %v2941, %v2955
    %v2960 = vmul.f32 %v2956, 1.442695
    %v2961 = vpow.pop %v2960
    %v2962 = vmul.f32 %v2957, 1.442695
    %v2963 = vpow.pop %v2962
    %v2964 = vmul.f32 %v2958, 1.442695
    %v2965 = vpow.pop %v2964
    %v2966 = vmul.f32 %v2959, 1.442695
    %v2967 = vpow.pop %v2966
    %v2968 = vsel %vm542, %v2961, 0.0
    %2969 = vadd.xlane.f32.xlu0 %v2968
    %v2970 = vpop.xlane.xlu0 %2969
    %v2971 = vsel %vm542, %v2963, 0.0
    %2972 = vadd.xlane.f32.xlu0 %v2971
    %v2973 = vpop.xlane.xlu0 %2972
    %v2974 = vsel %vm542, %v2965, 0.0
    %2975 = vadd.xlane.f32.xlu0 %v2974
    %v2976 = vpop.xlane.xlu0 %2975
    %v2977 = vsel %vm542, %v2967, 0.0
    %2978 = vadd.xlane.f32.xlu0 %v2977
    %v2979 = vpop.xlane.xlu0 %2978
    %v2980 = vrcp.pop %v2970
    %v2981 = vmul.f32 %v2961, %v2980
    %v2982 = vrcp.pop %v2973
    %v2983 = vmul.f32 %v2963, %v2982
    %v2984 = vrcp.pop %v2976
    %v2985 = vmul.f32 %v2965, %v2984
    %v2986 = vrcp.pop %v2979
    %v2987 = vmul.f32 %v2967, %v2986
    %v2988 = vpack.c.bf16 %v2983, %v2981
    %v2989 = vpack.c.bf16 %v2987, %v2985
    %2990 = vrot.lane.b32.xlu0 %v2338, 64
    %v2991 = vpop.permute.xlu0 %2990
    %v2994 = vsel %vm542, %v2988, 0
    %2996 = vmatprep.subr.bf16.mxu0 0
    %2997 = vmatpush1.bf16.msra.mxu0 %v2991
    %2998 = vmatprep.subr.bf16.mxu0 0
    %2999 = vmatpush1.bf16.msra.mxu0 0
    %3000 = vmatprep.subr.bf16.mxu0 0
    %3001 = vmatpush1.bf16.msra.mxu0 0
    %3002 = vmatprep.subr.bf16.mxu0 0
    %3003 = vmatpush1.bf16.msra.mxu0 0
    %3004 = vmatprep.subr.bf16.mxu0 0
    %3005 = vmatpush1.bf16.msra.mxu0 0
    %3006 = vmatprep.subr.bf16.mxu0 0
    %3007 = vmatpush1.bf16.msra.mxu0 0
    %3008 = vmatprep.subr.bf16.mxu0 0
    %3009 = vmatpush1.bf16.msra.mxu0 0
    %3010 = vmatprep.subr.bf16.mxu0 0
    %3011 = vmatpush1.bf16.msra.mxu0 0
    %3012 = vmatprep.subr.bf16.mxu0 0
    %3013 = vmatpush1.bf16.msra.mxu0 0
    %3014 = vmatprep.subr.bf16.mxu0 0
    %3015 = vmatpush1.bf16.msra.mxu0 0
    %3016 = vmatprep.subr.bf16.mxu0 0
    %3017 = vmatpush1.bf16.msra.mxu0 0
    %3018 = vmatprep.subr.bf16.mxu0 0
    %3019 = vmatpush1.bf16.msra.mxu0 0
    %3020 = vmatprep.subr.bf16.mxu0 0
    %3021 = vmatpush1.bf16.msra.mxu0 0
    %3022 = vmatprep.subr.bf16.mxu0 0
    %3023 = vmatpush1.bf16.msra.mxu0 0
    %3024 = vmatprep.subr.bf16.mxu0 0
    %3025 = vmatpush1.bf16.msra.mxu0 0
    %3026 = vmatprep.subr.bf16.mxu0 0
    %3027 = vmatpush1.bf16.msra.mxu0 0
    %3028 = vmatprep.mubr.bf16.mxu0 0
    %3029 = vmatmul.mubr.bf16.gmra.mrb[0].mxu0 %v2994
    %v3030 = vpop.f32.mrb[0].mxu0
    %v3031 = vadd.f32 0.0, %v3030
    %v3032 = vpop.f32.mrb[0].mxu0
    %v3033 = vpop.f32.mrb[0].mxu0
    %v3034 = vadd.f32 0.0, %v3033
    %v3035 = vpop.f32.mrb[0].mxu0
    %3036 = vdwg.mxu0
    %3037 = vrot.lane.b32.xlu0 %v2341, 64
    %v3038 = vpop.permute.xlu0 %3037
    %v3041 = vsel %vm542, %v2989, 0
    %3043 = vmatprep.subr.bf16.mxu0 0
    %3044 = vmatpush1.bf16.msra.mxu0 %v3038
    %3045 = vmatprep.subr.bf16.mxu0 0
    %3046 = vmatpush1.bf16.msra.mxu0 0
    %3047 = vmatprep.subr.bf16.mxu0 0
    %3048 = vmatpush1.bf16.msra.mxu0 0
    %3049 = vmatprep.subr.bf16.mxu0 0
    %3050 = vmatpush1.bf16.msra.mxu0 0
    %3051 = vmatprep.subr.bf16.mxu0 0
    %3052 = vmatpush1.bf16.msra.mxu0 0
    %3053 = vmatprep.subr.bf16.mxu0 0
    %3054 = vmatpush1.bf16.msra.mxu0 0
    %3055 = vmatprep.subr.bf16.mxu0 0
    %3056 = vmatpush1.bf16.msra.mxu0 0
    %3057 = vmatprep.subr.bf16.mxu0 0
    %3058 = vmatpush1.bf16.msra.mxu0 0
    %3059 = vmatprep.subr.bf16.mxu0 0
    %3060 = vmatpush1.bf16.msra.mxu0 0
    %3061 = vmatprep.subr.bf16.mxu0 0
    %3062 = vmatpush1.bf16.msra.mxu0 0
    %3063 = vmatprep.subr.bf16.mxu0 0
    %3064 = vmatpush1.bf16.msra.mxu0 0
    %3065 = vmatprep.subr.bf16.mxu0 0
    %3066 = vmatpush1.bf16.msra.mxu0 0
    %3067 = vmatprep.subr.bf16.mxu0 0
    %3068 = vmatpush1.bf16.msra.mxu0 0
    %3069 = vmatprep.subr.bf16.mxu0 0
    %3070 = vmatpush1.bf16.msra.mxu0 0
    %3071 = vmatprep.subr.bf16.mxu0 0
    %3072 = vmatpush1.bf16.msra.mxu0 0
    %3073 = vmatprep.subr.bf16.mxu0 0
    %3074 = vmatpush1.bf16.msra.mxu0 0
    %3075 = vmatprep.mubr.bf16.mxu0 0
    %3076 = vmatmul.mubr.bf16.gmra.mrb[0].mxu0 %v3041
    %v3077 = vpop.f32.mrb[0].mxu0
    %v3078 = vadd.f32 0.0, %v3077
    %v3079 = vpop.f32.mrb[0].mxu0
    %v3080 = vpop.f32.mrb[0].mxu0
    %v3081 = vadd.f32 0.0, %v3080
    %v3082 = vpop.f32.mrb[0].mxu0
    %3083 = vdwg.mxu0
    %3088 = vrot.lane.b32.xlu0 %v3031, 64
    %v3089 = vpop.permute.xlu0 %3088
    %3090 = vrot.lane.b32.xlu0 %v3034, 64
    %v3091 = vpop.permute.xlu0 %3090
    %3092 = vrot.lane.b32.xlu0 %v3078, 64
    %v3093 = vpop.permute.xlu0 %3092
    %3094 = vrot.lane.b32.xlu0 %v3081, 64
    %v3095 = vpop.permute.xlu0 %3094
    %3100 = vst.msk [vmem:[#allocation2] sm:$0xff] %vm1208, %v3089
    %3101 = vst.msk [vmem:[#allocation2 + $0x8] sm:$0xff] %vm1208, %v3091
    %3102 = vst.msk [vmem:[#allocation2 + $0x10] sm:$0xff] %vm1208, %v3093
    %3103 = vst.msk [vmem:[#allocation2 + $0x18] sm:$0xff] %vm1208, %v3095
    %3104 = vrot.lane.b32.xlu0 %v2336, 32
    %v3105 = vpop.permute.xlu0 %3104
    %3106 = vrot.lane.b32.xlu0 %v2337, 32
    %v3107 = vpop.permute.xlu0 %3106
    %v3109 = vsel %vm447, %v3105, 0
    %v3112 = vsel %vm447, %v3107, 0
    %3114 = vmatprep.subr.bf16.mxu0 0
    %3115 = vmatpush1.bf16.xpose.msra.mxu0 %v3112
    %3116 = vmatprep.subr.bf16.mxu0 0
    %3117 = vmatpush1.bf16.xpose.msra.mxu0 0
    %3118 = vmatprep.subr.bf16.mxu0 0
    %3119 = vmatpush1.bf16.xpose.msra.mxu0 0
    %3120 = vmatprep.subr.bf16.mxu0 0
    %3121 = vmatpush1.bf16.xpose.msra.mxu0 0
    %3122 = vmatprep.subr.bf16.mxu0 0
    %3123 = vmatpush1.bf16.xpose.msra.mxu0 0
    %3124 = vmatprep.subr.bf16.mxu0 0
    %3125 = vmatpush1.bf16.xpose.msra.mxu0 0
    %3126 = vmatprep.subr.bf16.mxu0 0
    %3127 = vmatpush1.bf16.xpose.msra.mxu0 0
    %3128 = vmatprep.subr.bf16.mxu0 0
    %3129 = vmatpush1.bf16.xpose.msra.mxu0 0
    %3130 = vmatprep.subr.bf16.mxu0 0
    %3131 = vmatpush1.bf16.xpose.msra.mxu0 0
    %3132 = vmatprep.subr.bf16.mxu0 0
    %3133 = vmatpush1.bf16.xpose.msra.mxu0 0
    %3134 = vmatprep.subr.bf16.mxu0 0
    %3135 = vmatpush1.bf16.xpose.msra.mxu0 0
    %3136 = vmatprep.subr.bf16.mxu0 0
    %3137 = vmatpush1.bf16.xpose.msra.mxu0 0
    %3138 = vmatprep.subr.bf16.mxu0 0
    %3139 = vmatpush1.bf16.xpose.msra.mxu0 0
    %3140 = vmatprep.subr.bf16.mxu0 0
    %3141 = vmatpush1.bf16.xpose.msra.mxu0 0
    %3142 = vmatprep.subr.bf16.mxu0 0
    %3143 = vmatpush1.bf16.xpose.msra.mxu0 0
    %3144 = vmatprep.subr.bf16.mxu0 0
    %3145 = vmatpush1.bf16.xpose.msra.mxu0 0
    %3146 = vmatprep.mubr.bf16.mxu0 0
    %3147 = vmatmul.mubr.bf16.gmra.mrb[0].mxu0 %v3109
    %v3148 = vpop.f32.mrb[0].mxu0
    %v3149 = vadd.f32 0.0, %v3148
    %v3150 = vpop.f32.mrb[0].mxu0
    %v3151 = vpop.f32.mrb[0].mxu0
    %v3152 = vadd.f32 0.0, %v3151
    %v3153 = vpop.f32.mrb[0].mxu0
    %3154 = vdwg.mxu0
    %3155 = vrot.lane.b32.xlu0 %v2339, 32
    %v3156 = vpop.permute.xlu0 %3155
    %3157 = vrot.lane.b32.xlu0 %v2340, 32
    %v3158 = vpop.permute.xlu0 %3157
    %v3160 = vsel %vm447, %v3156, 0
    %v3163 = vsel %vm447, %v3158, 0
    %3165 = vmatprep.subr.bf16.mxu0 0
    %3166 = vmatpush1.bf16.xpose.msra.mxu0 %v3163
    %3167 = vmatprep.subr.bf16.mxu0 0
    %3168 = vmatpush1.bf16.xpose.msra.mxu0 0
    %3169 = vmatprep.subr.bf16.mxu0 0
    %3170 = vmatpush1.bf16.xpose.msra.mxu0 0
    %3171 = vmatprep.subr.bf16.mxu0 0
    %3172 = vmatpush1.bf16.xpose.msra.mxu0 0
    %3173 = vmatprep.subr.bf16.mxu0 0
    %3174 = vmatpush1.bf16.xpose.msra.mxu0 0
    %3175 = vmatprep.subr.bf16.mxu0 0
    %3176 = vmatpush1.bf16.xpose.msra.mxu0 0
    %3177 = vmatprep.subr.bf16.mxu0 0
    %3178 = vmatpush1.bf16.xpose.msra.mxu0 0
    %3179 = vmatprep.subr.bf16.mxu0 0
    %3180 = vmatpush1.bf16.xpose.msra.mxu0 0
    %3181 = vmatprep.subr.bf16.mxu0 0
    %3182 = vmatpush1.bf16.xpose.msra.mxu0 0
    %3183 = vmatprep.subr.bf16.mxu0 0
    %3184 = vmatpush1.bf16.xpose.msra.mxu0 0
    %3185 = vmatprep.subr.bf16.mxu0 0
    %3186 = vmatpush1.bf16.xpose.msra.mxu0 0
    %3187 = vmatprep.subr.bf16.mxu0 0
    %3188 = vmatpush1.bf16.xpose.msra.mxu0 0
    %3189 = vmatprep.subr.bf16.mxu0 0
    %3190 = vmatpush1.bf16.xpose.msra.mxu0 0
    %3191 = vmatprep.subr.bf16.mxu0 0
    %3192 = vmatpush1.bf16.xpose.msra.mxu0 0
    %3193 = vmatprep.subr.bf16.mxu0 0
    %3194 = vmatpush1.bf16.xpose.msra.mxu0 0
    %3195 = vmatprep.subr.bf16.mxu0 0
    %3196 = vmatpush1.bf16.xpose.msra.mxu0 0
    %3197 = vmatprep.mubr.bf16.mxu0 0
    %3198 = vmatmul.mubr.bf16.gmra.mrb[0].mxu0 %v3160
    %v3199 = vpop.f32.mrb[0].mxu0
    %v3200 = vadd.f32 0.0, %v3199
    %v3201 = vpop.f32.mrb[0].mxu0
    %v3202 = vpop.f32.mrb[0].mxu0
    %v3203 = vadd.f32 0.0, %v3202
    %v3204 = vpop.f32.mrb[0].mxu0
    %3205 = vdwg.mxu0
    %v3206 = vsel %vm542, %v3149, -inf
    %3207 = vmax.xlane.f32.xlu0 %v3206
    %v3208 = vpop.xlane.xlu0 %3207
    %v3209 = vsel %vm542, %v3152, -inf
    %3210 = vmax.xlane.f32.xlu0 %v3209
    %v3211 = vpop.xlane.xlu0 %3210
    %v3212 = vsel %vm542, %v3200, -inf
    %3213 = vmax.xlane.f32.xlu0 %v3212
    %v3214 = vpop.xlane.xlu0 %3213
    %v3215 = vsel %vm542, %v3203, -inf
    %3216 = vmax.xlane.f32.xlu0 %v3215
    %v3217 = vpop.xlane.xlu0 %3216
    %v3218 = vsub.f32 %v3149, %v3208
    %v3219 = vsub.f32 %v3152, %v3211
    %v3220 = vsub.f32 %v3200, %v3214
    %v3221 = vsub.f32 %v3203, %v3217
    %v3222 = vmul.f32 %v3218, 1.442695
    %v3223 = vpow.pop %v3222
    %v3224 = vmul.f32 %v3219, 1.442695
    %v3225 = vpow.pop %v3224
    %v3226 = vmul.f32 %v3220, 1.442695
    %v3227 = vpow.pop %v3226
    %v3228 = vmul.f32 %v3221, 1.442695
    %v3229 = vpow.pop %v3228
    %v3230 = vsel %vm542, %v3223, 0.0
    %3231 = vadd.xlane.f32.xlu0 %v3230
    %v3232 = vpop.xlane.xlu0 %3231
    %v3233 = vsel %vm542, %v3225, 0.0
    %3234 = vadd.xlane.f32.xlu0 %v3233
    %v3235 = vpop.xlane.xlu0 %3234
    %v3236 = vsel %vm542, %v3227, 0.0
    %3237 = vadd.xlane.f32.xlu0 %v3236
    %v3238 = vpop.xlane.xlu0 %3237
    %v3239 = vsel %vm542, %v3229, 0.0
    %3240 = vadd.xlane.f32.xlu0 %v3239
    %v3241 = vpop.xlane.xlu0 %3240
    %v3242 = vrcp.pop %v3232
    %v3243 = vmul.f32 %v3223, %v3242
    %v3244 = vrcp.pop %v3235
    %v3245 = vmul.f32 %v3225, %v3244
    %v3246 = vrcp.pop %v3238
    %v3247 = vmul.f32 %v3227, %v3246
    %v3248 = vrcp.pop %v3241
    %v3249 = vmul.f32 %v3229, %v3248
    %v3250 = vpack.c.bf16 %v3245, %v3243
    %v3251 = vpack.c.bf16 %v3249, %v3247
    %3252 = vrot.lane.b32.xlu0 %v2338, 32
    %v3253 = vpop.permute.xlu0 %3252
    %v3256 = vsel %vm542, %v3250, 0
    %3258 = vmatprep.subr.bf16.mxu0 0
    %3259 = vmatpush1.bf16.msra.mxu0 %v3253
    %3260 = vmatprep.subr.bf16.mxu0 0
    %3261 = vmatpush1.bf16.msra.mxu0 0
    %3262 = vmatprep.subr.bf16.mxu0 0
    %3263 = vmatpush1.bf16.msra.mxu0 0
    %3264 = vmatprep.subr.bf16.mxu0 0
    %3265 = vmatpush1.bf16.msra.mxu0 0
    %3266 = vmatprep.subr.bf16.mxu0 0
    %3267 = vmatpush1.bf16.msra.mxu0 0
    %3268 = vmatprep.subr.bf16.mxu0 0
    %3269 = vmatpush1.bf16.msra.mxu0 0
    %3270 = vmatprep.subr.bf16.mxu0 0
    %3271 = vmatpush1.bf16.msra.mxu0 0
    %3272 = vmatprep.subr.bf16.mxu0 0
    %3273 = vmatpush1.bf16.msra.mxu0 0
    %3274 = vmatprep.subr.bf16.mxu0 0
    %3275 = vmatpush1.bf16.msra.mxu0 0
    %3276 = vmatprep.subr.bf16.mxu0 0
    %3277 = vmatpush1.bf16.msra.mxu0 0
    %3278 = vmatprep.subr.bf16.mxu0 0
    %3279 = vmatpush1.bf16.msra.mxu0 0
    %3280 = vmatprep.subr.bf16.mxu0 0
    %3281 = vmatpush1.bf16.msra.mxu0 0
    %3282 = vmatprep.subr.bf16.mxu0 0
    %3283 = vmatpush1.bf16.msra.mxu0 0
    %3284 = vmatprep.subr.bf16.mxu0 0
    %3285 = vmatpush1.bf16.msra.mxu0 0
    %3286 = vmatprep.subr.bf16.mxu0 0
    %3287 = vmatpush1.bf16.msra.mxu0 0
    %3288 = vmatprep.subr.bf16.mxu0 0
    %3289 = vmatpush1.bf16.msra.mxu0 0
    %3290 = vmatprep.mubr.bf16.mxu0 0
    %3291 = vmatmul.mubr.bf16.gmra.mrb[0].mxu0 %v3256
    %v3292 = vpop.f32.mrb[0].mxu0
    %v3293 = vadd.f32 0.0, %v3292
    %v3294 = vpop.f32.mrb[0].mxu0
    %v3295 = vpop.f32.mrb[0].mxu0
    %v3296 = vadd.f32 0.0, %v3295
    %v3297 = vpop.f32.mrb[0].mxu0
    %3298 = vdwg.mxu0
    %3299 = vrot.lane.b32.xlu0 %v2341, 32
    %v3300 = vpop.permute.xlu0 %3299
    %v3303 = vsel %vm542, %v3251, 0
    %3305 = vmatprep.subr.bf16.mxu0 0
    %3306 = vmatpush1.bf16.msra.mxu0 %v3300
    %3307 = vmatprep.subr.bf16.mxu0 0
    %3308 = vmatpush1.bf16.msra.mxu0 0
    %3309 = vmatprep.subr.bf16.mxu0 0
    %3310 = vmatpush1.bf16.msra.mxu0 0
    %3311 = vmatprep.subr.bf16.mxu0 0
    %3312 = vmatpush1.bf16.msra.mxu0 0
    %3313 = vmatprep.subr.bf16.mxu0 0
    %3314 = vmatpush1.bf16.msra.mxu0 0
    %3315 = vmatprep.subr.bf16.mxu0 0
    %3316 = vmatpush1.bf16.msra.mxu0 0
    %3317 = vmatprep.subr.bf16.mxu0 0
    %3318 = vmatpush1.bf16.msra.mxu0 0
    %3319 = vmatprep.subr.bf16.mxu0 0
    %3320 = vmatpush1.bf16.msra.mxu0 0
    %3321 = vmatprep.subr.bf16.mxu0 0
    %3322 = vmatpush1.bf16.msra.mxu0 0
    %3323 = vmatprep.subr.bf16.mxu0 0
    %3324 = vmatpush1.bf16.msra.mxu0 0
    %3325 = vmatprep.subr.bf16.mxu0 0
    %3326 = vmatpush1.bf16.msra.mxu0 0
    %3327 = vmatprep.subr.bf16.mxu0 0
    %3328 = vmatpush1.bf16.msra.mxu0 0
    %3329 = vmatprep.subr.bf16.mxu0 0
    %3330 = vmatpush1.bf16.msra.mxu0 0
    %3331 = vmatprep.subr.bf16.mxu0 0
    %3332 = vmatpush1.bf16.msra.mxu0 0
    %3333 = vmatprep.subr.bf16.mxu0 0
    %3334 = vmatpush1.bf16.msra.mxu0 0
    %3335 = vmatprep.subr.bf16.mxu0 0
    %3336 = vmatpush1.bf16.msra.mxu0 0
    %3337 = vmatprep.mubr.bf16.mxu0 0
    %3338 = vmatmul.mubr.bf16.gmra.mrb[0].mxu0 %v3303
    %v3339 = vpop.f32.mrb[0].mxu0
    %v3340 = vadd.f32 0.0, %v3339
    %v3341 = vpop.f32.mrb[0].mxu0
    %v3342 = vpop.f32.mrb[0].mxu0
    %v3343 = vadd.f32 0.0, %v3342
    %v3344 = vpop.f32.mrb[0].mxu0
    %3345 = vdwg.mxu0
    %3350 = vrot.lane.b32.xlu0 %v3293, 96
    %v3351 = vpop.permute.xlu0 %3350
    %3352 = vrot.lane.b32.xlu0 %v3296, 96
    %v3353 = vpop.permute.xlu0 %3352
    %3354 = vrot.lane.b32.xlu0 %v3340, 96
    %v3355 = vpop.permute.xlu0 %3354
    %3356 = vrot.lane.b32.xlu0 %v3343, 96
    %v3357 = vpop.permute.xlu0 %3356
    %3362 = vst.msk [vmem:[#allocation2] sm:$0xff] %vm1471, %v3351
    %3363 = vst.msk [vmem:[#allocation2 + $0x8] sm:$0xff] %vm1471, %v3353
    %3364 = vst.msk [vmem:[#allocation2 + $0x10] sm:$0xff] %vm1471, %v3355
    %3365 = vst.msk [vmem:[#allocation2 + $0x18] sm:$0xff] %vm1471, %v3357
    %v3366 = vld [vmem:[#allocation2] sm:$0xff]
    %v3367 = vld [vmem:[#allocation2 + $0x8] sm:$0xff]
    %v3368 = vld [vmem:[#allocation2 + $0x10] sm:$0xff]
    %v3369 = vld [vmem:[#allocation2 + $0x18] sm:$0xff]
    %v3370 = vpack.c.bf16 %v3367, %v3366
    %v3371 = vpack.c.bf16 %v3369, %v3368
    %s3372 = scalar_lea.vmem [#allocation6], 64
    %v3373 = vld [vmem:[%s3372] sm:$0xf]
    %v3374 = vld [vmem:[%s3372 + $0x4] sm:$0xf]
    %v3375 = vld [vmem:[%s3372 + $0x8] sm:$0xf]
    %v3376 = vld [vmem:[%s3372 + $0xc] sm:$0xf]
    %v3377 = vld [vmem:[%s3372 + $0x10] sm:$0xf]
    %v3378 = vld [vmem:[%s3372 + $0x14] sm:$0xf]
    %v3379 = vld [vmem:[%s3372 + $0x18] sm:$0xf]
    %v3380 = vld [vmem:[%s3372 + $0x1c] sm:$0xf]
    %v3381 = vld [vmem:[%s3372 + $0x20] sm:$0xf]
    %v3382 = vld [vmem:[%s3372 + $0x24] sm:$0xf]
    %v3383 = vld [vmem:[%s3372 + $0x28] sm:$0xf]
    %v3384 = vld [vmem:[%s3372 + $0x2c] sm:$0xf]
    %v3385 = vld [vmem:[%s3372 + $0x30] sm:$0xf]
    %v3386 = vld [vmem:[%s3372 + $0x34] sm:$0xf]
    %v3387 = vld [vmem:[%s3372 + $0x38] sm:$0xf]
    %v3388 = vld [vmem:[%s3372 + $0x3c] sm:$0xf]
    %s3389 = scalar_lea.vmem %s5, 1
    %v3390 = vld [vmem:[%s3389] sm:$0x1]
    %v3392 = vlaneseq
    %v3393 = vshrl.u32 %v3392, 7
    %v3394 = vsub.s32 0, %v3393
    %v3395 = vrot.slane %v3390, %v3394
    %v3413 = vunpack.c.l.b16 %v3373
    %v3414 = vunpack.c.l.b16 %v3374
    %v3415 = vunpack.c.l.b16 %v3375
    %v3416 = vunpack.c.l.b16 %v3376
    %v3417 = vunpack.c.l.b16 %v3377
    %v3418 = vunpack.c.l.b16 %v3378
    %v3419 = vunpack.c.l.b16 %v3379
    %v3420 = vunpack.c.l.b16 %v3380
    %v3421 = vunpack.c.l.b16 %v3381
    %v3422 = vunpack.c.l.b16 %v3382
    %v3423 = vunpack.c.l.b16 %v3383
    %v3424 = vunpack.c.l.b16 %v3384
    %v3425 = vunpack.c.l.b16 %v3385
    %v3426 = vunpack.c.l.b16 %v3386
    %v3427 = vunpack.c.l.b16 %v3387
    %v3428 = vunpack.c.l.b16 %v3388
    %v3429 = vpack.c.b16 %v3414, %v3413
    %v3430 = vpack.c.b16 %v3416, %v3415
    %v3431 = vpack.c.b16 %v3418, %v3417
    %v3432 = vpack.c.b16 %v3420, %v3419
    %v3433 = vpack.c.b16 %v3422, %v3421
    %v3434 = vpack.c.b16 %v3424, %v3423
    %v3435 = vpack.c.b16 %v3426, %v3425
    %v3436 = vpack.c.b16 %v3428, %v3427
    %3445 = vmatprep.subr.bf16.mxu0 0
    %3446 = vmatpush1.bf16.msra.mxu0 %v3429
    %3447 = vmatprep.subr.bf16.mxu0 0
    %3448 = vmatpush1.bf16.msra.mxu0 %v3430
    %3449 = vmatprep.subr.bf16.mxu0 0
    %3450 = vmatpush1.bf16.msra.mxu0 %v3431
    %3451 = vmatprep.subr.bf16.mxu0 0
    %3452 = vmatpush1.bf16.msra.mxu0 %v3432
    %3453 = vmatprep.subr.bf16.mxu0 0
    %3454 = vmatpush1.bf16.msra.mxu0 %v3433
    %3455 = vmatprep.subr.bf16.mxu0 0
    %3456 = vmatpush1.bf16.msra.mxu0 %v3434
    %3457 = vmatprep.subr.bf16.mxu0 0
    %3458 = vmatpush1.bf16.msra.mxu0 %v3435
    %3459 = vmatprep.subr.bf16.mxu0 0
    %3460 = vmatpush1.bf16.msra.mxu0 %v3436
    %3461 = vmatprep.subr.bf16.mxu0 0
    %3462 = vmatpush1.bf16.msra.mxu0 0
    %3463 = vmatprep.subr.bf16.mxu0 0
    %3464 = vmatpush1.bf16.msra.mxu0 0
    %3465 = vmatprep.subr.bf16.mxu0 0
    %3466 = vmatpush1.bf16.msra.mxu0 0
    %3467 = vmatprep.subr.bf16.mxu0 0
    %3468 = vmatpush1.bf16.msra.mxu0 0
    %3469 = vmatprep.subr.bf16.mxu0 0
    %3470 = vmatpush1.bf16.msra.mxu0 0
    %3471 = vmatprep.subr.bf16.mxu0 0
    %3472 = vmatpush1.bf16.msra.mxu0 0
    %3473 = vmatprep.subr.bf16.mxu0 0
    %3474 = vmatpush1.bf16.msra.mxu0 0
    %3475 = vmatprep.subr.bf16.mxu0 0
    %3476 = vmatpush1.bf16.msra.mxu0 0
    %3477 = vmatprep.mubr.bf16.mxu0 0
    %3478 = vmatmul.mubr.bf16.gmra.mrb[0].mxu0 %v3370
    %v3479 = vpop.f32.mrb[0].mxu0
    %v3480 = vadd.f32 %v3395, %v3479
    %v3481 = vpop.f32.mrb[0].mxu0
    %v3482 = vpop.f32.mrb[0].mxu0
    %v3483 = vadd.f32 %v3395, %v3482
    %v3484 = vpop.f32.mrb[0].mxu0
    %3485 = vmatprep.mubr.bf16.mxu0 0
    %3486 = vmatmul.mubr.bf16.gmra.mrb[0].mxu0 %v3371
    %v3487 = vpop.f32.mrb[0].mxu0
    %v3488 = vadd.f32 %v3395, %v3487
    %v3489 = vpop.f32.mrb[0].mxu0
    %v3490 = vpop.f32.mrb[0].mxu0
    %v3491 = vadd.f32 %v3395, %v3490
    %v3492 = vpop.f32.mrb[0].mxu0
    %3493 = vdwg.mxu0
    %v3494 = vadd.f32 %v2067, %v3480
    %v3495 = vadd.f32 %v2068, %v3483
    %v3496 = vadd.f32 %v2069, %v3488
    %v3497 = vadd.f32 %v2070, %v3491
    %s3498 = scalar_lea.vmem %s6, 1
    %v3499 = vld [vmem:[%s3498] sm:$0x1]
    %s3500 = scalar_lea.vmem %s7, 1
    %v3501 = vld [vmem:[%s3500] sm:$0x1]
    %v3502 = vadd.f32 %v3494, %v3495
    %v3503 = vadd.f32 %v3502, %v3496
    %v3504 = vadd.f32 %v3503, %v3497
    %v3505 = vrot.slane %v3504, 4
    %v3506 = vadd.f32 %v3504, %v3505
    %v3507 = vrot.slane %v3506, 2
    %v3508 = vadd.f32 %v3506, %v3507
    %v3509 = vrot.slane %v3508, 1
    %v3510 = vadd.f32 %v3508, %v3509
    %v3511 = vmul.f32 %v3510, 0.03125
    %v3512 = vsub.f32 %v3494, %v3511
    %v3513 = vsub.f32 %v3495, %v3511
    %v3514 = vsub.f32 %v3496, %v3511
    %v3515 = vsub.f32 %v3497, %v3511
    %v3516 = vmul.f32 %v3512, %v3512
    %v3517 = vmul.f32 %v3513, %v3513
    %v3518 = vmul.f32 %v3514, %v3514
    %v3519 = vmul.f32 %v3515, %v3515
    %v3520 = vadd.f32 %v3516, %v3517
    %v3521 = vadd.f32 %v3520, %v3518
    %v3522 = vadd.f32 %v3521, %v3519
    %v3523 = vrot.slane %v3522, 4
    %v3524 = vadd.f32 %v3522, %v3523
    %v3525 = vrot.slane %v3524, 2
    %v3526 = vadd.f32 %v3524, %v3525
    %v3527 = vrot.slane %v3526, 1
    %v3528 = vadd.f32 %v3526, %v3527
    %v3529 = vmul.f32 %v3528, 0.03125
    %v3530 = vadd.f32 %v3529, 1e-05
    %v3531 = vrsqrt.pop %v3530
    %v3532 = vmul.f32 %v3531, %v3499
    %v3533 = vlaneseq
    %v3534 = vshrl.u32 %v3533, 7
    %v3535 = vsub.s32 0, %v3534
    %v3536 = vrot.slane %v3532, %v3535
    %v3537 = vmul.f32 %v3512, %v3536
    %v3538 = vmul.f32 %v3513, %v3536
    %v3539 = vmul.f32 %v3514, %v3536
    %v3540 = vmul.f32 %v3515, %v3536
    %v3542 = vlaneseq
    %v3543 = vshrl.u32 %v3542, 7
    %v3544 = vsub.s32 0, %v3543
    %v3545 = vrot.slane %v3501, %v3544
    %v3547 = vadd.f32 %v3537, %v3545
    %v3548 = vadd.f32 %v3538, %v3545
    %v3549 = vadd.f32 %v3539, %v3545
    %v3550 = vadd.f32 %v3540, %v3545
    %v3551 = vpack.c.bf16 %v3548, %v3547
    %v3552 = vpack.c.bf16 %v3550, %v3549
    %s3553 = scalar_lea.vmem [#allocation8], 128
    %v3554 = vld [vmem:[%s3553] sm:$0xff]
    %v3555 = vld [vmem:[%s3553 + $0x8] sm:$0xff]
    %v3556 = vld [vmem:[%s3553 + $0x10] sm:$0xff]
    %v3557 = vld [vmem:[%s3553 + $0x18] sm:$0xff]
    %v3558 = vld [vmem:[%s3553 + $0x20] sm:$0xff]
    %v3559 = vld [vmem:[%s3553 + $0x28] sm:$0xff]
    %v3560 = vld [vmem:[%s3553 + $0x30] sm:$0xff]
    %v3561 = vld [vmem:[%s3553 + $0x38] sm:$0xff]
    %v3562 = vld [vmem:[%s3553 + $0x40] sm:$0xff]
    %v3563 = vld [vmem:[%s3553 + $0x48] sm:$0xff]
    %v3564 = vld [vmem:[%s3553 + $0x50] sm:$0xff]
    %v3565 = vld [vmem:[%s3553 + $0x58] sm:$0xff]
    %v3566 = vld [vmem:[%s3553 + $0x60] sm:$0xff]
    %v3567 = vld [vmem:[%s3553 + $0x68] sm:$0xff]
    %v3568 = vld [vmem:[%s3553 + $0x70] sm:$0xff]
    %v3569 = vld [vmem:[%s3553 + $0x78] sm:$0xff]
    %s3570 = scalar_lea.vmem %s9, 2
    %v3571 = vld [vmem:[%s3570] sm:$0x3]
    %v3573 = vlaneseq
    %v3574 = vshrl.u32 %v3573, 7
    %v3575 = vsub.s32 0, %v3574
    %v3576 = vrot.slane %v3571, %v3575
    %v3577 = vlaneseq
    %v3578 = vshrl.u32 %v3577, 7
    %v3579 = vsub.s32 1, %v3578
    %v3580 = vrot.slane %v3571, %v3579
    %v3599 = vunpack.c.l.b16 %v3554
    %v3600 = vunpack.c.h.b16 %v3554
    %v3601 = vunpack.c.l.b16 %v3555
    %v3602 = vunpack.c.h.b16 %v3555
    %v3603 = vunpack.c.l.b16 %v3556
    %v3604 = vunpack.c.h.b16 %v3556
    %v3605 = vunpack.c.l.b16 %v3557
    %v3606 = vunpack.c.h.b16 %v3557
    %v3607 = vunpack.c.l.b16 %v3558
    %v3608 = vunpack.c.h.b16 %v3558
    %v3609 = vunpack.c.l.b16 %v3559
    %v3610 = vunpack.c.h.b16 %v3559
    %v3611 = vunpack.c.l.b16 %v3560
    %v3612 = vunpack.c.h.b16 %v3560
    %v3613 = vunpack.c.l.b16 %v3561
    %v3614 = vunpack.c.h.b16 %v3561
    %v3615 = vunpack.c.l.b16 %v3562
    %v3616 = vunpack.c.h.b16 %v3562
    %v3617 = vunpack.c.l.b16 %v3563
    %v3618 = vunpack.c.h.b16 %v3563
    %v3619 = vunpack.c.l.b16 %v3564
    %v3620 = vunpack.c.h.b16 %v3564
    %v3621 = vunpack.c.l.b16 %v3565
    %v3622 = vunpack.c.h.b16 %v3565
    %v3623 = vunpack.c.l.b16 %v3566
    %v3624 = vunpack.c.h.b16 %v3566
    %v3625 = vunpack.c.l.b16 %v3567
    %v3626 = vunpack.c.h.b16 %v3567
    %v3627 = vunpack.c.l.b16 %v3568
    %v3628 = vunpack.c.h.b16 %v3568
    %v3629 = vunpack.c.l.b16 %v3569
    %v3630 = vunpack.c.h.b16 %v3569
    %v3631 = vpack.c.b16 %v3601, %v3599
    %v3632 = vpack.c.b16 %v3602, %v3600
    %v3633 = vpack.c.b16 %v3605, %v3603
    %v3634 = vpack.c.b16 %v3606, %v3604
    %v3635 = vpack.c.b16 %v3609, %v3607
    %v3636 = vpack.c.b16 %v3610, %v3608
    %v3637 = vpack.c.b16 %v3613, %v3611
    %v3638 = vpack.c.b16 %v3614, %v3612
    %v3639 = vpack.c.b16 %v3617, %v3615
    %v3640 = vpack.c.b16 %v3618, %v3616
    %v3641 = vpack.c.b16 %v3621, %v3619
    %v3642 = vpack.c.b16 %v3622, %v3620
    %v3643 = vpack.c.b16 %v3625, %v3623
    %v3644 = vpack.c.b16 %v3626, %v3624
    %v3645 = vpack.c.b16 %v3629, %v3627
    %v3646 = vpack.c.b16 %v3630, %v3628
    %3663 = vmatprep.subr.bf16.mxu0 %v3632
    %3664 = vmatpush1.bf16.msra.mxu0 %v3631
    %3665 = vmatprep.subr.bf16.mxu0 %v3634
    %3666 = vmatpush1.bf16.msra.mxu0 %v3633
    %3667 = vmatprep.subr.bf16.mxu0 %v3636
    %3668 = vmatpush1.bf16.msra.mxu0 %v3635
    %3669 = vmatprep.subr.bf16.mxu0 %v3638
    %3670 = vmatpush1.bf16.msra.mxu0 %v3637
    %3671 = vmatprep.subr.bf16.mxu0 %v3640
    %3672 = vmatpush1.bf16.msra.mxu0 %v3639
    %3673 = vmatprep.subr.bf16.mxu0 %v3642
    %3674 = vmatpush1.bf16.msra.mxu0 %v3641
    %3675 = vmatprep.subr.bf16.mxu0 %v3644
    %3676 = vmatpush1.bf16.msra.mxu0 %v3643
    %3677 = vmatprep.subr.bf16.mxu0 %v3646
    %3678 = vmatpush1.bf16.msra.mxu0 %v3645
    %3679 = vmatprep.subr.bf16.mxu0 0
    %3680 = vmatpush1.bf16.msra.mxu0 0
    %3681 = vmatprep.subr.bf16.mxu0 0
    %3682 = vmatpush1.bf16.msra.mxu0 0
    %3683 = vmatprep.subr.bf16.mxu0 0
    %3684 = vmatpush1.bf16.msra.mxu0 0
    %3685 = vmatprep.subr.bf16.mxu0 0
    %3686 = vmatpush1.bf16.msra.mxu0 0
    %3687 = vmatprep.subr.bf16.mxu0 0
    %3688 = vmatpush1.bf16.msra.mxu0 0
    %3689 = vmatprep.subr.bf16.mxu0 0
    %3690 = vmatpush1.bf16.msra.mxu0 0
    %3691 = vmatprep.subr.bf16.mxu0 0
    %3692 = vmatpush1.bf16.msra.mxu0 0
    %3693 = vmatprep.subr.bf16.mxu0 0
    %3694 = vmatpush1.bf16.msra.mxu0 0
    %3695 = vmatprep.mubr.bf16.mxu0 0
    %3696 = vmatmul.mubr.bf16.gmra.mrb[0].mxu0 %v3551
    %v3697 = vpop.f32.mrb[0].mxu0
    %v3698 = vadd.f32 %v3576, %v3697
    %v3699 = vpop.f32.mrb[0].mxu0
    %v3700 = vadd.f32 %v3580, %v3699
    %v3701 = vpop.f32.mrb[0].mxu0
    %v3702 = vadd.f32 %v3576, %v3701
    %v3703 = vpop.f32.mrb[0].mxu0
    %v3704 = vadd.f32 %v3580, %v3703
    %3705 = vmatprep.mubr.bf16.mxu0 0
    %3706 = vmatmul.mubr.bf16.gmra.mrb[0].mxu0 %v3552
    %v3707 = vpop.f32.mrb[0].mxu0
    %v3708 = vadd.f32 %v3576, %v3707
    %v3709 = vpop.f32.mrb[0].mxu0
    %v3710 = vadd.f32 %v3580, %v3709
    %v3711 = vpop.f32.mrb[0].mxu0
    %v3712 = vadd.f32 %v3576, %v3711
    %v3713 = vpop.f32.mrb[0].mxu0
    %v3714 = vadd.f32 %v3580, %v3713
    %3715 = vdwg.mxu0
    %v3716 = vmax.f32 %v3698, 0.0
    %v3717 = vmax.f32 %v3700, 0.0
    %v3718 = vmax.f32 %v3702, 0.0
    %v3719 = vmax.f32 %v3704, 0.0
    %v3720 = vmax.f32 %v3708, 0.0
    %v3721 = vmax.f32 %v3710, 0.0
    %v3722 = vmax.f32 %v3712, 0.0
    %v3723 = vmax.f32 %v3714, 0.0
    %v3724 = vpack.c.bf16 %v3718, %v3716
    %v3725 = vpack.c.bf16 %v3719, %v3717
    %v3726 = vpack.c.bf16 %v3722, %v3720
    %v3727 = vpack.c.bf16 %v3723, %v3721
    %s3728 = scalar_lea.vmem [#allocation9], 128
    %v3729 = vld [vmem:[%s3728] sm:$0xf]
    %v3730 = vld [vmem:[%s3728 + $0x4] sm:$0xf]
    %v3731 = vld [vmem:[%s3728 + $0x8] sm:$0xf]
    %v3732 = vld [vmem:[%s3728 + $0xc] sm:$0xf]
    %v3733 = vld [vmem:[%s3728 + $0x10] sm:$0xf]
    %v3734 = vld [vmem:[%s3728 + $0x14] sm:$0xf]
    %v3735 = vld [vmem:[%s3728 + $0x18] sm:$0xf]
    %v3736 = vld [vmem:[%s3728 + $0x1c] sm:$0xf]
    %v3737 = vld [vmem:[%s3728 + $0x20] sm:$0xf]
    %v3738 = vld [vmem:[%s3728 + $0x24] sm:$0xf]
    %v3739 = vld [vmem:[%s3728 + $0x28] sm:$0xf]
    %v3740 = vld [vmem:[%s3728 + $0x2c] sm:$0xf]
    %v3741 = vld [vmem:[%s3728 + $0x30] sm:$0xf]
    %v3742 = vld [vmem:[%s3728 + $0x34] sm:$0xf]
    %v3743 = vld [vmem:[%s3728 + $0x38] sm:$0xf]
    %v3744 = vld [vmem:[%s3728 + $0x3c] sm:$0xf]
    %v3745 = vld [vmem:[%s3728 + $0x40] sm:$0xf]
    %v3746 = vld [vmem:[%s3728 + $0x44] sm:$0xf]
    %v3747 = vld [vmem:[%s3728 + $0x48] sm:$0xf]
    %v3748 = vld [vmem:[%s3728 + $0x4c] sm:$0xf]
    %v3749 = vld [vmem:[%s3728 + $0x50] sm:$0xf]
    %v3750 = vld [vmem:[%s3728 + $0x54] sm:$0xf]
    %v3751 = vld [vmem:[%s3728 + $0x58] sm:$0xf]
    %v3752 = vld [vmem:[%s3728 + $0x5c] sm:$0xf]
    %v3753 = vld [vmem:[%s3728 + $0x60] sm:$0xf]
    %v3754 = vld [vmem:[%s3728 + $0x64] sm:$0xf]
    %v3755 = vld [vmem:[%s3728 + $0x68] sm:$0xf]
    %v3756 = vld [vmem:[%s3728 + $0x6c] sm:$0xf]
    %v3757 = vld [vmem:[%s3728 + $0x70] sm:$0xf]
    %v3758 = vld [vmem:[%s3728 + $0x74] sm:$0xf]
    %v3759 = vld [vmem:[%s3728 + $0x78] sm:$0xf]
    %v3760 = vld [vmem:[%s3728 + $0x7c] sm:$0xf]
    %s3761 = scalar_lea.vmem %s11, 1
    %v3762 = vld [vmem:[%s3761] sm:$0x1]
    %v3764 = vlaneseq
    %v3765 = vshrl.u32 %v3764, 7
    %v3766 = vsub.s32 0, %v3765
    %v3767 = vrot.slane %v3762, %v3766
    %v3801 = vunpack.c.l.b16 %v3729
    %v3802 = vunpack.c.l.b16 %v3730
    %v3803 = vunpack.c.l.b16 %v3731
    %v3804 = vunpack.c.l.b16 %v3732
    %v3805 = vunpack.c.l.b16 %v3733
    %v3806 = vunpack.c.l.b16 %v3734
    %v3807 = vunpack.c.l.b16 %v3735
    %v3808 = vunpack.c.l.b16 %v3736
    %v3809 = vunpack.c.l.b16 %v3737
    %v3810 = vunpack.c.l.b16 %v3738
    %v3811 = vunpack.c.l.b16 %v3739
    %v3812 = vunpack.c.l.b16 %v3740
    %v3813 = vunpack.c.l.b16 %v3741
    %v3814 = vunpack.c.l.b16 %v3742
    %v3815 = vunpack.c.l.b16 %v3743
    %v3816 = vunpack.c.l.b16 %v3744
    %v3817 = vunpack.c.l.b16 %v3745
    %v3818 = vunpack.c.l.b16 %v3746
    %v3819 = vunpack.c.l.b16 %v3747
    %v3820 = vunpack.c.l.b16 %v3748
    %v3821 = vunpack.c.l.b16 %v3749
    %v3822 = vunpack.c.l.b16 %v3750
    %v3823 = vunpack.c.l.b16 %v3751
    %v3824 = vunpack.c.l.b16 %v3752
    %v3825 = vunpack.c.l.b16 %v3753
    %v3826 = vunpack.c.l.b16 %v3754
    %v3827 = vunpack.c.l.b16 %v3755
    %v3828 = vunpack.c.l.b16 %v3756
    %v3829 = vunpack.c.l.b16 %v3757
    %v3830 = vunpack.c.l.b16 %v3758
    %v3831 = vunpack.c.l.b16 %v3759
    %v3832 = vunpack.c.l.b16 %v3760
    %v3833 = vpack.c.b16 %v3802, %v3801
    %v3834 = vpack.c.b16 %v3804, %v3803
    %v3835 = vpack.c.b16 %v3806, %v3805
    %v3836 = vpack.c.b16 %v3808, %v3807
    %v3837 = vpack.c.b16 %v3810, %v3809
    %v3838 = vpack.c.b16 %v3812, %v3811
    %v3839 = vpack.c.b16 %v3814, %v3813
    %v3840 = vpack.c.b16 %v3816, %v3815
    %v3841 = vpack.c.b16 %v3818, %v3817
    %v3842 = vpack.c.b16 %v3820, %v3819
    %v3843 = vpack.c.b16 %v3822, %v3821
    %v3844 = vpack.c.b16 %v3824, %v3823
    %v3845 = vpack.c.b16 %v3826, %v3825
    %v3846 = vpack.c.b16 %v3828, %v3827
    %v3847 = vpack.c.b16 %v3830, %v3829
    %v3848 = vpack.c.b16 %v3832, %v3831
    %3865 = vmatprep.subr.bf16.mxu0 0
    %3866 = vmatpush1.bf16.msra.mxu0 %v3833
    %3867 = vmatprep.subr.bf16.mxu0 0
    %3868 = vmatpush1.bf16.msra.mxu0 %v3834
    %3869 = vmatprep.subr.bf16.mxu0 0
    %3870 = vmatpush1.bf16.msra.mxu0 %v3835
    %3871 = vmatprep.subr.bf16.mxu0 0
    %3872 = vmatpush1.bf16.msra.mxu0 %v3836
    %3873 = vmatprep.subr.bf16.mxu0 0
    %3874 = vmatpush1.bf16.msra.mxu0 %v3837
    %3875 = vmatprep.subr.bf16.mxu0 0
    %3876 = vmatpush1.bf16.msra.mxu0 %v3838
    %3877 = vmatprep.subr.bf16.mxu0 0
    %3878 = vmatpush1.bf16.msra.mxu0 %v3839
    %3879 = vmatprep.subr.bf16.mxu0 0
    %3880 = vmatpush1.bf16.msra.mxu0 %v3840
    %3881 = vmatprep.subr.bf16.mxu0 0
    %3882 = vmatpush1.bf16.msra.mxu0 %v3841
    %3883 = vmatprep.subr.bf16.mxu0 0
    %3884 = vmatpush1.bf16.msra.mxu0 %v3842
    %3885 = vmatprep.subr.bf16.mxu0 0
    %3886 = vmatpush1.bf16.msra.mxu0 %v3843
    %3887 = vmatprep.subr.bf16.mxu0 0
    %3888 = vmatpush1.bf16.msra.mxu0 %v3844
    %3889 = vmatprep.subr.bf16.mxu0 0
    %3890 = vmatpush1.bf16.msra.mxu0 %v3845
    %3891 = vmatprep.subr.bf16.mxu0 0
    %3892 = vmatpush1.bf16.msra.mxu0 %v3846
    %3893 = vmatprep.subr.bf16.mxu0 0
    %3894 = vmatpush1.bf16.msra.mxu0 %v3847
    %3895 = vmatprep.subr.bf16.mxu0 0
    %3896 = vmatpush1.bf16.msra.mxu0 %v3848
    %3897 = vmatprep.mubr.bf16.mxu0 %v3725
    %3898 = vmatmul.mubr.bf16.gmra.mrb[0].mxu0 %v3724
    %v3899 = vpop.f32.mrb[0].mxu0
    %v3900 = vadd.f32 %v3767, %v3899
    %v3901 = vpop.f32.mrb[0].mxu0
    %v3902 = vpop.f32.mrb[0].mxu0
    %v3903 = vadd.f32 %v3767, %v3902
    %v3904 = vpop.f32.mrb[0].mxu0
    %3905 = vmatprep.mubr.bf16.mxu0 %v3727
    %3906 = vmatmul.mubr.bf16.gmra.mrb[0].mxu0 %v3726
    %v3907 = vpop.f32.mrb[0].mxu0
    %v3908 = vadd.f32 %v3767, %v3907
    %v3909 = vpop.f32.mrb[0].mxu0
    %v3910 = vpop.f32.mrb[0].mxu0
    %v3911 = vadd.f32 %v3767, %v3910
    %v3912 = vpop.f32.mrb[0].mxu0
    %3913 = vdwg.mxu0
    %v3914 = vadd.f32 %v3547, %v3900
    %v3915 = vadd.f32 %v3548, %v3903
    %v3916 = vadd.f32 %v3549, %v3908
    %v3917 = vadd.f32 %v3550, %v3911
    %s3918 = scalar_lea.vmem %s12, 1
    %v3919 = vld [vmem:[%s3918] sm:$0x1]
    %s3920 = scalar_lea.vmem %s13, 1
    %v3921 = vld [vmem:[%s3920] sm:$0x1]
    %v3922 = vadd.f32 %v3914, %v3915
    %v3923 = vadd.f32 %v3922, %v3916
    %v3924 = vadd.f32 %v3923, %v3917
    %v3925 = vrot.slane %v3924, 4
    %v3926 = vadd.f32 %v3924, %v3925
    %v3927 = vrot.slane %v3926, 2
    %v3928 = vadd.f32 %v3926, %v3927
    %v3929 = vrot.slane %v3928, 1
    %v3930 = vadd.f32 %v3928, %v3929
    %v3931 = vmul.f32 %v3930, 0.03125
    %v3932 = vsub.f32 %v3914, %v3931
    %v3933 = vsub.f32 %v3915, %v3931
    %v3934 = vsub.f32 %v3916, %v3931
    %v3935 = vsub.f32 %v3917, %v3931
    %v3936 = vmul.f32 %v3932, %v3932
    %v3937 = vmul.f32 %v3933, %v3933
    %v3938 = vmul.f32 %v3934, %v3934
    %v3939 = vmul.f32 %v3935, %v3935
    %v3940 = vadd.f32 %v3936, %v3937
    %v3941 = vadd.f32 %v3940, %v3938
    %v3942 = vadd.f32 %v3941, %v3939
    %v3943 = vrot.slane %v3942, 4
    %v3944 = vadd.f32 %v3942, %v3943
    %v3945 = vrot.slane %v3944, 2
    %v3946 = vadd.f32 %v3944, %v3945
    %v3947 = vrot.slane %v3946, 1
    %v3948 = vadd.f32 %v3946, %v3947
    %v3949 = vmul.f32 %v3948, 0.03125
    %v3950 = vadd.f32 %v3949, 1e-05
    %v3951 = vrsqrt.pop %v3950
    %v3952 = vmul.f32 %v3951, %v3919
    %v3953 = vlaneseq
    %v3954 = vshrl.u32 %v3953, 7
    %v3955 = vsub.s32 0, %v3954
    %v3956 = vrot.slane %v3952, %v3955
    %v3957 = vmul.f32 %v3932, %v3956
    %v3958 = vmul.f32 %v3933, %v3956
    %v3959 = vmul.f32 %v3934, %v3956
    %v3960 = vmul.f32 %v3935, %v3956
    %v3962 = vlaneseq
    %v3963 = vshrl.u32 %v3962, 7
    %v3964 = vsub.s32 0, %v3963
    %v3965 = vrot.slane %v3921, %v3964
    %v3967 = vadd.f32 %v3957, %v3965
    %v3968 = vadd.f32 %v3958, %v3965
    %v3969 = vadd.f32 %v3959, %v3965
    %v3970 = vadd.f32 %v3960, %v3965
    %3971 = vst [vmem:[#allocation11] sm:$0xff] %v3967
    %3972 = vst [vmem:[#allocation11 + $0x8] sm:$0xff] %v3968
    %3973 = vst [vmem:[#allocation11 + $0x10] sm:$0xff] %v3969
    %3974 = vst [vmem:[#allocation11 + $0x18] sm:$0xff] %v3970
    // Predicated region
    $region74: #{tpu_custom_call.1} parent=1 // pred_check
      _
    $region75: #{tpu_custom_call.1} parent=1 // pred_check_branch
      %3976 = sbr.rel (0) target = $region77
    $region76: #{tpu_custom_call.1} parent=1 // pred_region
      %s3978 = ssub.s32 512, 512
      %3979 = vsyncadd [#allocation5], %s3978
      %s3980 = sshll.u32 [#allocation11], 4
      %s3981 = int_to_ptr.vmem [resolvable:$true] %s3980
      %3986 = dma.vmem_to_hbm [thread:$0]  %s3981, 512, %s14, [#allocation5], 128, 128, 8
    $region77: #{tpu_custom_call.1} parent=1 // pred_fallthru
      _
    // Predicated region
    $region78: #{tpu_custom_call.1} parent=1 // pred_check
      _
    $region79: #{tpu_custom_call.1} parent=1 // pred_check_branch
      %3988 = sbr.rel (0) target = $region81
    $region80: #{tpu_custom_call.1} parent=1 // pred_region
      %3989 = dma.done [#allocation5], 512
    $region81: #{tpu_custom_call.1} parent=1 // pred_fallthru
      _
    %3990 = vsyncpa [#allocation4], 1
    %3991 = vsyncpa [#allocation7], 1
    %3992 = vsyncpa [#allocation10], 1
    %3993 = vsyncpa [#allocation5], 1

</llo_original>
